<compile_context>
chip_gen: v7x
topology: tpu7x:2x2x1
jax: 0.10.0
libtpu: 0.0.40
codegen_flags: <defaults>
</compile_context>

<pallas_src>
import jax
import jax.numpy as jnp
from jax.experimental import pallas as pl
from jax.experimental.pallas import tpu as pltpu


def _zero_halo(pad_ref):
    """Zero only the 1-pixel border of a (H+2, W+2, C) VMEM pad buffer."""
    Hp, Wp, C = pad_ref.shape
    zero_row = jnp.zeros((1, Wp, C), pad_ref.dtype)
    zero_col = jnp.zeros((Hp, 1, C), pad_ref.dtype)
    pad_ref[pl.ds(0, 1), :, :] = zero_row
    pad_ref[pl.ds(Hp - 1, 1), :, :] = zero_row
    pad_ref[:, pl.ds(0, 1), :] = zero_col
    pad_ref[:, pl.ds(Wp - 1, 1), :] = zero_col


def _im2col(pad_ref, H, W, c):
    """(H+2, W+2, c) padded NHWC tile -> (H*W, 9*c) with the 9 taps packed along K."""
    cols = []
    for di in range(3):
        for dj in range(3):
            cols.append(pad_ref[pl.ds(di, H), pl.ds(dj, W), :].reshape(H * W, c))
    return jnp.concatenate(cols, axis=1)


def _basic_block_kernel(x_ref, w1_ref, b1_ref, w2_ref, b2_ref, o_ref,
                        xpad_ref, ypad_ref):
    """Fused BasicBlock for one batch element (stride=1, identity residual).

    x_ref:    (1, Cin, H*W)    f32  input tile (NCHW, spatial flattened onto lanes)
    w1_ref:   (9*Cin, Cout)    bf16 conv1 weights, im2col-packed, BN1 scale folded in
    b1_ref:   (1, Cout)        f32  folded BN1 shift
    w2_ref:   (9*Cout, Cout)   bf16 conv2 weights, BN2 scale folded in
    b2_ref:   (1, Cout)        f32  folded BN2 shift
    o_ref:    (1, Cout, H*W)   f32  output tile
    xpad_ref: (H+2, W+2, Cin)  bf16 VMEM scratch: input + 1px halo
    ypad_ref: (H+2, W+2, Cout) bf16 VMEM scratch: conv1 output + 1px halo (never hits HBM)
    """
    Hp, Wp, Cin = xpad_ref.shape
    H, W = Hp - 2, Wp - 2
    Cout = o_ref.shape[1]

    x = x_ref[0]                                       # (Cin, H*W) f32 -- also residual

    # Refresh only the halo border (interior is fully overwritten below).
    _zero_halo(xpad_ref)
    _zero_halo(ypad_ref)

    # Stage the input in the padded NHWC buffer (bf16 for the MXU).
    xpad_ref[pl.ds(1, H), pl.ds(1, W), :] = (
        x.T.astype(jnp.bfloat16).reshape(H, W, Cin))

    # conv1: single K=9*Cin MXU matmul (bf16 x bf16 -> f32) + folded BN1 bias + ReLU.
    y = jnp.dot(_im2col(xpad_ref, H, W, Cin), w1_ref[...],
                preferred_element_type=jnp.float32)
    y = jnp.maximum(y + b1_ref[...], 0.0)

    # Stage the intermediate (with its own halo) in VMEM in bf16 -- no HBM round trip.
    ypad_ref[pl.ds(1, H), pl.ds(1, W), :] = (
        y.astype(jnp.bfloat16).reshape(H, W, Cout))

    # conv2 + folded BN2 bias, then identity residual (exact f32 x) + ReLU in the
    # lane-dense (Cout, H*W) output layout.
    z = jnp.dot(_im2col(ypad_ref, H, W, Cout), w2_ref[...],
                preferred_element_type=jnp.float32)
    z = z + b2_ref[...]
    out = jnp.maximum(z.T + x, 0.0)                    # (Cout, H*W); Cin == Cout
    o_ref[...] = out[None].astype(o_ref.dtype)


def _fold_bn_into_conv(w_hwio, bn, eps):
    """Fold inference-mode BN into the conv: returns (9*Cin, Cout) bf16 weights, f32 bias."""
    gamma, beta, mean, var = bn
    scale = gamma / jnp.sqrt(var + eps)                              # (Cout,)
    wf = (w_hwio * scale[None, None, None, :]).astype(jnp.bfloat16)  # scale folded into W
    cin, cout = w_hwio.shape[2], w_hwio.shape[3]
    wf = wf.reshape(9 * cin, cout)                                   # (di, dj, cin) packing
    bias = (beta - mean * scale).reshape(1, cout).astype(jnp.float32)
    return wf, bias


def basic_block_forward(x_nchw, params, eps=1e-5):
    """BasicBlock.forward for stride=1, downsample=None (identity residual)."""
    # TODO(synk): stride > 1 and a non-None `downsample` module are not implemented.
    N, C, H, W = x_nchw.shape
    Cout = params["w1"].shape[-1]
    if Cout != C:
        raise NotImplementedError("identity residual requires inplanes == planes")

    w1p, b1 = _fold_bn_into_conv(params["w1"], params["bn1"], eps)
    w2p, b2 = _fold_bn_into_conv(params["w2"], params["bn2"], eps)

    # Free row-major reshape: stays NCHW, no transpose / cast pass over HBM.
    x_flat = x_nchw.reshape(N, C, H * W).astype(jnp.float32)

    out = pl.pallas_call(
        _basic_block_kernel,
        out_shape=jax.ShapeDtypeStruct((N, Cout, H * W), jnp.float32),
        grid=(N,),
        in_specs=[
            pl.BlockSpec((1, C, H * W), lambda n: (n, 0, 0)),
            pl.BlockSpec((9 * C, Cout), lambda n: (0, 0)),
            pl.BlockSpec((1, Cout), lambda n: (0, 0)),
            pl.BlockSpec((9 * Cout, Cout), lambda n: (0, 0)),
            pl.BlockSpec((1, Cout), lambda n: (0, 0)),
        ],
        out_specs=pl.BlockSpec((1, Cout, H * W), lambda n: (n, 0, 0)),
        scratch_shapes=[
            pltpu.VMEM((H + 2, W + 2, C), jnp.bfloat16),       # padded input
            pltpu.VMEM((H + 2, W + 2, Cout), jnp.bfloat16),    # padded conv1 output
        ],
        compiler_params=pltpu.CompilerParams(
            dimension_semantics=("parallel",)),
    )(x_flat, w1p, b1, w2p, b2)

    return out.reshape(N, Cout, H, W)                  # free reshape back to NCHW


# ----------------------------- reference (plain JAX) -----------------------------
def _ref_forward(x_nchw, params, eps=1e-5):
    """Pure-JAX reference mirroring the kernel numerics (bf16 folded weights, f32 acc)."""
    dn = ("NCHW", "HWIO", "NCHW")

    def fold(w, bn):
        g, b, m, v = bn
        s = g / jnp.sqrt(v + eps)
        return (w * s[None, None, None, :]).astype(jnp.bfloat16), (b - m * s)

    w1f, b1 = fold(params["w1"], params["bn1"])
    w2f, b2 = fold(params["w2"], params["bn2"])

    def conv(x, w):
        return jax.lax.conv_general_dilated(
            x.astype(jnp.bfloat16), w, (1, 1), ((1, 1), (1, 1)),
            dimension_numbers=dn, preferred_element_type=jnp.float32)

    r = lambda v: v.reshape(1, -1, 1, 1)
    out = jnp.maximum(conv(x_nchw, w1f) + r(b1), 0.0)
    out = conv(out, w2f) + r(b2)
    out = out + x_nchw                                  # identity residual, exact f32
    return jnp.maximum(out, 0.0)


if __name__ == "__main__":
    # Small shapes consistent with the module: inplanes == planes so the identity
    # residual of BasicBlock (downsample=None, stride=1) is valid.
    N, C, H, W = 2, 4, 16, 16
    planes = C

    key = jax.random.PRNGKey(0)
    kx, kw1, kw2, kg1, kb1, km1, kv1, kg2, kb2, km2, kv2 = jax.random.split(key, 11)

    x = jax.random.normal(kx, (N, C, H, W), dtype=jnp.float32)

    # Conv weights in HWIO, scaled roughly like Kaiming init.
    fan_in = C * 3 * 3
    w1 = jax.random.normal(kw1, (3, 3, C, planes), jnp.float32) * (2.0 / fan_in) ** 0.5
    w2 = jax.random.normal(kw2, (3, 3, planes, planes), jnp.float32) * (2.0 / fan_in) ** 0.5

    # BatchNorm (inference-mode) parameters, deterministically initialized.
    bn1 = (1.0 + 0.1 * jax.random.normal(kg1, (planes,), jnp.float32),     # gamma
           0.1 * jax.random.normal(kb1, (planes,), jnp.float32),           # beta
           0.1 * jax.random.normal(km1, (planes,), jnp.float32),           # running_mean
           0.5 + jnp.abs(jax.random.normal(kv1, (planes,), jnp.float32)))  # running_var
    bn2 = (1.0 + 0.1 * jax.random.normal(kg2, (planes,), jnp.float32),
           0.1 * jax.random.normal(kb2, (planes,), jnp.float32),
           0.1 * jax.random.normal(km2, (planes,), jnp.float32),
           0.5 + jnp.abs(jax.random.normal(kv2, (planes,), jnp.float32)))

    params = {"w1": w1, "w2": w2, "bn1": bn1, "bn2": bn2}

    out = basic_block_forward(x, params)
    out = jax.block_until_ready(out)

    ref = jax.block_until_ready(_ref_forward(x, params))
    assert out.shape == (N, planes, H, W)
    # bf16 weights/activations with f32 accumulation -> relaxed tolerance.
    assert jnp.allclose(out, ref, atol=2e-2, rtol=2e-2), "Pallas output mismatch vs JAX reference"

    print("KERNEL_OK")
</pallas_src>

<mosaic_0001>
module attributes {stable_mosaic.version = 11 : i64} {
  func.func @_basic_block_kernel(%arg0: i32, %arg1: memref<1x4x256xf32, #tpu.memory_space<vmem>>, %arg2: memref<36x4xbf16, #tpu.memory_space<vmem>>, %arg3: memref<1x4xf32, #tpu.memory_space<vmem>>, %arg4: memref<36x4xbf16, #tpu.memory_space<vmem>>, %arg5: memref<1x4xf32, #tpu.memory_space<vmem>>, %arg6: memref<1x4x256xf32, #tpu.memory_space<vmem>>, %arg7: memref<18x18x4xbf16, #tpu.memory_space<vmem>>, %arg8: memref<18x18x4xbf16, #tpu.memory_space<vmem>>) attributes {dimension_semantics = [#tpu.dimension_semantics<parallel>], iteration_bounds = array<i64: 2>, scalar_prefetch = 0 : i64, scratch_operands = 2 : i64, tpu.core_type = #tpu.core_type<tc>, window_params = [{transform_indices = @transform_0, window_bounds = array<i64: 1, 4, 256>}, {pipeline_mode = #tpu.pipeline_mode<synchronous>, transform_indices = @transform_1, window_bounds = array<i64: 36, 4>}, {pipeline_mode = #tpu.pipeline_mode<synchronous>, transform_indices = @transform_2, window_bounds = array<i64: 1, 4>}, {pipeline_mode = #tpu.pipeline_mode<synchronous>, transform_indices = @transform_3, window_bounds = array<i64: 36, 4>}, {pipeline_mode = #tpu.pipeline_mode<synchronous>, transform_indices = @transform_4, window_bounds = array<i64: 1, 4>}, {transform_indices = @transform_5, window_bounds = array<i64: 1, 4, 256>}]} {
    %c0 = arith.constant 0 : index
    %c0_0 = arith.constant 0 : index
    %c0_1 = arith.constant 0 : index
    %0 = vector.load %arg1[%c0, %c0_0, %c0_1] : memref<1x4x256xf32, #tpu.memory_space<vmem>>, vector<1x4x256xf32>
    %1 = vector.shape_cast %0 : vector<1x4x256xf32> to vector<4x256xf32>
    %cst = arith.constant 0.000000e+00 : bf16
    %2 = vector.broadcast %cst : bf16 to vector<1x18x4xbf16>
    %cst_2 = arith.constant 0.000000e+00 : bf16
    %3 = vector.broadcast %cst_2 : bf16 to vector<18x1x4xbf16>
    %c0_3 = arith.constant 0 : index
    %c0_4 = arith.constant 0 : index
    %c0_5 = arith.constant 0 : index
    %4 = vector.load %arg7[%c0_3, %c0_4, %c0_5] : memref<18x18x4xbf16, #tpu.memory_space<vmem>>, vector<1x18x4xbf16>
    tpu.vector_store %arg7[%c0_3, %c0_4, %c0_5], %2 {strides = array<i32>} : memref<18x18x4xbf16, #tpu.memory_space<vmem>>, vector<1x18x4xbf16>,
    %c17 = arith.constant 17 : index
    %c0_6 = arith.constant 0 : index
    %c0_7 = arith.constant 0 : index
    %5 = vector.load %arg7[%c17, %c0_6, %c0_7] : memref<18x18x4xbf16, #tpu.memory_space<vmem>>, vector<1x18x4xbf16>
    tpu.vector_store %arg7[%c17, %c0_6, %c0_7], %2 {strides = array<i32>} : memref<18x18x4xbf16, #tpu.memory_space<vmem>>, vector<1x18x4xbf16>,
    %c0_8 = arith.constant 0 : index
    %c0_9 = arith.constant 0 : index
    %c0_10 = arith.constant 0 : index
    %6 = vector.load %arg7[%c0_8, %c0_9, %c0_10] : memref<18x18x4xbf16, #tpu.memory_space<vmem>>, vector<18x1x4xbf16>
    tpu.vector_store %arg7[%c0_8, %c0_9, %c0_10], %3 {strides = array<i32>} : memref<18x18x4xbf16, #tpu.memory_space<vmem>>, vector<18x1x4xbf16>,
    %c0_11 = arith.constant 0 : index
    %c17_12 = arith.constant 17 : index
    %c0_13 = arith.constant 0 : index
    %7 = vector.load %arg7[%c0_11, %c17_12, %c0_13] : memref<18x18x4xbf16, #tpu.memory_space<vmem>>, vector<18x1x4xbf16>
    tpu.vector_store %arg7[%c0_11, %c17_12, %c0_13], %3 {strides = array<i32>} : memref<18x18x4xbf16, #tpu.memory_space<vmem>>, vector<18x1x4xbf16>,
    %cst_14 = arith.constant 0.000000e+00 : bf16
    %8 = vector.broadcast %cst_14 : bf16 to vector<1x18x4xbf16>
    %cst_15 = arith.constant 0.000000e+00 : bf16
    %9 = vector.broadcast %cst_15 : bf16 to vector<18x1x4xbf16>
    %c0_16 = arith.constant 0 : index
    %c0_17 = arith.constant 0 : index
    %c0_18 = arith.constant 0 : index
    %10 = vector.load %arg8[%c0_16, %c0_17, %c0_18] : memref<18x18x4xbf16, #tpu.memory_space<vmem>>, vector<1x18x4xbf16>
    tpu.vector_store %arg8[%c0_16, %c0_17, %c0_18], %8 {strides = array<i32>} : memref<18x18x4xbf16, #tpu.memory_space<vmem>>, vector<1x18x4xbf16>,
    %c17_19 = arith.constant 17 : index
    %c0_20 = arith.constant 0 : index
    %c0_21 = arith.constant 0 : index
    %11 = vector.load %arg8[%c17_19, %c0_20, %c0_21] : memref<18x18x4xbf16, #tpu.memory_space<vmem>>, vector<1x18x4xbf16>
    tpu.vector_store %arg8[%c17_19, %c0_20, %c0_21], %8 {strides = array<i32>} : memref<18x18x4xbf16, #tpu.memory_space<vmem>>, vector<1x18x4xbf16>,
    %c0_22 = arith.constant 0 : index
    %c0_23 = arith.constant 0 : index
    %c0_24 = arith.constant 0 : index
    %12 = vector.load %arg8[%c0_22, %c0_23, %c0_24] : memref<18x18x4xbf16, #tpu.memory_space<vmem>>, vector<18x1x4xbf16>
    tpu.vector_store %arg8[%c0_22, %c0_23, %c0_24], %9 {strides = array<i32>} : memref<18x18x4xbf16, #tpu.memory_space<vmem>>, vector<18x1x4xbf16>,
    %c0_25 = arith.constant 0 : index
    %c17_26 = arith.constant 17 : index
    %c0_27 = arith.constant 0 : index
    %13 = vector.load %arg8[%c0_25, %c17_26, %c0_27] : memref<18x18x4xbf16, #tpu.memory_space<vmem>>, vector<18x1x4xbf16>
    tpu.vector_store %arg8[%c0_25, %c17_26, %c0_27], %9 {strides = array<i32>} : memref<18x18x4xbf16, #tpu.memory_space<vmem>>, vector<18x1x4xbf16>,
    %14 = tpu.transpose %1, [1, 0] : vector<4x256xf32> -> vector<256x4xf32>
    %15 = arith.truncf %14 : vector<256x4xf32> to vector<256x4xbf16>
    %16 = vector.shape_cast %15 : vector<256x4xbf16> to vector<16x16x4xbf16>
    %c1 = arith.constant 1 : index
    %c1_28 = arith.constant 1 : index
    %c0_29 = arith.constant 0 : index
    %17 = vector.load %arg7[%c1, %c1_28, %c0_29] : memref<18x18x4xbf16, #tpu.memory_space<vmem>>, vector<16x16x4xbf16>
    tpu.vector_store %arg7[%c1, %c1_28, %c0_29], %16 {strides = array<i32>} : memref<18x18x4xbf16, #tpu.memory_space<vmem>>, vector<16x16x4xbf16>,
    %c0_30 = arith.constant 0 : index
    %c0_31 = arith.constant 0 : index
    %c0_32 = arith.constant 0 : index
    %18 = vector.load %arg7[%c0_30, %c0_31, %c0_32] : memref<18x18x4xbf16, #tpu.memory_space<vmem>>, vector<16x16x4xbf16>
    %19 = vector.shape_cast %18 : vector<16x16x4xbf16> to vector<256x4xbf16>
    %c0_33 = arith.constant 0 : index
    %c1_34 = arith.constant 1 : index
    %c0_35 = arith.constant 0 : index
    %20 = vector.load %arg7[%c0_33, %c1_34, %c0_35] : memref<18x18x4xbf16, #tpu.memory_space<vmem>>, vector<16x16x4xbf16>
    %21 = vector.shape_cast %20 : vector<16x16x4xbf16> to vector<256x4xbf16>
    %c0_36 = arith.constant 0 : index
    %c2 = arith.constant 2 : index
    %c0_37 = arith.constant 0 : index
    %22 = vector.load %arg7[%c0_36, %c2, %c0_37] : memref<18x18x4xbf16, #tpu.memory_space<vmem>>, vector<16x16x4xbf16>
    %23 = vector.shape_cast %22 : vector<16x16x4xbf16> to vector<256x4xbf16>
    %c1_38 = arith.constant 1 : index
    %c0_39 = arith.constant 0 : index
    %c0_40 = arith.constant 0 : index
    %24 = vector.load %arg7[%c1_38, %c0_39, %c0_40] : memref<18x18x4xbf16, #tpu.memory_space<vmem>>, vector<16x16x4xbf16>
    %25 = vector.shape_cast %24 : vector<16x16x4xbf16> to vector<256x4xbf16>
    %c1_41 = arith.constant 1 : index
    %c1_42 = arith.constant 1 : index
    %c0_43 = arith.constant 0 : index
    %26 = vector.load %arg7[%c1_41, %c1_42, %c0_43] : memref<18x18x4xbf16, #tpu.memory_space<vmem>>, vector<16x16x4xbf16>
    %27 = vector.shape_cast %26 : vector<16x16x4xbf16> to vector<256x4xbf16>
    %c1_44 = arith.constant 1 : index
    %c2_45 = arith.constant 2 : index
    %c0_46 = arith.constant 0 : index
    %28 = vector.load %arg7[%c1_44, %c2_45, %c0_46] : memref<18x18x4xbf16, #tpu.memory_space<vmem>>, vector<16x16x4xbf16>
    %29 = vector.shape_cast %28 : vector<16x16x4xbf16> to vector<256x4xbf16>
    %c2_47 = arith.constant 2 : index
    %c0_48 = arith.constant 0 : index
    %c0_49 = arith.constant 0 : index
    %30 = vector.load %arg7[%c2_47, %c0_48, %c0_49] : memref<18x18x4xbf16, #tpu.memory_space<vmem>>, vector<16x16x4xbf16>
    %31 = vector.shape_cast %30 : vector<16x16x4xbf16> to vector<256x4xbf16>
    %c2_50 = arith.constant 2 : index
    %c1_51 = arith.constant 1 : index
    %c0_52 = arith.constant 0 : index
    %32 = vector.load %arg7[%c2_50, %c1_51, %c0_52] : memref<18x18x4xbf16, #tpu.memory_space<vmem>>, vector<16x16x4xbf16>
    %33 = vector.shape_cast %32 : vector<16x16x4xbf16> to vector<256x4xbf16>
    %c2_53 = arith.constant 2 : index
    %c2_54 = arith.constant 2 : index
    %c0_55 = arith.constant 0 : index
    %34 = vector.load %arg7[%c2_53, %c2_54, %c0_55] : memref<18x18x4xbf16, #tpu.memory_space<vmem>>, vector<16x16x4xbf16>
    %35 = vector.shape_cast %34 : vector<16x16x4xbf16> to vector<256x4xbf16>
    %36 = tpu.concatenate %19, %21, %23, %25, %27, %29, %31, %33, %35 in 1 : vector<256x4xbf16>, vector<256x4xbf16>, vector<256x4xbf16>, vector<256x4xbf16>, vector<256x4xbf16>, vector<256x4xbf16>, vector<256x4xbf16>, vector<256x4xbf16>, vector<256x4xbf16> -> vector<256x36xbf16>
    %c0_56 = arith.constant 0 : index
    %c0_57 = arith.constant 0 : index
    %37 = vector.load %arg2[%c0_56, %c0_57] : memref<36x4xbf16, #tpu.memory_space<vmem>>, vector<36x4xbf16>
    %cst_58 = arith.constant dense<0.000000e+00> : vector<256x4xf32>
    %38 = tpu.matmul %36, %37, %cst_58 {dimension_numbers = #tpu.dot_dimension_numbers<[1], [0], [0], [1], [0, 0, 1, 1], [], []>} : vector<256x36xbf16>, vector<36x4xbf16>, vector<256x4xf32> -> vector<256x4xf32>
    %c0_59 = arith.constant 0 : index
    %c0_60 = arith.constant 0 : index
    %39 = vector.load %arg3[%c0_59, %c0_60] : memref<1x4xf32, #tpu.memory_space<vmem>>, vector<1x4xf32>
    %40 = vector.broadcast %39 : vector<1x4xf32> to vector<256x4xf32>
    %41 = arith.addf %38, %40 : vector<256x4xf32>
    %cst_61 = arith.constant 0.000000e+00 : f32
    %42 = vector.broadcast %cst_61 : f32 to vector<256x4xf32>
    %43 = arith.maximumf %41, %42 : vector<256x4xf32>
    %44 = arith.truncf %43 : vector<256x4xf32> to vector<256x4xbf16>
    %45 = vector.shape_cast %44 : vector<256x4xbf16> to vector<16x16x4xbf16>
    %c1_62 = arith.constant 1 : index
    %c1_63 = arith.constant 1 : index
    %c0_64 = arith.constant 0 : index
    %46 = vector.load %arg8[%c1_62, %c1_63, %c0_64] : memref<18x18x4xbf16, #tpu.memory_space<vmem>>, vector<16x16x4xbf16>
    tpu.vector_store %arg8[%c1_62, %c1_63, %c0_64], %45 {strides = array<i32>} : memref<18x18x4xbf16, #tpu.memory_space<vmem>>, vector<16x16x4xbf16>,
    %c0_65 = arith.constant 0 : index
    %c0_66 = arith.constant 0 : index
    %c0_67 = arith.constant 0 : index
    %47 = vector.load %arg8[%c0_65, %c0_66, %c0_67] : memref<18x18x4xbf16, #tpu.memory_space<vmem>>, vector<16x16x4xbf16>
    %48 = vector.shape_cast %47 : vector<16x16x4xbf16> to vector<256x4xbf16>
    %c0_68 = arith.constant 0 : index
    %c1_69 = arith.constant 1 : index
    %c0_70 = arith.constant 0 : index
    %49 = vector.load %arg8[%c0_68, %c1_69, %c0_70] : memref<18x18x4xbf16, #tpu.memory_space<vmem>>, vector<16x16x4xbf16>
    %50 = vector.shape_cast %49 : vector<16x16x4xbf16> to vector<256x4xbf16>
    %c0_71 = arith.constant 0 : index
    %c2_72 = arith.constant 2 : index
    %c0_73 = arith.constant 0 : index
    %51 = vector.load %arg8[%c0_71, %c2_72, %c0_73] : memref<18x18x4xbf16, #tpu.memory_space<vmem>>, vector<16x16x4xbf16>
    %52 = vector.shape_cast %51 : vector<16x16x4xbf16> to vector<256x4xbf16>
    %c1_74 = arith.constant 1 : index
    %c0_75 = arith.constant 0 : index
    %c0_76 = arith.constant 0 : index
    %53 = vector.load %arg8[%c1_74, %c0_75, %c0_76] : memref<18x18x4xbf16, #tpu.memory_space<vmem>>, vector<16x16x4xbf16>
    %54 = vector.shape_cast %53 : vector<16x16x4xbf16> to vector<256x4xbf16>
    %c1_77 = arith.constant 1 : index
    %c1_78 = arith.constant 1 : index
    %c0_79 = arith.constant 0 : index
    %55 = vector.load %arg8[%c1_77, %c1_78, %c0_79] : memref<18x18x4xbf16, #tpu.memory_space<vmem>>, vector<16x16x4xbf16>
    %56 = vector.shape_cast %55 : vector<16x16x4xbf16> to vector<256x4xbf16>
    %c1_80 = arith.constant 1 : index
    %c2_81 = arith.constant 2 : index
    %c0_82 = arith.constant 0 : index
    %57 = vector.load %arg8[%c1_80, %c2_81, %c0_82] : memref<18x18x4xbf16, #tpu.memory_space<vmem>>, vector<16x16x4xbf16>
    %58 = vector.shape_cast %57 : vector<16x16x4xbf16> to vector<256x4xbf16>
    %c2_83 = arith.constant 2 : index
    %c0_84 = arith.constant 0 : index
    %c0_85 = arith.constant 0 : index
    %59 = vector.load %arg8[%c2_83, %c0_84, %c0_85] : memref<18x18x4xbf16, #tpu.memory_space<vmem>>, vector<16x16x4xbf16>
    %60 = vector.shape_cast %59 : vector<16x16x4xbf16> to vector<256x4xbf16>
    %c2_86 = arith.constant 2 : index
    %c1_87 = arith.constant 1 : index
    %c0_88 = arith.constant 0 : index
    %61 = vector.load %arg8[%c2_86, %c1_87, %c0_88] : memref<18x18x4xbf16, #tpu.memory_space<vmem>>, vector<16x16x4xbf16>
    %62 = vector.shape_cast %61 : vector<16x16x4xbf16> to vector<256x4xbf16>
    %c2_89 = arith.constant 2 : index
    %c2_90 = arith.constant 2 : index
    %c0_91 = arith.constant 0 : index
    %63 = vector.load %arg8[%c2_89, %c2_90, %c0_91] : memref<18x18x4xbf16, #tpu.memory_space<vmem>>, vector<16x16x4xbf16>
    %64 = vector.shape_cast %63 : vector<16x16x4xbf16> to vector<256x4xbf16>
    %65 = tpu.concatenate %48, %50, %52, %54, %56, %58, %60, %62, %64 in 1 : vector<256x4xbf16>, vector<256x4xbf16>, vector<256x4xbf16>, vector<256x4xbf16>, vector<256x4xbf16>, vector<256x4xbf16>, vector<256x4xbf16>, vector<256x4xbf16>, vector<256x4xbf16> -> vector<256x36xbf16>
    %c0_92 = arith.constant 0 : index
    %c0_93 = arith.constant 0 : index
    %66 = vector.load %arg4[%c0_92, %c0_93] : memref<36x4xbf16, #tpu.memory_space<vmem>>, vector<36x4xbf16>
    %cst_94 = arith.constant dense<0.000000e+00> : vector<256x4xf32>
    %67 = tpu.matmul %65, %66, %cst_94 {dimension_numbers = #tpu.dot_dimension_numbers<[1], [0], [0], [1], [0, 0, 1, 1], [], []>} : vector<256x36xbf16>, vector<36x4xbf16>, vector<256x4xf32> -> vector<256x4xf32>
    %c0_95 = arith.constant 0 : index
    %c0_96 = arith.constant 0 : index
    %68 = vector.load %arg5[%c0_95, %c0_96] : memref<1x4xf32, #tpu.memory_space<vmem>>, vector<1x4xf32>
    %69 = vector.broadcast %68 : vector<1x4xf32> to vector<256x4xf32>
    %70 = arith.addf %67, %69 : vector<256x4xf32>
    %71 = tpu.transpose %70, [1, 0] : vector<256x4xf32> -> vector<4x256xf32>
    %72 = arith.addf %71, %1 : vector<4x256xf32>
    %cst_97 = arith.constant 0.000000e+00 : f32
    %73 = vector.broadcast %cst_97 : f32 to vector<4x256xf32>
    %74 = arith.maximumf %72, %73 : vector<4x256xf32>
    %75 = vector.shape_cast %74 : vector<4x256xf32> to vector<1x4x256xf32>
    %c0_98 = arith.constant 0 : index
    %c0_99 = arith.constant 0 : index
    %c0_100 = arith.constant 0 : index
    %76 = vector.load %arg6[%c0_98, %c0_99, %c0_100] : memref<1x4x256xf32, #tpu.memory_space<vmem>>, vector<1x4x256xf32>
    tpu.vector_store %arg6[%c0_98, %c0_99, %c0_100], %75 {strides = array<i32>} : memref<1x4x256xf32, #tpu.memory_space<vmem>>, vector<1x4x256xf32>,
    return
  }
  func.func @transform_0(%arg0: i32) -> (i32, i32, i32) {
    %c0_i32 = arith.constant 0 : i32
    %c0_i32_0 = arith.constant 0 : i32
    %c0_i32_1 = arith.constant 0 : i32
    return %arg0, %c0_i32, %c0_i32_0 : i32, i32, i32
  }
  func.func @transform_1(%arg0: i32) -> (i32, i32) {
    %c0_i32 = arith.constant 0 : i32
    %c0_i32_0 = arith.constant 0 : i32
    %c0_i32_1 = arith.constant 0 : i32
    return %c0_i32, %c0_i32_0 : i32, i32
  }
  func.func @transform_2(%arg0: i32) -> (i32, i32) {
    %c0_i32 = arith.constant 0 : i32
    %c0_i32_0 = arith.constant 0 : i32
    %c0_i32_1 = arith.constant 0 : i32
    return %c0_i32, %c0_i32_0 : i32, i32
  }
  func.func @transform_3(%arg0: i32) -> (i32, i32) {
    %c0_i32 = arith.constant 0 : i32
    %c0_i32_0 = arith.constant 0 : i32
    %c0_i32_1 = arith.constant 0 : i32
    return %c0_i32, %c0_i32_0 : i32, i32
  }
  func.func @transform_4(%arg0: i32) -> (i32, i32) {
    %c0_i32 = arith.constant 0 : i32
    %c0_i32_0 = arith.constant 0 : i32
    %c0_i32_1 = arith.constant 0 : i32
    return %c0_i32, %c0_i32_0 : i32, i32
  }
  func.func @transform_5(%arg0: i32) -> (i32, i32, i32) {
    %c0_i32 = arith.constant 0 : i32
    %c0_i32_0 = arith.constant 0 : i32
    %c0_i32_1 = arith.constant 0 : i32
    return %arg0, %c0_i32, %c0_i32_0 : i32, i32, i32
  }
}

</mosaic_0001>

<llo_original>
// kernel: tpu_custom_call.1
$region0: #{tpu_custom_call.1}
  #allocation0 [shape = 'u32[]', space=smem, size = 0x4, offset = 0x4, fixed_abs, tag = 'smem constant byte address 0x4 - core index']
  #allocation1 [shape = 'u32[144,128]{1,0:T(1,128)}', space=vmem, size = 0x12000, scoped, tag = 'internal scratch']
  #allocation2 [shape = 'bf16[18,18,4]{2,1,0:T(8,128)(2,1)}', space=vmem, size = 0x1b000, scoped, tag = 'scratch operand']
  #allocation3 [shape = 'bf16[18,18,4]{2,1,0:T(8,128)(2,1)}', space=vmem, size = 0x1b000, scoped, tag = 'scratch operand']
  %s0 = inlined_call_operand.vmem [shape: f32[2,4,256], index: 0, kind: input, shape index: {}]
  %s1 = inlined_call_operand.vmem [shape: bf16[36,4], index: 1, kind: input, shape index: {}]
  %s2 = inlined_call_operand.vmem [shape: f32[1,4], index: 2, kind: input, shape index: {}]
  %s3 = inlined_call_operand.vmem [shape: bf16[36,4], index: 3, kind: input, shape index: {}]
  %s4 = inlined_call_operand.vmem [shape: f32[1,4], index: 4, kind: input, shape index: {}]
  %s5 = inlined_call_operand.hbm [shape: f32[2,4,256], index: 5, kind: output, shape index: {}]
  %s6 = sld [smem:[#allocation0]]
  $region53: #{tpu_custom_call.1} parent=0
    _
  %s8 = ssub.s32 1, %s6
  %s9 = scalar_select 0, %s8, %s6
  $region1: #{tpu_custom_call.1} parent=0
    #allocation4 [shape = 'u8[8192]{0}', space=vmem, size = 0x2000, scoped, tag = 'output window, operand 0']
    #allocation5 [shape = 's32[2]{0}', space=sflag, size = 0x8, scoped, tag = 'scoped memory for tpu_custom_call.1']
    %10 = vsyncpa [#allocation5], 0
    %s11 = scalar_lea.sflag [#allocation5], 1
    %12 = vsyncpa %s11, 0
    loop: start=0, step=1, limit=4
    $region2: #{tpu_custom_call.1} parent=1 // loop_pre_header
      _
    $region3: #{tpu_custom_call.1} parent=1 // loop_header
      %s14 = sphi 0, %s18
      %p15 = scmp.ge.s32.totalorder %s14, 4
      %s24 = sphi 0, %s26
      %s27 = sphi 0, %s24
      %s28 = sphi 0, %s27
      %s44 = sphi 0, %s28
      %s48 = sphi 0, %s48
      %s50 = sphi 0, %s48
      %s51 = sphi 0, %s50
      %s65 = sphi 0, %s51
      %s69 = sphi 0, %s69
      %s71 = sphi 0, %s69
      %s72 = sphi 0, %s71
      %s86 = sphi 0, %s72
      %s90 = sphi 0, %s90
      %s92 = sphi 0, %s90
      %s93 = sphi 0, %s92
      %s107 = sphi 0, %s93
      %s111 = sphi 0, %s111
      %s113 = sphi 0, %s111
      %s114 = sphi 0, %s113
      %s128 = sphi 0, %s114
      %s134 = sphi 0, %s136
      %s137 = sphi 0, %s134
      %s138 = sphi 0, %s137
      %s154 = sphi 0, %s138
    $region4: #{tpu_custom_call.1} parent=1 // loop_header_branch
      %17 = sbr.rel (%p15) target = $region8
    $region5: #{tpu_custom_call.1} parent=1 // loop_body
      %s19 = ssub.s32 %s14, 1
      %s20 = ssub.s32 %s14, 2
      %s21 = sadd.s32 %s14, 1
      %s22 = ssub.s32 %s14, %s21
      %p23 = scmp.eq.s32.totalorder %s22, 0
      %s25 = sadd.s32 %s24, 1
      %s26 = scalar_select %p23, %s24, %s25
      %p29 = pneg %p23
      %p30 = scmp.eq.s32.totalorder %s14, 1
      %p31 = por %p29, %p30
      %p32 = scmp.ne.s32.totalorder %s24, %s27
      %p33 = scmp.eq.s32.totalorder %s14, 0
      %p34 = por %p32, %p33
      %p35 = scmp.ne.s32.totalorder %s24, %s27
      %p36 = scmp.eq.s32.totalorder %s19, 1
      %p37 = por %p35, %p36
      %p38 = scmp.ne.s32.totalorder %s27, %s28
      %p39 = scmp.eq.s32.totalorder %s19, 0
      %p40 = por %p38, %p39
      %p41 = scmp.ne.s32.totalorder %s27, %s28
      %p42 = scmp.eq.s32.totalorder %s20, 1
      %p43 = por %p41, %p42
      %p45 = scmp.ne.s32.totalorder %s28, %s44
      %p46 = scmp.eq.s32.totalorder %s20, 0
      %p47 = por %p45, %p46
      %s49 = sadd.s32 %s48, 1
      %p52 = scmp.eq.s32.totalorder %s14, 1
      %p53 = scmp.ne.s32.totalorder %s48, %s50
      %p54 = scmp.eq.s32.totalorder %s14, 0
      %p55 = por %p53, %p54
      %p56 = scmp.ne.s32.totalorder %s48, %s50
      %p57 = scmp.eq.s32.totalorder %s19, 1
      %p58 = por %p56, %p57
      %p59 = scmp.ne.s32.totalorder %s50, %s51
      %p60 = scmp.eq.s32.totalorder %s19, 0
      %p61 = por %p59, %p60
      %p62 = scmp.ne.s32.totalorder %s50, %s51
      %p63 = scmp.eq.s32.totalorder %s20, 1
      %p64 = por %p62, %p63
      %p66 = scmp.ne.s32.totalorder %s51, %s65
      %p67 = scmp.eq.s32.totalorder %s20, 0
      %p68 = por %p66, %p67
      %s70 = sadd.s32 %s69, 1
      %p73 = scmp.eq.s32.totalorder %s14, 1
      %p74 = scmp.ne.s32.totalorder %s69, %s71
      %p75 = scmp.eq.s32.totalorder %s14, 0
      %p76 = por %p74, %p75
      %p77 = scmp.ne.s32.totalorder %s69, %s71
      %p78 = scmp.eq.s32.totalorder %s19, 1
      %p79 = por %p77, %p78
      %p80 = scmp.ne.s32.totalorder %s71, %s72
      %p81 = scmp.eq.s32.totalorder %s19, 0
      %p82 = por %p80, %p81
      %p83 = scmp.ne.s32.totalorder %s71, %s72
      %p84 = scmp.eq.s32.totalorder %s20, 1
      %p85 = por %p83, %p84
      %p87 = scmp.ne.s32.totalorder %s72, %s86
      %p88 = scmp.eq.s32.totalorder %s20, 0
      %p89 = por %p87, %p88
      %s91 = sadd.s32 %s90, 1
      %p94 = scmp.eq.s32.totalorder %s14, 1
      %p95 = scmp.ne.s32.totalorder %s90, %s92
      %p96 = scmp.eq.s32.totalorder %s14, 0
      %p97 = por %p95, %p96
      %p98 = scmp.ne.s32.totalorder %s90, %s92
      %p99 = scmp.eq.s32.totalorder %s19, 1
      %p100 = por %p98, %p99
      %p101 = scmp.ne.s32.totalorder %s92, %s93
      %p102 = scmp.eq.s32.totalorder %s19, 0
      %p103 = por %p101, %p102
      %p104 = scmp.ne.s32.totalorder %s92, %s93
      %p105 = scmp.eq.s32.totalorder %s20, 1
      %p106 = por %p104, %p105
      %p108 = scmp.ne.s32.totalorder %s93, %s107
      %p109 = scmp.eq.s32.totalorder %s20, 0
      %p110 = por %p108, %p109
      %s112 = sadd.s32 %s111, 1
      %p115 = scmp.eq.s32.totalorder %s14, 1
      %p116 = scmp.ne.s32.totalorder %s111, %s113
      %p117 = scmp.eq.s32.totalorder %s14, 0
      %p118 = por %p116, %p117
      %p119 = scmp.ne.s32.totalorder %s111, %s113
      %p120 = scmp.eq.s32.totalorder %s19, 1
      %p121 = por %p119, %p120
      %p122 = scmp.ne.s32.totalorder %s113, %s114
      %p123 = scmp.eq.s32.totalorder %s19, 0
      %p124 = por %p122, %p123
      %p125 = scmp.ne.s32.totalorder %s113, %s114
      %p126 = scmp.eq.s32.totalorder %s20, 1
      %p127 = por %p125, %p126
      %p129 = scmp.ne.s32.totalorder %s114, %s128
      %p130 = scmp.eq.s32.totalorder %s20, 0
      %p131 = por %p129, %p130
      %s132 = ssub.s32 %s14, %s21
      %p133 = scmp.eq.s32.totalorder %s132, 0
      %s135 = sadd.s32 %s134, 1
      %s136 = scalar_select %p133, %s134, %s135
      %p139 = pneg %p133
      %p140 = scmp.eq.s32.totalorder %s14, 1
      %p141 = por %p139, %p140
      %p142 = scmp.ne.s32.totalorder %s134, %s137
      %p143 = scmp.eq.s32.totalorder %s14, 0
      %p144 = por %p142, %p143
      %p145 = scmp.ne.s32.totalorder %s134, %s137
      %p146 = scmp.eq.s32.totalorder %s19, 1
      %p147 = por %p145, %p146
      %p148 = scmp.ne.s32.totalorder %s137, %s138
      %p149 = scmp.eq.s32.totalorder %s19, 0
      %p150 = por %p148, %p149
      %p151 = scmp.ne.s32.totalorder %s137, %s138
      %p152 = scmp.eq.s32.totalorder %s20, 1
      %p153 = por %p151, %p152
      %p155 = scmp.ne.s32.totalorder %s138, %s154
      %p156 = scmp.eq.s32.totalorder %s20, 0
      %p157 = por %p155, %p156
      %p158 = scmp.le.s32.totalorder 1, %s14
      %p159 = scmp.lt.s32.totalorder %s14, 3
      %p160 = pnand %p158, %p159
      %p161 = pneg %p160
      // Predicated region
      $region9: #{tpu_custom_call.1} parent=5 // pred_check
        _
      $region10: #{tpu_custom_call.1} parent=5 // pred_check_branch
        %163 = sbr.rel (%p160) target = $region12
      $region11: #{tpu_custom_call.1} parent=5 // pred_region
        %s164 = ssub.s32 %s14, 1
        // Predicated region
        $region13: #{tpu_custom_call.1} parent=11 // pred_check
          %p165 = pneg %p61
        $region14: #{tpu_custom_call.1} parent=11 // pred_check_branch
          %167 = sbr.rel (%p165) target = $region16
        $region15: #{tpu_custom_call.1} parent=11 // pred_region
          _
        $region16: #{tpu_custom_call.1} parent=11 // pred_fallthru
          _
        // Predicated region
        $region17: #{tpu_custom_call.1} parent=11 // pred_check
          %p168 = pneg %p82
        $region18: #{tpu_custom_call.1} parent=11 // pred_check_branch
          %170 = sbr.rel (%p168) target = $region20
        $region19: #{tpu_custom_call.1} parent=11 // pred_region
          _
        $region20: #{tpu_custom_call.1} parent=11 // pred_fallthru
          _
        // Predicated region
        $region21: #{tpu_custom_call.1} parent=11 // pred_check
          %p171 = pneg %p103
        $region22: #{tpu_custom_call.1} parent=11 // pred_check_branch
          %173 = sbr.rel (%p171) target = $region24
        $region23: #{tpu_custom_call.1} parent=11 // pred_region
          _
        $region24: #{tpu_custom_call.1} parent=11 // pred_fallthru
          _
        // Predicated region
        $region25: #{tpu_custom_call.1} parent=11 // pred_check
          %p174 = pneg %p124
        $region26: #{tpu_custom_call.1} parent=11 // pred_check_branch
          %176 = sbr.rel (%p174) target = $region28
        $region27: #{tpu_custom_call.1} parent=11 // pred_region
          _
        $region28: #{tpu_custom_call.1} parent=11 // pred_fallthru
          _
      $region12: #{tpu_custom_call.1} parent=5 // pred_fallthru
        _
      %p177 = scmp.lt.s32.totalorder %s14, 2
      // Predicated region
      $region29: #{tpu_custom_call.1} parent=5 // pred_check
        %p178 = pneg %p177
      $region30: #{tpu_custom_call.1} parent=5 // pred_check_branch
        %180 = sbr.rel (%p178) target = $region32
      $region31: #{tpu_custom_call.1} parent=5 // pred_region
        // Predicated region
        $region33: #{tpu_custom_call.1} parent=31 // pred_check
          %p181 = pneg %p34
        $region34: #{tpu_custom_call.1} parent=31 // pred_check_branch
          %183 = sbr.rel (%p181) target = $region36
        $region35: #{tpu_custom_call.1} parent=31 // pred_region
          %p184 = scmp.lt.s32.totalorder %s14, 1
          %s185 = scalar_select %p184, %s14, 1
          %s186 = smul.addr %s185, 2
          %s187 = smul.addr %s186, 4
          %s188 = scalar_lea.vmem %s0, %s187
        $region36: #{tpu_custom_call.1} parent=31 // pred_fallthru
          _
      $region32: #{tpu_custom_call.1} parent=5 // pred_fallthru
        _
      %p189 = scmp.le.s32.totalorder 1, %s14
      %p190 = scmp.lt.s32.totalorder %s14, 3
      %p191 = pnand %p189, %p190
      %p192 = pneg %p191
      // Predicated region
      $region37: #{tpu_custom_call.1} parent=5 // pred_check
        _
      $region38: #{tpu_custom_call.1} parent=5 // pred_check_branch
        %194 = sbr.rel (%p191) target = $region40
      $region39: #{tpu_custom_call.1} parent=5 // pred_region
        %s195 = ssub.s32 %s14, 1
        %p196 = scmp.lt.s32.totalorder %s19, 1
        %s197 = scalar_select %p196, %s19, 1
        %s198 = smul.addr %s197, 2
        %s199 = smul.addr %s198, 4
        %s200 = scalar_lea.vmem %s0, %s199
        %p201 = pneg %p40
        %p202 = pneg %p37
        %p203 = pneg %p61
        %p204 = pneg %p58
        %p205 = pneg %p82
        %p206 = pneg %p79
        %p207 = pneg %p103
        %p208 = pneg %p100
        %p209 = pneg %p124
        %p210 = pneg %p121
        %p211 = pneg %p150
        %p212 = pneg %p147
        %s213 = sand.u32 %s137, 1
        %s214 = scalar_lea.sflag [#allocation5], %s213
        %s215 = sand.u32 %s137, 1
        %s216 = smul.addr %s215, 8
        %s217 = scalar_lea.vmem [#allocation4], %s216
        %p218 = scmp.lt.s32.totalorder %s19, 1
        %s219 = scalar_select %p218, %s19, 1
        %s220 = smul.addr %s219, 2
        %s221 = smul.addr %s220, 4
        %s222 = scalar_lea.vmem %s0, %s221
        %v224 = vld [vmem:[%s222] sm:$0xff]
        %vm225 = vcmask 27648
        %226 = vst.msk [vmem:[#allocation2] sm:$0xf] %vm225, 0
        %227 = vst.msk [vmem:[#allocation2 + $0x4] sm:$0xf] %vm225, 0
        %vm228 = vcmask 24576
        %229 = vst.msk [vmem:[#allocation2 + $0x8] sm:$0x1] %vm228, 0
        %s230 = scalar_lea.vmem [#allocation2], 204
        %231 = vst.msk [vmem:[%s230] sm:$0xf] %vm225, 0
        %232 = vst.msk [vmem:[%s230 + $0x4] sm:$0xf] %vm225, 0
        %233 = vst.msk [vmem:[%s230 + $0x8] sm:$0x1] %vm228, 0
        %vm234 = vcmask 24576
        %vm235 = vsmask.f32 256
        %vm236 = vmand %vm234, %vm235
        %v237 = vld [vmem:[#allocation2] sm:$0x1]
        %v238 = vsel %vm236, 0, %v237
        %239 = vst [vmem:[#allocation2] sm:$0x1] %v238
        %v240 = vld [vmem:[#allocation2 + $0xc] sm:$0x1]
        %v241 = vsel %vm236, 0, %v240
        %242 = vst [vmem:[#allocation2 + $0xc] sm:$0x1] %v241
        %v243 = vld [vmem:[#allocation2 + $0x18] sm:$0x1]
        %v244 = vsel %vm236, 0, %v243
        %245 = vst [vmem:[#allocation2 + $0x18] sm:$0x1] %v244
        %v246 = vld [vmem:[#allocation2 + $0x24] sm:$0x1]
        %v247 = vsel %vm236, 0, %v246
        %248 = vst [vmem:[#allocation2 + $0x24] sm:$0x1] %v247
        %v249 = vld [vmem:[#allocation2 + $0x30] sm:$0x1]
        %v250 = vsel %vm236, 0, %v249
        %251 = vst [vmem:[#allocation2 + $0x30] sm:$0x1] %v250
        %v252 = vld [vmem:[#allocation2 + $0x3c] sm:$0x1]
        %v253 = vsel %vm236, 0, %v252
        %254 = vst [vmem:[#allocation2 + $0x3c] sm:$0x1] %v253
        %v255 = vld [vmem:[#allocation2 + $0x48] sm:$0x1]
        %v256 = vsel %vm236, 0, %v255
        %257 = vst [vmem:[#allocation2 + $0x48] sm:$0x1] %v256
        %v258 = vld [vmem:[#allocation2 + $0x54] sm:$0x1]
        %v259 = vsel %vm236, 0, %v258
        %260 = vst [vmem:[#allocation2 + $0x54] sm:$0x1] %v259
        %v261 = vld [vmem:[#allocation2 + $0x60] sm:$0x1]
        %v262 = vsel %vm236, 0, %v261
        %263 = vst [vmem:[#allocation2 + $0x60] sm:$0x1] %v262
        %v264 = vld [vmem:[#allocation2 + $0x6c] sm:$0x1]
        %v265 = vsel %vm236, 0, %v264
        %266 = vst [vmem:[#allocation2 + $0x6c] sm:$0x1] %v265
        %v267 = vld [vmem:[#allocation2 + $0x78] sm:$0x1]
        %v268 = vsel %vm236, 0, %v267
        %269 = vst [vmem:[#allocation2 + $0x78] sm:$0x1] %v268
        %v270 = vld [vmem:[#allocation2 + $0x84] sm:$0x1]
        %v271 = vsel %vm236, 0, %v270
        %272 = vst [vmem:[#allocation2 + $0x84] sm:$0x1] %v271
        %v273 = vld [vmem:[#allocation2 + $0x90] sm:$0x1]
        %v274 = vsel %vm236, 0, %v273
        %275 = vst [vmem:[#allocation2 + $0x90] sm:$0x1] %v274
        %v276 = vld [vmem:[#allocation2 + $0x9c] sm:$0x1]
        %v277 = vsel %vm236, 0, %v276
        %278 = vst [vmem:[#allocation2 + $0x9c] sm:$0x1] %v277
        %v279 = vld [vmem:[#allocation2 + $0xa8] sm:$0x1]
        %v280 = vsel %vm236, 0, %v279
        %281 = vst [vmem:[#allocation2 + $0xa8] sm:$0x1] %v280
        %v282 = vld [vmem:[#allocation2 + $0xb4] sm:$0x1]
        %v283 = vsel %vm236, 0, %v282
        %284 = vst [vmem:[#allocation2 + $0xb4] sm:$0x1] %v283
        %v285 = vld [vmem:[#allocation2 + $0xc0] sm:$0x1]
        %v286 = vsel %vm236, 0, %v285
        %287 = vst [vmem:[#allocation2 + $0xc0] sm:$0x1] %v286
        %v288 = vld [vmem:[#allocation2 + $0xcc] sm:$0x1]
        %v289 = vsel %vm236, 0, %v288
        %290 = vst [vmem:[#allocation2 + $0xcc] sm:$0x1] %v289
        %vm291 = vsmask.f32 7938
        %vm292 = vmand %vm234, %vm291
        %v293 = vld [vmem:[#allocation2 + $0x8] sm:$0x1]
        %v294 = vsel %vm292, 0, %v293
        %295 = vst [vmem:[#allocation2 + $0x8] sm:$0x1] %v294
        %v296 = vld [vmem:[#allocation2 + $0x14] sm:$0x1]
        %v297 = vsel %vm292, 0, %v296
        %298 = vst [vmem:[#allocation2 + $0x14] sm:$0x1] %v297
        %v299 = vld [vmem:[#allocation2 + $0x20] sm:$0x1]
        %v300 = vsel %vm292, 0, %v299
        %301 = vst [vmem:[#allocation2 + $0x20] sm:$0x1] %v300
        %v302 = vld [vmem:[#allocation2 + $0x2c] sm:$0x1]
        %v303 = vsel %vm292, 0, %v302
        %304 = vst [vmem:[#allocation2 + $0x2c] sm:$0x1] %v303
        %v305 = vld [vmem:[#allocation2 + $0x38] sm:$0x1]
        %v306 = vsel %vm292, 0, %v305
        %307 = vst [vmem:[#allocation2 + $0x38] sm:$0x1] %v306
        %v308 = vld [vmem:[#allocation2 + $0x44] sm:$0x1]
        %v309 = vsel %vm292, 0, %v308
        %310 = vst [vmem:[#allocation2 + $0x44] sm:$0x1] %v309
        %v311 = vld [vmem:[#allocation2 + $0x50] sm:$0x1]
        %v312 = vsel %vm292, 0, %v311
        %313 = vst [vmem:[#allocation2 + $0x50] sm:$0x1] %v312
        %v314 = vld [vmem:[#allocation2 + $0x5c] sm:$0x1]
        %v315 = vsel %vm292, 0, %v314
        %316 = vst [vmem:[#allocation2 + $0x5c] sm:$0x1] %v315
        %v317 = vld [vmem:[#allocation2 + $0x68] sm:$0x1]
        %v318 = vsel %vm292, 0, %v317
        %319 = vst [vmem:[#allocation2 + $0x68] sm:$0x1] %v318
        %v320 = vld [vmem:[#allocation2 + $0x74] sm:$0x1]
        %v321 = vsel %vm292, 0, %v320
        %322 = vst [vmem:[#allocation2 + $0x74] sm:$0x1] %v321
        %v323 = vld [vmem:[#allocation2 + $0x80] sm:$0x1]
        %v324 = vsel %vm292, 0, %v323
        %325 = vst [vmem:[#allocation2 + $0x80] sm:$0x1] %v324
        %v326 = vld [vmem:[#allocation2 + $0x8c] sm:$0x1]
        %v327 = vsel %vm292, 0, %v326
        %328 = vst [vmem:[#allocation2 + $0x8c] sm:$0x1] %v327
        %v329 = vld [vmem:[#allocation2 + $0x98] sm:$0x1]
        %v330 = vsel %vm292, 0, %v329
        %331 = vst [vmem:[#allocation2 + $0x98] sm:$0x1] %v330
        %v332 = vld [vmem:[#allocation2 + $0xa4] sm:$0x1]
        %v333 = vsel %vm292, 0, %v332
        %334 = vst [vmem:[#allocation2 + $0xa4] sm:$0x1] %v333
        %v335 = vld [vmem:[#allocation2 + $0xb0] sm:$0x1]
        %v336 = vsel %vm292, 0, %v335
        %337 = vst [vmem:[#allocation2 + $0xb0] sm:$0x1] %v336
        %v338 = vld [vmem:[#allocation2 + $0xbc] sm:$0x1]
        %v339 = vsel %vm292, 0, %v338
        %340 = vst [vmem:[#allocation2 + $0xbc] sm:$0x1] %v339
        %v341 = vld [vmem:[#allocation2 + $0xc8] sm:$0x1]
        %v342 = vsel %vm292, 0, %v341
        %343 = vst [vmem:[#allocation2 + $0xc8] sm:$0x1] %v342
        %v344 = vld [vmem:[#allocation2 + $0xd4] sm:$0x1]
        %v345 = vsel %vm292, 0, %v344
        %346 = vst [vmem:[#allocation2 + $0xd4] sm:$0x1] %v345
        %347 = vst.msk [vmem:[#allocation3] sm:$0xf] %vm225, 0
        %348 = vst.msk [vmem:[#allocation3 + $0x4] sm:$0xf] %vm225, 0
        %349 = vst.msk [vmem:[#allocation3 + $0x8] sm:$0x1] %vm228, 0
        %s350 = scalar_lea.vmem [#allocation3], 204
        %351 = vst.msk [vmem:[%s350] sm:$0xf] %vm225, 0
        %352 = vst.msk [vmem:[%s350 + $0x4] sm:$0xf] %vm225, 0
        %353 = vst.msk [vmem:[%s350 + $0x8] sm:$0x1] %vm228, 0
        %v354 = vld [vmem:[#allocation3] sm:$0x1]
        %v355 = vsel %vm236, 0, %v354
        %356 = vst [vmem:[#allocation3] sm:$0x1] %v355
        %v357 = vld [vmem:[#allocation3 + $0xc] sm:$0x1]
        %v358 = vsel %vm236, 0, %v357
        %359 = vst [vmem:[#allocation3 + $0xc] sm:$0x1] %v358
        %v360 = vld [vmem:[#allocation3 + $0x18] sm:$0x1]
        %v361 = vsel %vm236, 0, %v360
        %362 = vst [vmem:[#allocation3 + $0x18] sm:$0x1] %v361
        %v363 = vld [vmem:[#allocation3 + $0x24] sm:$0x1]
        %v364 = vsel %vm236, 0, %v363
        %365 = vst [vmem:[#allocation3 + $0x24] sm:$0x1] %v364
        %v366 = vld [vmem:[#allocation3 + $0x30] sm:$0x1]
        %v367 = vsel %vm236, 0, %v366
        %368 = vst [vmem:[#allocation3 + $0x30] sm:$0x1] %v367
        %v369 = vld [vmem:[#allocation3 + $0x3c] sm:$0x1]
        %v370 = vsel %vm236, 0, %v369
        %371 = vst [vmem:[#allocation3 + $0x3c] sm:$0x1] %v370
        %v372 = vld [vmem:[#allocation3 + $0x48] sm:$0x1]
        %v373 = vsel %vm236, 0, %v372
        %374 = vst [vmem:[#allocation3 + $0x48] sm:$0x1] %v373
        %v375 = vld [vmem:[#allocation3 + $0x54] sm:$0x1]
        %v376 = vsel %vm236, 0, %v375
        %377 = vst [vmem:[#allocation3 + $0x54] sm:$0x1] %v376
        %v378 = vld [vmem:[#allocation3 + $0x60] sm:$0x1]
        %v379 = vsel %vm236, 0, %v378
        %380 = vst [vmem:[#allocation3 + $0x60] sm:$0x1] %v379
        %v381 = vld [vmem:[#allocation3 + $0x6c] sm:$0x1]
        %v382 = vsel %vm236, 0, %v381
        %383 = vst [vmem:[#allocation3 + $0x6c] sm:$0x1] %v382
        %v384 = vld [vmem:[#allocation3 + $0x78] sm:$0x1]
        %v385 = vsel %vm236, 0, %v384
        %386 = vst [vmem:[#allocation3 + $0x78] sm:$0x1] %v385
        %v387 = vld [vmem:[#allocation3 + $0x84] sm:$0x1]
        %v388 = vsel %vm236, 0, %v387
        %389 = vst [vmem:[#allocation3 + $0x84] sm:$0x1] %v388
        %v390 = vld [vmem:[#allocation3 + $0x90] sm:$0x1]
        %v391 = vsel %vm236, 0, %v390
        %392 = vst [vmem:[#allocation3 + $0x90] sm:$0x1] %v391
        %v393 = vld [vmem:[#allocation3 + $0x9c] sm:$0x1]
        %v394 = vsel %vm236, 0, %v393
        %395 = vst [vmem:[#allocation3 + $0x9c] sm:$0x1] %v394
        %v396 = vld [vmem:[#allocation3 + $0xa8] sm:$0x1]
        %v397 = vsel %vm236, 0, %v396
        %398 = vst [vmem:[#allocation3 + $0xa8] sm:$0x1] %v397
        %v399 = vld [vmem:[#allocation3 + $0xb4] sm:$0x1]
        %v400 = vsel %vm236, 0, %v399
        %401 = vst [vmem:[#allocation3 + $0xb4] sm:$0x1] %v400
        %v402 = vld [vmem:[#allocation3 + $0xc0] sm:$0x1]
        %v403 = vsel %vm236, 0, %v402
        %404 = vst [vmem:[#allocation3 + $0xc0] sm:$0x1] %v403
        %v405 = vld [vmem:[#allocation3 + $0xcc] sm:$0x1]
        %v406 = vsel %vm236, 0, %v405
        %407 = vst [vmem:[#allocation3 + $0xcc] sm:$0x1] %v406
        %v408 = vld [vmem:[#allocation3 + $0x8] sm:$0x1]
        %v409 = vsel %vm292, 0, %v408
        %410 = vst [vmem:[#allocation3 + $0x8] sm:$0x1] %v409
        %v411 = vld [vmem:[#allocation3 + $0x14] sm:$0x1]
        %v412 = vsel %vm292, 0, %v411
        %413 = vst [vmem:[#allocation3 + $0x14] sm:$0x1] %v412
        %v414 = vld [vmem:[#allocation3 + $0x20] sm:$0x1]
        %v415 = vsel %vm292, 0, %v414
        %416 = vst [vmem:[#allocation3 + $0x20] sm:$0x1] %v415
        %v417 = vld [vmem:[#allocation3 + $0x2c] sm:$0x1]
        %v418 = vsel %vm292, 0, %v417
        %419 = vst [vmem:[#allocation3 + $0x2c] sm:$0x1] %v418
        %v420 = vld [vmem:[#allocation3 + $0x38] sm:$0x1]
        %v421 = vsel %vm292, 0, %v420
        %422 = vst [vmem:[#allocation3 + $0x38] sm:$0x1] %v421
        %v423 = vld [vmem:[#allocation3 + $0x44] sm:$0x1]
        %v424 = vsel %vm292, 0, %v423
        %425 = vst [vmem:[#allocation3 + $0x44] sm:$0x1] %v424
        %v426 = vld [vmem:[#allocation3 + $0x50] sm:$0x1]
        %v427 = vsel %vm292, 0, %v426
        %428 = vst [vmem:[#allocation3 + $0x50] sm:$0x1] %v427
        %v429 = vld [vmem:[#allocation3 + $0x5c] sm:$0x1]
        %v430 = vsel %vm292, 0, %v429
        %431 = vst [vmem:[#allocation3 + $0x5c] sm:$0x1] %v430
        %v432 = vld [vmem:[#allocation3 + $0x68] sm:$0x1]
        %v433 = vsel %vm292, 0, %v432
        %434 = vst [vmem:[#allocation3 + $0x68] sm:$0x1] %v433
        %v435 = vld [vmem:[#allocation3 + $0x74] sm:$0x1]
        %v436 = vsel %vm292, 0, %v435
        %437 = vst [vmem:[#allocation3 + $0x74] sm:$0x1] %v436
        %v438 = vld [vmem:[#allocation3 + $0x80] sm:$0x1]
        %v439 = vsel %vm292, 0, %v438
        %440 = vst [vmem:[#allocation3 + $0x80] sm:$0x1] %v439
        %v441 = vld [vmem:[#allocation3 + $0x8c] sm:$0x1]
        %v442 = vsel %vm292, 0, %v441
        %443 = vst [vmem:[#allocation3 + $0x8c] sm:$0x1] %v442
        %v444 = vld [vmem:[#allocation3 + $0x98] sm:$0x1]
        %v445 = vsel %vm292, 0, %v444
        %446 = vst [vmem:[#allocation3 + $0x98] sm:$0x1] %v445
        %v447 = vld [vmem:[#allocation3 + $0xa4] sm:$0x1]
        %v448 = vsel %vm292, 0, %v447
        %449 = vst [vmem:[#allocation3 + $0xa4] sm:$0x1] %v448
        %v450 = vld [vmem:[#allocation3 + $0xb0] sm:$0x1]
        %v451 = vsel %vm292, 0, %v450
        %452 = vst [vmem:[#allocation3 + $0xb0] sm:$0x1] %v451
        %v453 = vld [vmem:[#allocation3 + $0xbc] sm:$0x1]
        %v454 = vsel %vm292, 0, %v453
        %455 = vst [vmem:[#allocation3 + $0xbc] sm:$0x1] %v454
        %v456 = vld [vmem:[#allocation3 + $0xc8] sm:$0x1]
        %v457 = vsel %vm292, 0, %v456
        %458 = vst [vmem:[#allocation3 + $0xc8] sm:$0x1] %v457
        %v459 = vld [vmem:[#allocation3 + $0xd4] sm:$0x1]
        %v460 = vsel %vm292, 0, %v459
        %461 = vst [vmem:[#allocation3 + $0xd4] sm:$0x1] %v460
        %v463 = vcombine.high %v224, %v224
        %465 = vxpose.xlu0.b32.start [1/16] %v224, 128
        %466 = vxpose.xlu0.b32.cont [2/16] 0.0, 128
        %467 = vxpose.xlu0.b32.cont [3/16] 0.0, 128
        %468 = vxpose.xlu0.b32.cont [4/16] 0.0, 128
        %469 = vxpose.xlu0.b32.cont [5/16] 0.0, 128
        %470 = vxpose.xlu0.b32.cont [6/16] 0.0, 128
        %471 = vxpose.xlu0.b32.cont [7/16] 0.0, 128
        %472 = vxpose.xlu0.b32.cont [8/16] 0.0, 128
        %473 = vxpose.xlu0.b32.cont [9/16] 0.0, 128
        %474 = vxpose.xlu0.b32.cont [10/16] 0.0, 128
        %475 = vxpose.xlu0.b32.cont [11/16] 0.0, 128
        %476 = vxpose.xlu0.b32.cont [12/16] 0.0, 128
        %477 = vxpose.xlu0.b32.cont [13/16] 0.0, 128
        %478 = vxpose.xlu0.b32.cont [14/16] 0.0, 128
        %479 = vxpose.xlu0.b32.cont [15/16] 0.0, 128
        %480 = vxpose.xlu0.b32.end [16/16] 0.0, 128
        %v481 = vpop.trf.xlu0
        %v482 = vpop.trf.xlu0
        %v483 = vpop.trf.xlu0
        %v484 = vpop.trf.xlu0
        %v485 = vpop.trf.xlu0
        %v486 = vpop.trf.xlu0
        %v487 = vpop.trf.xlu0
        %v488 = vpop.trf.xlu0
        %v489 = vpop.trf.xlu0
        %v490 = vpop.trf.xlu0
        %v491 = vpop.trf.xlu0
        %v492 = vpop.trf.xlu0
        %v493 = vpop.trf.xlu0
        %v494 = vpop.trf.xlu0
        %v495 = vpop.trf.xlu0
        %v496 = vpop.trf.xlu0
        %497 = vxpose.xlu0.b32.start [1/16] %v463, 128
        %498 = vxpose.xlu0.b32.cont [2/16] 0.0, 128
        %499 = vxpose.xlu0.b32.cont [3/16] 0.0, 128
        %500 = vxpose.xlu0.b32.cont [4/16] 0.0, 128
        %501 = vxpose.xlu0.b32.cont [5/16] 0.0, 128
        %502 = vxpose.xlu0.b32.cont [6/16] 0.0, 128
        %503 = vxpose.xlu0.b32.cont [7/16] 0.0, 128
        %504 = vxpose.xlu0.b32.cont [8/16] 0.0, 128
        %505 = vxpose.xlu0.b32.cont [9/16] 0.0, 128
        %506 = vxpose.xlu0.b32.cont [10/16] 0.0, 128
        %507 = vxpose.xlu0.b32.cont [11/16] 0.0, 128
        %508 = vxpose.xlu0.b32.cont [12/16] 0.0, 128
        %509 = vxpose.xlu0.b32.cont [13/16] 0.0, 128
        %510 = vxpose.xlu0.b32.cont [14/16] 0.0, 128
        %511 = vxpose.xlu0.b32.cont [15/16] 0.0, 128
        %512 = vxpose.xlu0.b32.end [16/16] 0.0, 128
        %v513 = vpop.trf.xlu0
        %v514 = vpop.trf.xlu0
        %v515 = vpop.trf.xlu0
        %v516 = vpop.trf.xlu0
        %v517 = vpop.trf.xlu0
        %v518 = vpop.trf.xlu0
        %v519 = vpop.trf.xlu0
        %v520 = vpop.trf.xlu0
        %v521 = vpop.trf.xlu0
        %v522 = vpop.trf.xlu0
        %v523 = vpop.trf.xlu0
        %v524 = vpop.trf.xlu0
        %v525 = vpop.trf.xlu0
        %v526 = vpop.trf.xlu0
        %v527 = vpop.trf.xlu0
        %v528 = vpop.trf.xlu0
        %v529 = vpack.c.bf16 %v482, %v481
        %v530 = vpack.c.bf16 %v484, %v483
        %v531 = vpack.c.bf16 %v486, %v485
        %v532 = vpack.c.bf16 %v488, %v487
        %v533 = vpack.c.bf16 %v490, %v489
        %v534 = vpack.c.bf16 %v492, %v491
        %v535 = vpack.c.bf16 %v494, %v493
        %v536 = vpack.c.bf16 %v496, %v495
        %v537 = vpack.c.bf16 %v514, %v513
        %v538 = vpack.c.bf16 %v516, %v515
        %v539 = vpack.c.bf16 %v518, %v517
        %v540 = vpack.c.bf16 %v520, %v519
        %v541 = vpack.c.bf16 %v522, %v521
        %v542 = vpack.c.bf16 %v524, %v523
        %v543 = vpack.c.bf16 %v526, %v525
        %v544 = vpack.c.bf16 %v528, %v527
        %v561 = vunpack.c.l.b16 %v529
        %v562 = vunpack.c.h.b16 %v529
        %v563 = vunpack.c.l.b16 %v530
        %v564 = vunpack.c.h.b16 %v530
        %v565 = vunpack.c.l.b16 %v531
        %v566 = vunpack.c.h.b16 %v531
        %v567 = vunpack.c.l.b16 %v532
        %v568 = vunpack.c.h.b16 %v532
        %v569 = vunpack.c.l.b16 %v533
        %v570 = vunpack.c.h.b16 %v533
        %v571 = vunpack.c.l.b16 %v534
        %v572 = vunpack.c.h.b16 %v534
        %v573 = vunpack.c.l.b16 %v535
        %v574 = vunpack.c.h.b16 %v535
        %v575 = vunpack.c.l.b16 %v536
        %v576 = vunpack.c.h.b16 %v536
        %v577 = vunpack.c.l.b16 %v537
        %v578 = vunpack.c.h.b16 %v537
        %v579 = vunpack.c.l.b16 %v538
        %v580 = vunpack.c.h.b16 %v538
        %v581 = vunpack.c.l.b16 %v539
        %v582 = vunpack.c.h.b16 %v539
        %v583 = vunpack.c.l.b16 %v540
        %v584 = vunpack.c.h.b16 %v540
        %v585 = vunpack.c.l.b16 %v541
        %v586 = vunpack.c.h.b16 %v541
        %v587 = vunpack.c.l.b16 %v542
        %v588 = vunpack.c.h.b16 %v542
        %v589 = vunpack.c.l.b16 %v543
        %v590 = vunpack.c.h.b16 %v543
        %v591 = vunpack.c.l.b16 %v544
        %v592 = vunpack.c.h.b16 %v544
        %v593 = vpack.c.b16 %v561, %v561
        %v594 = vpack.c.b16 %v562, %v562
        %v595 = vpack.c.b16 %v563, %v563
        %v596 = vpack.c.b16 %v564, %v564
        %v597 = vpack.c.b16 %v565, %v565
        %v598 = vpack.c.b16 %v566, %v566
        %v599 = vpack.c.b16 %v567, %v567
        %v600 = vpack.c.b16 %v568, %v568
        %v601 = vpack.c.b16 %v569, %v569
        %v602 = vpack.c.b16 %v570, %v570
        %v603 = vpack.c.b16 %v571, %v571
        %v604 = vpack.c.b16 %v572, %v572
        %v605 = vpack.c.b16 %v573, %v573
        %v606 = vpack.c.b16 %v574, %v574
        %v607 = vpack.c.b16 %v575, %v575
        %v608 = vpack.c.b16 %v576, %v576
        %v609 = vpack.c.b16 %v577, %v577
        %v610 = vpack.c.b16 %v578, %v578
        %v611 = vpack.c.b16 %v579, %v579
        %v612 = vpack.c.b16 %v580, %v580
        %v613 = vpack.c.b16 %v581, %v581
        %v614 = vpack.c.b16 %v582, %v582
        %v615 = vpack.c.b16 %v583, %v583
        %v616 = vpack.c.b16 %v584, %v584
        %v617 = vpack.c.b16 %v585, %v585
        %v618 = vpack.c.b16 %v586, %v586
        %v619 = vpack.c.b16 %v587, %v587
        %v620 = vpack.c.b16 %v588, %v588
        %v621 = vpack.c.b16 %v589, %v589
        %v622 = vpack.c.b16 %v590, %v590
        %v623 = vpack.c.b16 %v591, %v591
        %v624 = vpack.c.b16 %v592, %v592
        %vm625 = vsmask.f32 4368
        %vm626 = vmor %vm235, %vm625
        %v628 = vshrl.u32 %v593, 16
        %v630 = vrot.slane %v628, 7
        %v631 = vshll.u32 %v593, 16
        %v633 = vor.u32 %v630, %v631
        %v634 = vrot.slane %v630, 4
        %v636 = vshrl.u32 %v594, 16
        %v638 = vrot.slane %v636, 7
        %v639 = vshll.u32 %v594, 16
        %v641 = vor.u32 %v638, %v639
        %v642 = vsel %vm626, %v634, %v641
        %v643 = vrot.slane %v638, 4
        %v645 = vshrl.u32 %v595, 16
        %v647 = vrot.slane %v645, 7
        %v648 = vshll.u32 %v595, 16
        %v650 = vor.u32 %v647, %v648
        %v651 = vrot.slane %v647, 4
        %v653 = vshrl.u32 %v596, 16
        %v655 = vrot.slane %v653, 7
        %v656 = vshll.u32 %v596, 16
        %v658 = vor.u32 %v655, %v656
        %v659 = vsel %vm626, %v651, %v658
        %v660 = vrot.slane %v655, 4
        %v662 = vshrl.u32 %v597, 16
        %v664 = vrot.slane %v662, 7
        %v665 = vshll.u32 %v597, 16
        %v667 = vor.u32 %v664, %v665
        %v668 = vrot.slane %v664, 4
        %v670 = vshrl.u32 %v598, 16
        %v672 = vrot.slane %v670, 7
        %v673 = vshll.u32 %v598, 16
        %v675 = vor.u32 %v672, %v673
        %v676 = vsel %vm626, %v668, %v675
        %v677 = vrot.slane %v672, 4
        %v679 = vshrl.u32 %v599, 16
        %v681 = vrot.slane %v679, 7
        %v682 = vshll.u32 %v599, 16
        %v684 = vor.u32 %v681, %v682
        %v685 = vrot.slane %v681, 4
        %v687 = vshrl.u32 %v600, 16
        %v689 = vrot.slane %v687, 7
        %v690 = vshll.u32 %v600, 16
        %v692 = vor.u32 %v689, %v690
        %v693 = vsel %vm626, %v685, %v692
        %v694 = vrot.slane %v689, 4
        %v696 = vshrl.u32 %v601, 16
        %v698 = vrot.slane %v696, 7
        %v699 = vshll.u32 %v601, 16
        %v701 = vor.u32 %v698, %v699
        %v702 = vrot.slane %v698, 4
        %v704 = vshrl.u32 %v602, 16
        %v706 = vrot.slane %v704, 7
        %v707 = vshll.u32 %v602, 16
        %v709 = vor.u32 %v706, %v707
        %v710 = vsel %vm626, %v702, %v709
        %v711 = vrot.slane %v706, 4
        %v713 = vshrl.u32 %v603, 16
        %v715 = vrot.slane %v713, 7
        %v716 = vshll.u32 %v603, 16
        %v718 = vor.u32 %v715, %v716
        %v719 = vrot.slane %v715, 4
        %v721 = vshrl.u32 %v604, 16
        %v723 = vrot.slane %v721, 7
        %v724 = vshll.u32 %v604, 16
        %v726 = vor.u32 %v723, %v724
        %v727 = vsel %vm626, %v719, %v726
        %v728 = vrot.slane %v723, 4
        %v730 = vshrl.u32 %v605, 16
        %v732 = vrot.slane %v730, 7
        %v733 = vshll.u32 %v605, 16
        %v735 = vor.u32 %v732, %v733
        %v736 = vrot.slane %v732, 4
        %v738 = vshrl.u32 %v606, 16
        %v740 = vrot.slane %v738, 7
        %v741 = vshll.u32 %v606, 16
        %v743 = vor.u32 %v740, %v741
        %v744 = vsel %vm626, %v736, %v743
        %v745 = vrot.slane %v740, 4
        %v747 = vshrl.u32 %v607, 16
        %v749 = vrot.slane %v747, 7
        %v750 = vshll.u32 %v607, 16
        %v752 = vor.u32 %v749, %v750
        %v753 = vrot.slane %v749, 4
        %v755 = vshrl.u32 %v608, 16
        %v757 = vrot.slane %v755, 7
        %v758 = vshll.u32 %v608, 16
        %v760 = vor.u32 %v757, %v758
        %v761 = vsel %vm626, %v753, %v760
        %v762 = vrot.slane %v757, 4
        %v764 = vshrl.u32 %v609, 16
        %v766 = vrot.slane %v764, 7
        %v767 = vshll.u32 %v609, 16
        %v769 = vor.u32 %v766, %v767
        %v770 = vrot.slane %v766, 4
        %v772 = vshrl.u32 %v610, 16
        %v774 = vrot.slane %v772, 7
        %v775 = vshll.u32 %v610, 16
        %v777 = vor.u32 %v774, %v775
        %v778 = vsel %vm626, %v770, %v777
        %v779 = vrot.slane %v774, 4
        %v781 = vshrl.u32 %v611, 16
        %v783 = vrot.slane %v781, 7
        %v784 = vshll.u32 %v611, 16
        %v786 = vor.u32 %v783, %v784
        %v787 = vrot.slane %v783, 4
        %v789 = vshrl.u32 %v612, 16
        %v791 = vrot.slane %v789, 7
        %v792 = vshll.u32 %v612, 16
        %v794 = vor.u32 %v791, %v792
        %v795 = vsel %vm626, %v787, %v794
        %v796 = vrot.slane %v791, 4
        %v798 = vshrl.u32 %v613, 16
        %v800 = vrot.slane %v798, 7
        %v801 = vshll.u32 %v613, 16
        %v803 = vor.u32 %v800, %v801
        %v804 = vrot.slane %v800, 4
        %v806 = vshrl.u32 %v614, 16
        %v808 = vrot.slane %v806, 7
        %v809 = vshll.u32 %v614, 16
        %v811 = vor.u32 %v808, %v809
        %v812 = vsel %vm626, %v804, %v811
        %v813 = vrot.slane %v808, 4
        %v815 = vshrl.u32 %v615, 16
        %v817 = vrot.slane %v815, 7
        %v818 = vshll.u32 %v615, 16
        %v820 = vor.u32 %v817, %v818
        %v821 = vrot.slane %v817, 4
        %v823 = vshrl.u32 %v616, 16
        %v825 = vrot.slane %v823, 7
        %v826 = vshll.u32 %v616, 16
        %v828 = vor.u32 %v825, %v826
        %v829 = vsel %vm626, %v821, %v828
        %v830 = vrot.slane %v825, 4
        %v832 = vshrl.u32 %v617, 16
        %v834 = vrot.slane %v832, 7
        %v835 = vshll.u32 %v617, 16
        %v837 = vor.u32 %v834, %v835
        %v838 = vrot.slane %v834, 4
        %v840 = vshrl.u32 %v618, 16
        %v842 = vrot.slane %v840, 7
        %v843 = vshll.u32 %v618, 16
        %v845 = vor.u32 %v842, %v843
        %v846 = vsel %vm626, %v838, %v845
        %v847 = vrot.slane %v842, 4
        %v849 = vshrl.u32 %v619, 16
        %v851 = vrot.slane %v849, 7
        %v852 = vshll.u32 %v619, 16
        %v854 = vor.u32 %v851, %v852
        %v855 = vrot.slane %v851, 4
        %v857 = vshrl.u32 %v620, 16
        %v859 = vrot.slane %v857, 7
        %v860 = vshll.u32 %v620, 16
        %v862 = vor.u32 %v859, %v860
        %v863 = vsel %vm626, %v855, %v862
        %v864 = vrot.slane %v859, 4
        %v866 = vshrl.u32 %v621, 16
        %v868 = vrot.slane %v866, 7
        %v869 = vshll.u32 %v621, 16
        %v871 = vor.u32 %v868, %v869
        %v872 = vrot.slane %v868, 4
        %v874 = vshrl.u32 %v622, 16
        %v876 = vrot.slane %v874, 7
        %v877 = vshll.u32 %v622, 16
        %v879 = vor.u32 %v876, %v877
        %v880 = vsel %vm626, %v872, %v879
        %v881 = vrot.slane %v876, 4
        %v883 = vshrl.u32 %v623, 16
        %v885 = vrot.slane %v883, 7
        %v886 = vshll.u32 %v623, 16
        %v888 = vor.u32 %v885, %v886
        %v889 = vrot.slane %v885, 4
        %v891 = vshrl.u32 %v624, 16
        %v893 = vrot.slane %v891, 7
        %v894 = vshll.u32 %v624, 16
        %v896 = vor.u32 %v893, %v894
        %v897 = vsel %vm626, %v889, %v896
        %v898 = vrot.slane %v893, 4
        %s947 = scalar_lea.vmem [#allocation2], 12
        %vm948 = vcmask 27648
        %vm949 = vmand %vm948, %vm291
        %v950 = vld [vmem:[%s947] sm:$0xf]
        %v951 = vsel %vm949, %v633, %v950
        %952 = vst [vmem:[%s947] sm:$0xf] %v951
        %953 = vst.msk [vmem:[%s947 + $0x4] sm:$0xf] %vm225, %v642
        %v954 = vld [vmem:[%s947 + $0x8] sm:$0x1]
        %v955 = vsel %vm236, %v643, %v954
        %956 = vst [vmem:[%s947 + $0x8] sm:$0x1] %v955
        %v957 = vld [vmem:[%s947 + $0xc] sm:$0xf]
        %v958 = vsel %vm949, %v650, %v957
        %959 = vst [vmem:[%s947 + $0xc] sm:$0xf] %v958
        %960 = vst.msk [vmem:[%s947 + $0x10] sm:$0xf] %vm225, %v659
        %v961 = vld [vmem:[%s947 + $0x14] sm:$0x1]
        %v962 = vsel %vm236, %v660, %v961
        %963 = vst [vmem:[%s947 + $0x14] sm:$0x1] %v962
        %v964 = vld [vmem:[%s947 + $0x18] sm:$0xf]
        %v965 = vsel %vm949, %v667, %v964
        %966 = vst [vmem:[%s947 + $0x18] sm:$0xf] %v965
        %967 = vst.msk [vmem:[%s947 + $0x1c] sm:$0xf] %vm225, %v676
        %v968 = vld [vmem:[%s947 + $0x20] sm:$0x1]
        %v969 = vsel %vm236, %v677, %v968
        %970 = vst [vmem:[%s947 + $0x20] sm:$0x1] %v969
        %v971 = vld [vmem:[%s947 + $0x24] sm:$0xf]
        %v972 = vsel %vm949, %v684, %v971
        %973 = vst [vmem:[%s947 + $0x24] sm:$0xf] %v972
        %974 = vst.msk [vmem:[%s947 + $0x28] sm:$0xf] %vm225, %v693
        %v975 = vld [vmem:[%s947 + $0x2c] sm:$0x1]
        %v976 = vsel %vm236, %v694, %v975
        %977 = vst [vmem:[%s947 + $0x2c] sm:$0x1] %v976
        %v978 = vld [vmem:[%s947 + $0x30] sm:$0xf]
        %v979 = vsel %vm949, %v701, %v978
        %980 = vst [vmem:[%s947 + $0x30] sm:$0xf] %v979
        %981 = vst.msk [vmem:[%s947 + $0x34] sm:$0xf] %vm225, %v710
        %v982 = vld [vmem:[%s947 + $0x38] sm:$0x1]
        %v983 = vsel %vm236, %v711, %v982
        %984 = vst [vmem:[%s947 + $0x38] sm:$0x1] %v983
        %v985 = vld [vmem:[%s947 + $0x3c] sm:$0xf]
        %v986 = vsel %vm949, %v718, %v985
        %987 = vst [vmem:[%s947 + $0x3c] sm:$0xf] %v986
        %988 = vst.msk [vmem:[%s947 + $0x40] sm:$0xf] %vm225, %v727
        %v989 = vld [vmem:[%s947 + $0x44] sm:$0x1]
        %v990 = vsel %vm236, %v728, %v989
        %991 = vst [vmem:[%s947 + $0x44] sm:$0x1] %v990
        %v992 = vld [vmem:[%s947 + $0x48] sm:$0xf]
        %v993 = vsel %vm949, %v735, %v992
        %994 = vst [vmem:[%s947 + $0x48] sm:$0xf] %v993
        %995 = vst.msk [vmem:[%s947 + $0x4c] sm:$0xf] %vm225, %v744
        %v996 = vld [vmem:[%s947 + $0x50] sm:$0x1]
        %v997 = vsel %vm236, %v745, %v996
        %998 = vst [vmem:[%s947 + $0x50] sm:$0x1] %v997
        %v999 = vld [vmem:[%s947 + $0x54] sm:$0xf]
        %v1000 = vsel %vm949, %v752, %v999
        %1001 = vst [vmem:[%s947 + $0x54] sm:$0xf] %v1000
        %1002 = vst.msk [vmem:[%s947 + $0x58] sm:$0xf] %vm225, %v761
        %v1003 = vld [vmem:[%s947 + $0x5c] sm:$0x1]
        %v1004 = vsel %vm236, %v762, %v1003
        %1005 = vst [vmem:[%s947 + $0x5c] sm:$0x1] %v1004
        %v1006 = vld [vmem:[%s947 + $0x60] sm:$0xf]
        %v1007 = vsel %vm949, %v769, %v1006
        %1008 = vst [vmem:[%s947 + $0x60] sm:$0xf] %v1007
        %1009 = vst.msk [vmem:[%s947 + $0x64] sm:$0xf] %vm225, %v778
        %v1010 = vld [vmem:[%s947 + $0x68] sm:$0x1]
        %v1011 = vsel %vm236, %v779, %v1010
        %1012 = vst [vmem:[%s947 + $0x68] sm:$0x1] %v1011
        %v1013 = vld [vmem:[%s947 + $0x6c] sm:$0xf]
        %v1014 = vsel %vm949, %v786, %v1013
        %1015 = vst [vmem:[%s947 + $0x6c] sm:$0xf] %v1014
        %1016 = vst.msk [vmem:[%s947 + $0x70] sm:$0xf] %vm225, %v795
        %v1017 = vld [vmem:[%s947 + $0x74] sm:$0x1]
        %v1018 = vsel %vm236, %v796, %v1017
        %1019 = vst [vmem:[%s947 + $0x74] sm:$0x1] %v1018
        %v1020 = vld [vmem:[%s947 + $0x78] sm:$0xf]
        %v1021 = vsel %vm949, %v803, %v1020
        %1022 = vst [vmem:[%s947 + $0x78] sm:$0xf] %v1021
        %1023 = vst.msk [vmem:[%s947 + $0x7c] sm:$0xf] %vm225, %v812
        %v1024 = vld [vmem:[%s947 + $0x80] sm:$0x1]
        %v1025 = vsel %vm236, %v813, %v1024
        %1026 = vst [vmem:[%s947 + $0x80] sm:$0x1] %v1025
        %v1027 = vld [vmem:[%s947 + $0x84] sm:$0xf]
        %v1028 = vsel %vm949, %v820, %v1027
        %1029 = vst [vmem:[%s947 + $0x84] sm:$0xf] %v1028
        %1030 = vst.msk [vmem:[%s947 + $0x88] sm:$0xf] %vm225, %v829
        %v1031 = vld [vmem:[%s947 + $0x8c] sm:$0x1]
        %v1032 = vsel %vm236, %v830, %v1031
        %1033 = vst [vmem:[%s947 + $0x8c] sm:$0x1] %v1032
        %v1034 = vld [vmem:[%s947 + $0x90] sm:$0xf]
        %v1035 = vsel %vm949, %v837, %v1034
        %1036 = vst [vmem:[%s947 + $0x90] sm:$0xf] %v1035
        %1037 = vst.msk [vmem:[%s947 + $0x94] sm:$0xf] %vm225, %v846
        %v1038 = vld [vmem:[%s947 + $0x98] sm:$0x1]
        %v1039 = vsel %vm236, %v847, %v1038
        %1040 = vst [vmem:[%s947 + $0x98] sm:$0x1] %v1039
        %v1041 = vld [vmem:[%s947 + $0x9c] sm:$0xf]
        %v1042 = vsel %vm949, %v854, %v1041
        %1043 = vst [vmem:[%s947 + $0x9c] sm:$0xf] %v1042
        %1044 = vst.msk [vmem:[%s947 + $0xa0] sm:$0xf] %vm225, %v863
        %v1045 = vld [vmem:[%s947 + $0xa4] sm:$0x1]
        %v1046 = vsel %vm236, %v864, %v1045
        %1047 = vst [vmem:[%s947 + $0xa4] sm:$0x1] %v1046
        %v1048 = vld [vmem:[%s947 + $0xa8] sm:$0xf]
        %v1049 = vsel %vm949, %v871, %v1048
        %1050 = vst [vmem:[%s947 + $0xa8] sm:$0xf] %v1049
        %1051 = vst.msk [vmem:[%s947 + $0xac] sm:$0xf] %vm225, %v880
        %v1052 = vld [vmem:[%s947 + $0xb0] sm:$0x1]
        %v1053 = vsel %vm236, %v881, %v1052
        %1054 = vst [vmem:[%s947 + $0xb0] sm:$0x1] %v1053
        %v1055 = vld [vmem:[%s947 + $0xb4] sm:$0xf]
        %v1056 = vsel %vm949, %v888, %v1055
        %1057 = vst [vmem:[%s947 + $0xb4] sm:$0xf] %v1056
        %1058 = vst.msk [vmem:[%s947 + $0xb8] sm:$0xf] %vm225, %v897
        %v1059 = vld [vmem:[%s947 + $0xbc] sm:$0x1]
        %v1060 = vsel %vm236, %v898, %v1059
        %1061 = vst [vmem:[%s947 + $0xbc] sm:$0x1] %v1060
        %v1062 = vld [vmem:[#allocation2] sm:$0xf]
        %v1063 = vld [vmem:[#allocation2 + $0x4] sm:$0xf]
        %v1064 = vld [vmem:[#allocation2 + $0xc] sm:$0xf]
        %v1065 = vld [vmem:[#allocation2 + $0x10] sm:$0xf]
        %v1066 = vld [vmem:[#allocation2 + $0x18] sm:$0xf]
        %v1067 = vld [vmem:[#allocation2 + $0x1c] sm:$0xf]
        %v1068 = vld [vmem:[#allocation2 + $0x24] sm:$0xf]
        %v1069 = vld [vmem:[#allocation2 + $0x28] sm:$0xf]
        %v1070 = vld [vmem:[#allocation2 + $0x30] sm:$0xf]
        %v1071 = vld [vmem:[#allocation2 + $0x34] sm:$0xf]
        %v1072 = vld [vmem:[#allocation2 + $0x3c] sm:$0xf]
        %v1073 = vld [vmem:[#allocation2 + $0x40] sm:$0xf]
        %v1074 = vld [vmem:[#allocation2 + $0x48] sm:$0xf]
        %v1075 = vld [vmem:[#allocation2 + $0x4c] sm:$0xf]
        %v1076 = vld [vmem:[#allocation2 + $0x54] sm:$0xf]
        %v1077 = vld [vmem:[#allocation2 + $0x58] sm:$0xf]
        %v1078 = vld [vmem:[#allocation2 + $0x60] sm:$0xf]
        %v1079 = vld [vmem:[#allocation2 + $0x64] sm:$0xf]
        %v1080 = vld [vmem:[#allocation2 + $0x6c] sm:$0xf]
        %v1081 = vld [vmem:[#allocation2 + $0x70] sm:$0xf]
        %v1082 = vld [vmem:[#allocation2 + $0x78] sm:$0xf]
        %v1083 = vld [vmem:[#allocation2 + $0x7c] sm:$0xf]
        %v1084 = vld [vmem:[#allocation2 + $0x84] sm:$0xf]
        %v1085 = vld [vmem:[#allocation2 + $0x88] sm:$0xf]
        %v1086 = vld [vmem:[#allocation2 + $0x90] sm:$0xf]
        %v1087 = vld [vmem:[#allocation2 + $0x94] sm:$0xf]
        %v1088 = vld [vmem:[#allocation2 + $0x9c] sm:$0xf]
        %v1089 = vld [vmem:[#allocation2 + $0xa0] sm:$0xf]
        %v1090 = vld [vmem:[#allocation2 + $0xa8] sm:$0xf]
        %v1091 = vld [vmem:[#allocation2 + $0xac] sm:$0xf]
        %v1092 = vld [vmem:[#allocation2 + $0xb4] sm:$0xf]
        %v1093 = vld [vmem:[#allocation2 + $0xb8] sm:$0xf]
        %v1094 = vld [vmem:[#allocation2 + $0x8] sm:$0x1]
        %v1095 = vld [vmem:[#allocation2 + $0x14] sm:$0x1]
        %v1096 = vld [vmem:[#allocation2 + $0x20] sm:$0x1]
        %v1097 = vld [vmem:[#allocation2 + $0x2c] sm:$0x1]
        %v1098 = vld [vmem:[#allocation2 + $0x38] sm:$0x1]
        %v1099 = vld [vmem:[#allocation2 + $0x44] sm:$0x1]
        %v1100 = vld [vmem:[#allocation2 + $0x50] sm:$0x1]
        %v1101 = vld [vmem:[#allocation2 + $0x5c] sm:$0x1]
        %v1102 = vld [vmem:[#allocation2 + $0x68] sm:$0x1]
        %v1103 = vld [vmem:[#allocation2 + $0x74] sm:$0x1]
        %v1104 = vld [vmem:[#allocation2 + $0x80] sm:$0x1]
        %v1105 = vld [vmem:[#allocation2 + $0x8c] sm:$0x1]
        %v1106 = vld [vmem:[#allocation2 + $0x98] sm:$0x1]
        %v1107 = vld [vmem:[#allocation2 + $0xa4] sm:$0x1]
        %v1108 = vld [vmem:[#allocation2 + $0xb0] sm:$0x1]
        %v1109 = vld [vmem:[#allocation2 + $0xbc] sm:$0x1]
        %vm1110 = vsmask.f32 3328
        %vm1111 = vsmask.f32 7440
        %vm1112 = vmor %vm1110, %vm1111
        %v1114 = vshrl.u32 %v1062, 16
        %v1116 = vrot.slane %v1114, 4
        %v1117 = vshll.u32 %v1062, 16
        %v1119 = vrot.slane %v1117, 5
        %v1120 = vor.u32 %v1116, %v1119
        %v1121 = vrot.slane %v1120, 4
        %v1123 = vshll.u32 %v1063, 16
        %v1125 = vrot.slane %v1123, 5
        %v1126 = vsel %vm1112, %v1121, %v1125
        %v1127 = vshrl.u32 %v1063, 16
        %v1129 = vrot.slane %v1127, 4
        %v1130 = vor.u32 %v1129, %v1125
        %v1131 = vrot.slane %v1130, 4
        %v1133 = vshll.u32 %v1094, 16
        %v1135 = vrot.slane %v1133, 5
        %v1136 = vsel %vm1112, %v1131, %v1135
        %v1138 = vshrl.u32 %v1064, 16
        %v1140 = vrot.slane %v1138, 4
        %v1141 = vshll.u32 %v1064, 16
        %v1143 = vrot.slane %v1141, 5
        %v1144 = vor.u32 %v1140, %v1143
        %v1145 = vrot.slane %v1144, 4
        %v1147 = vshll.u32 %v1065, 16
        %v1149 = vrot.slane %v1147, 5
        %v1150 = vsel %vm1112, %v1145, %v1149
        %v1151 = vshrl.u32 %v1065, 16
        %v1153 = vrot.slane %v1151, 4
        %v1154 = vor.u32 %v1153, %v1149
        %v1155 = vrot.slane %v1154, 4
        %v1157 = vshll.u32 %v1095, 16
        %v1159 = vrot.slane %v1157, 5
        %v1160 = vsel %vm1112, %v1155, %v1159
        %v1162 = vshrl.u32 %v1066, 16
        %v1164 = vrot.slane %v1162, 4
        %v1165 = vshll.u32 %v1066, 16
        %v1167 = vrot.slane %v1165, 5
        %v1168 = vor.u32 %v1164, %v1167
        %v1169 = vrot.slane %v1168, 4
        %v1171 = vshll.u32 %v1067, 16
        %v1173 = vrot.slane %v1171, 5
        %v1174 = vsel %vm1112, %v1169, %v1173
        %v1175 = vshrl.u32 %v1067, 16
        %v1177 = vrot.slane %v1175, 4
        %v1178 = vor.u32 %v1177, %v1173
        %v1179 = vrot.slane %v1178, 4
        %v1181 = vshll.u32 %v1096, 16
        %v1183 = vrot.slane %v1181, 5
        %v1184 = vsel %vm1112, %v1179, %v1183
        %v1186 = vshrl.u32 %v1068, 16
        %v1188 = vrot.slane %v1186, 4
        %v1189 = vshll.u32 %v1068, 16
        %v1191 = vrot.slane %v1189, 5
        %v1192 = vor.u32 %v1188, %v1191
        %v1193 = vrot.slane %v1192, 4
        %v1195 = vshll.u32 %v1069, 16
        %v1197 = vrot.slane %v1195, 5
        %v1198 = vsel %vm1112, %v1193, %v1197
        %v1199 = vshrl.u32 %v1069, 16
        %v1201 = vrot.slane %v1199, 4
        %v1202 = vor.u32 %v1201, %v1197
        %v1203 = vrot.slane %v1202, 4
        %v1205 = vshll.u32 %v1097, 16
        %v1207 = vrot.slane %v1205, 5
        %v1208 = vsel %vm1112, %v1203, %v1207
        %v1210 = vshrl.u32 %v1070, 16
        %v1212 = vrot.slane %v1210, 4
        %v1213 = vshll.u32 %v1070, 16
        %v1215 = vrot.slane %v1213, 5
        %v1216 = vor.u32 %v1212, %v1215
        %v1217 = vrot.slane %v1216, 4
        %v1219 = vshll.u32 %v1071, 16
        %v1221 = vrot.slane %v1219, 5
        %v1222 = vsel %vm1112, %v1217, %v1221
        %v1223 = vshrl.u32 %v1071, 16
        %v1225 = vrot.slane %v1223, 4
        %v1226 = vor.u32 %v1225, %v1221
        %v1227 = vrot.slane %v1226, 4
        %v1229 = vshll.u32 %v1098, 16
        %v1231 = vrot.slane %v1229, 5
        %v1232 = vsel %vm1112, %v1227, %v1231
        %v1234 = vshrl.u32 %v1072, 16
        %v1236 = vrot.slane %v1234, 4
        %v1237 = vshll.u32 %v1072, 16
        %v1239 = vrot.slane %v1237, 5
        %v1240 = vor.u32 %v1236, %v1239
        %v1241 = vrot.slane %v1240, 4
        %v1243 = vshll.u32 %v1073, 16
        %v1245 = vrot.slane %v1243, 5
        %v1246 = vsel %vm1112, %v1241, %v1245
        %v1247 = vshrl.u32 %v1073, 16
        %v1249 = vrot.slane %v1247, 4
        %v1250 = vor.u32 %v1249, %v1245
        %v1251 = vrot.slane %v1250, 4
        %v1253 = vshll.u32 %v1099, 16
        %v1255 = vrot.slane %v1253, 5
        %v1256 = vsel %vm1112, %v1251, %v1255
        %v1258 = vshrl.u32 %v1074, 16
        %v1260 = vrot.slane %v1258, 4
        %v1261 = vshll.u32 %v1074, 16
        %v1263 = vrot.slane %v1261, 5
        %v1264 = vor.u32 %v1260, %v1263
        %v1265 = vrot.slane %v1264, 4
        %v1267 = vshll.u32 %v1075, 16
        %v1269 = vrot.slane %v1267, 5
        %v1270 = vsel %vm1112, %v1265, %v1269
        %v1271 = vshrl.u32 %v1075, 16
        %v1273 = vrot.slane %v1271, 4
        %v1274 = vor.u32 %v1273, %v1269
        %v1275 = vrot.slane %v1274, 4
        %v1277 = vshll.u32 %v1100, 16
        %v1279 = vrot.slane %v1277, 5
        %v1280 = vsel %vm1112, %v1275, %v1279
        %v1282 = vshrl.u32 %v1076, 16
        %v1284 = vrot.slane %v1282, 4
        %v1285 = vshll.u32 %v1076, 16
        %v1287 = vrot.slane %v1285, 5
        %v1288 = vor.u32 %v1284, %v1287
        %v1289 = vrot.slane %v1288, 4
        %v1291 = vshll.u32 %v1077, 16
        %v1293 = vrot.slane %v1291, 5
        %v1294 = vsel %vm1112, %v1289, %v1293
        %v1295 = vshrl.u32 %v1077, 16
        %v1297 = vrot.slane %v1295, 4
        %v1298 = vor.u32 %v1297, %v1293
        %v1299 = vrot.slane %v1298, 4
        %v1301 = vshll.u32 %v1101, 16
        %v1303 = vrot.slane %v1301, 5
        %v1304 = vsel %vm1112, %v1299, %v1303
        %v1306 = vshrl.u32 %v1078, 16
        %v1308 = vrot.slane %v1306, 4
        %v1309 = vshll.u32 %v1078, 16
        %v1311 = vrot.slane %v1309, 5
        %v1312 = vor.u32 %v1308, %v1311
        %v1313 = vrot.slane %v1312, 4
        %v1315 = vshll.u32 %v1079, 16
        %v1317 = vrot.slane %v1315, 5
        %v1318 = vsel %vm1112, %v1313, %v1317
        %v1319 = vshrl.u32 %v1079, 16
        %v1321 = vrot.slane %v1319, 4
        %v1322 = vor.u32 %v1321, %v1317
        %v1323 = vrot.slane %v1322, 4
        %v1325 = vshll.u32 %v1102, 16
        %v1327 = vrot.slane %v1325, 5
        %v1328 = vsel %vm1112, %v1323, %v1327
        %v1330 = vshrl.u32 %v1080, 16
        %v1332 = vrot.slane %v1330, 4
        %v1333 = vshll.u32 %v1080, 16
        %v1335 = vrot.slane %v1333, 5
        %v1336 = vor.u32 %v1332, %v1335
        %v1337 = vrot.slane %v1336, 4
        %v1339 = vshll.u32 %v1081, 16
        %v1341 = vrot.slane %v1339, 5
        %v1342 = vsel %vm1112, %v1337, %v1341
        %v1343 = vshrl.u32 %v1081, 16
        %v1345 = vrot.slane %v1343, 4
        %v1346 = vor.u32 %v1345, %v1341
        %v1347 = vrot.slane %v1346, 4
        %v1349 = vshll.u32 %v1103, 16
        %v1351 = vrot.slane %v1349, 5
        %v1352 = vsel %vm1112, %v1347, %v1351
        %v1354 = vshrl.u32 %v1082, 16
        %v1356 = vrot.slane %v1354, 4
        %v1357 = vshll.u32 %v1082, 16
        %v1359 = vrot.slane %v1357, 5
        %v1360 = vor.u32 %v1356, %v1359
        %v1361 = vrot.slane %v1360, 4
        %v1363 = vshll.u32 %v1083, 16
        %v1365 = vrot.slane %v1363, 5
        %v1366 = vsel %vm1112, %v1361, %v1365
        %v1367 = vshrl.u32 %v1083, 16
        %v1369 = vrot.slane %v1367, 4
        %v1370 = vor.u32 %v1369, %v1365
        %v1371 = vrot.slane %v1370, 4
        %v1373 = vshll.u32 %v1104, 16
        %v1375 = vrot.slane %v1373, 5
        %v1376 = vsel %vm1112, %v1371, %v1375
        %v1378 = vshrl.u32 %v1084, 16
        %v1380 = vrot.slane %v1378, 4
        %v1381 = vshll.u32 %v1084, 16
        %v1383 = vrot.slane %v1381, 5
        %v1384 = vor.u32 %v1380, %v1383
        %v1385 = vrot.slane %v1384, 4
        %v1387 = vshll.u32 %v1085, 16
        %v1389 = vrot.slane %v1387, 5
        %v1390 = vsel %vm1112, %v1385, %v1389
        %v1391 = vshrl.u32 %v1085, 16
        %v1393 = vrot.slane %v1391, 4
        %v1394 = vor.u32 %v1393, %v1389
        %v1395 = vrot.slane %v1394, 4
        %v1397 = vshll.u32 %v1105, 16
        %v1399 = vrot.slane %v1397, 5
        %v1400 = vsel %vm1112, %v1395, %v1399
        %v1402 = vshrl.u32 %v1086, 16
        %v1404 = vrot.slane %v1402, 4
        %v1405 = vshll.u32 %v1086, 16
        %v1407 = vrot.slane %v1405, 5
        %v1408 = vor.u32 %v1404, %v1407
        %v1409 = vrot.slane %v1408, 4
        %v1411 = vshll.u32 %v1087, 16
        %v1413 = vrot.slane %v1411, 5
        %v1414 = vsel %vm1112, %v1409, %v1413
        %v1415 = vshrl.u32 %v1087, 16
        %v1417 = vrot.slane %v1415, 4
        %v1418 = vor.u32 %v1417, %v1413
        %v1419 = vrot.slane %v1418, 4
        %v1421 = vshll.u32 %v1106, 16
        %v1423 = vrot.slane %v1421, 5
        %v1424 = vsel %vm1112, %v1419, %v1423
        %v1426 = vshrl.u32 %v1088, 16
        %v1428 = vrot.slane %v1426, 4
        %v1429 = vshll.u32 %v1088, 16
        %v1431 = vrot.slane %v1429, 5
        %v1432 = vor.u32 %v1428, %v1431
        %v1433 = vrot.slane %v1432, 4
        %v1435 = vshll.u32 %v1089, 16
        %v1437 = vrot.slane %v1435, 5
        %v1438 = vsel %vm1112, %v1433, %v1437
        %v1439 = vshrl.u32 %v1089, 16
        %v1441 = vrot.slane %v1439, 4
        %v1442 = vor.u32 %v1441, %v1437
        %v1443 = vrot.slane %v1442, 4
        %v1445 = vshll.u32 %v1107, 16
        %v1447 = vrot.slane %v1445, 5
        %v1448 = vsel %vm1112, %v1443, %v1447
        %v1450 = vshrl.u32 %v1090, 16
        %v1452 = vrot.slane %v1450, 4
        %v1453 = vshll.u32 %v1090, 16
        %v1455 = vrot.slane %v1453, 5
        %v1456 = vor.u32 %v1452, %v1455
        %v1457 = vrot.slane %v1456, 4
        %v1459 = vshll.u32 %v1091, 16
        %v1461 = vrot.slane %v1459, 5
        %v1462 = vsel %vm1112, %v1457, %v1461
        %v1463 = vshrl.u32 %v1091, 16
        %v1465 = vrot.slane %v1463, 4
        %v1466 = vor.u32 %v1465, %v1461
        %v1467 = vrot.slane %v1466, 4
        %v1469 = vshll.u32 %v1108, 16
        %v1471 = vrot.slane %v1469, 5
        %v1472 = vsel %vm1112, %v1467, %v1471
        %v1474 = vshrl.u32 %v1092, 16
        %v1476 = vrot.slane %v1474, 4
        %v1477 = vshll.u32 %v1092, 16
        %v1479 = vrot.slane %v1477, 5
        %v1480 = vor.u32 %v1476, %v1479
        %v1481 = vrot.slane %v1480, 4
        %v1483 = vshll.u32 %v1093, 16
        %v1485 = vrot.slane %v1483, 5
        %v1486 = vsel %vm1112, %v1481, %v1485
        %v1487 = vshrl.u32 %v1093, 16
        %v1489 = vrot.slane %v1487, 4
        %v1490 = vor.u32 %v1489, %v1485
        %v1491 = vrot.slane %v1490, 4
        %v1493 = vshll.u32 %v1109, 16
        %v1495 = vrot.slane %v1493, 5
        %v1496 = vsel %vm1112, %v1491, %v1495
        %v1497 = vld [vmem:[#allocation2] sm:$0xe]
        %v1498 = vld [vmem:[#allocation2 + $0xc] sm:$0xe]
        %v1499 = vld [vmem:[#allocation2 + $0x18] sm:$0xe]
        %v1500 = vld [vmem:[#allocation2 + $0x24] sm:$0xe]
        %v1501 = vld [vmem:[#allocation2 + $0x30] sm:$0xe]
        %v1502 = vld [vmem:[#allocation2 + $0x3c] sm:$0xe]
        %v1503 = vld [vmem:[#allocation2 + $0x48] sm:$0xe]
        %v1504 = vld [vmem:[#allocation2 + $0x54] sm:$0xe]
        %v1505 = vld [vmem:[#allocation2 + $0x60] sm:$0xe]
        %v1506 = vld [vmem:[#allocation2 + $0x6c] sm:$0xe]
        %v1507 = vld [vmem:[#allocation2 + $0x78] sm:$0xe]
        %v1508 = vld [vmem:[#allocation2 + $0x84] sm:$0xe]
        %v1509 = vld [vmem:[#allocation2 + $0x90] sm:$0xe]
        %v1510 = vld [vmem:[#allocation2 + $0x9c] sm:$0xe]
        %v1511 = vld [vmem:[#allocation2 + $0xa8] sm:$0xe]
        %v1512 = vld [vmem:[#allocation2 + $0xb4] sm:$0xe]
        %vm1561 = vcmask 1042432
        %vm1562 = vcmask 1046532
        %vm1563 = vmor %vm1561, %vm1562
        %v1564 = vrot.slane %v1497, 5
        %v1565 = vrot.slane %v1564, 4
        %v1566 = vrot.slane %v1063, 5
        %v1567 = vsel %vm1563, %v1565, %v1566
        %v1568 = vrot.slane %v1566, 4
        %v1569 = vrot.slane %v1094, 5
        %v1570 = vsel %vm1563, %v1568, %v1569
        %v1571 = vrot.slane %v1498, 5
        %v1572 = vrot.slane %v1571, 4
        %v1573 = vrot.slane %v1065, 5
        %v1574 = vsel %vm1563, %v1572, %v1573
        %v1575 = vrot.slane %v1573, 4
        %v1576 = vrot.slane %v1095, 5
        %v1577 = vsel %vm1563, %v1575, %v1576
        %v1578 = vrot.slane %v1499, 5
        %v1579 = vrot.slane %v1578, 4
        %v1580 = vrot.slane %v1067, 5
        %v1581 = vsel %vm1563, %v1579, %v1580
        %v1582 = vrot.slane %v1580, 4
        %v1583 = vrot.slane %v1096, 5
        %v1584 = vsel %vm1563, %v1582, %v1583
        %v1585 = vrot.slane %v1500, 5
        %v1586 = vrot.slane %v1585, 4
        %v1587 = vrot.slane %v1069, 5
        %v1588 = vsel %vm1563, %v1586, %v1587
        %v1589 = vrot.slane %v1587, 4
        %v1590 = vrot.slane %v1097, 5
        %v1591 = vsel %vm1563, %v1589, %v1590
        %v1592 = vrot.slane %v1501, 5
        %v1593 = vrot.slane %v1592, 4
        %v1594 = vrot.slane %v1071, 5
        %v1595 = vsel %vm1563, %v1593, %v1594
        %v1596 = vrot.slane %v1594, 4
        %v1597 = vrot.slane %v1098, 5
        %v1598 = vsel %vm1563, %v1596, %v1597
        %v1599 = vrot.slane %v1502, 5
        %v1600 = vrot.slane %v1599, 4
        %v1601 = vrot.slane %v1073, 5
        %v1602 = vsel %vm1563, %v1600, %v1601
        %v1603 = vrot.slane %v1601, 4
        %v1604 = vrot.slane %v1099, 5
        %v1605 = vsel %vm1563, %v1603, %v1604
        %v1606 = vrot.slane %v1503, 5
        %v1607 = vrot.slane %v1606, 4
        %v1608 = vrot.slane %v1075, 5
        %v1609 = vsel %vm1563, %v1607, %v1608
        %v1610 = vrot.slane %v1608, 4
        %v1611 = vrot.slane %v1100, 5
        %v1612 = vsel %vm1563, %v1610, %v1611
        %v1613 = vrot.slane %v1504, 5
        %v1614 = vrot.slane %v1613, 4
        %v1615 = vrot.slane %v1077, 5
        %v1616 = vsel %vm1563, %v1614, %v1615
        %v1617 = vrot.slane %v1615, 4
        %v1618 = vrot.slane %v1101, 5
        %v1619 = vsel %vm1563, %v1617, %v1618
        %v1620 = vrot.slane %v1505, 5
        %v1621 = vrot.slane %v1620, 4
        %v1622 = vrot.slane %v1079, 5
        %v1623 = vsel %vm1563, %v1621, %v1622
        %v1624 = vrot.slane %v1622, 4
        %v1625 = vrot.slane %v1102, 5
        %v1626 = vsel %vm1563, %v1624, %v1625
        %v1627 = vrot.slane %v1506, 5
        %v1628 = vrot.slane %v1627, 4
        %v1629 = vrot.slane %v1081, 5
        %v1630 = vsel %vm1563, %v1628, %v1629
        %v1631 = vrot.slane %v1629, 4
        %v1632 = vrot.slane %v1103, 5
        %v1633 = vsel %vm1563, %v1631, %v1632
        %v1634 = vrot.slane %v1507, 5
        %v1635 = vrot.slane %v1634, 4
        %v1636 = vrot.slane %v1083, 5
        %v1637 = vsel %vm1563, %v1635, %v1636
        %v1638 = vrot.slane %v1636, 4
        %v1639 = vrot.slane %v1104, 5
        %v1640 = vsel %vm1563, %v1638, %v1639
        %v1641 = vrot.slane %v1508, 5
        %v1642 = vrot.slane %v1641, 4
        %v1643 = vrot.slane %v1085, 5
        %v1644 = vsel %vm1563, %v1642, %v1643
        %v1645 = vrot.slane %v1643, 4
        %v1646 = vrot.slane %v1105, 5
        %v1647 = vsel %vm1563, %v1645, %v1646
        %v1648 = vrot.slane %v1509, 5
        %v1649 = vrot.slane %v1648, 4
        %v1650 = vrot.slane %v1087, 5
        %v1651 = vsel %vm1563, %v1649, %v1650
        %v1652 = vrot.slane %v1650, 4
        %v1653 = vrot.slane %v1106, 5
        %v1654 = vsel %vm1563, %v1652, %v1653
        %v1655 = vrot.slane %v1510, 5
        %v1656 = vrot.slane %v1655, 4
        %v1657 = vrot.slane %v1089, 5
        %v1658 = vsel %vm1563, %v1656, %v1657
        %v1659 = vrot.slane %v1657, 4
        %v1660 = vrot.slane %v1107, 5
        %v1661 = vsel %vm1563, %v1659, %v1660
        %v1662 = vrot.slane %v1511, 5
        %v1663 = vrot.slane %v1662, 4
        %v1664 = vrot.slane %v1091, 5
        %v1665 = vsel %vm1563, %v1663, %v1664
        %v1666 = vrot.slane %v1664, 4
        %v1667 = vrot.slane %v1108, 5
        %v1668 = vsel %vm1563, %v1666, %v1667
        %v1669 = vrot.slane %v1512, 5
        %v1670 = vrot.slane %v1669, 4
        %v1671 = vrot.slane %v1093, 5
        %v1672 = vsel %vm1563, %v1670, %v1671
        %v1673 = vrot.slane %v1671, 4
        %v1674 = vrot.slane %v1109, 5
        %v1675 = vsel %vm1563, %v1673, %v1674
        %v1676 = vld [vmem:[%s947] sm:$0xf]
        %v1677 = vld [vmem:[%s947 + $0x4] sm:$0xf]
        %v1678 = vld [vmem:[%s947 + $0xc] sm:$0xf]
        %v1679 = vld [vmem:[%s947 + $0x10] sm:$0xf]
        %v1680 = vld [vmem:[%s947 + $0x18] sm:$0xf]
        %v1681 = vld [vmem:[%s947 + $0x1c] sm:$0xf]
        %v1682 = vld [vmem:[%s947 + $0x24] sm:$0xf]
        %v1683 = vld [vmem:[%s947 + $0x28] sm:$0xf]
        %v1684 = vld [vmem:[%s947 + $0x30] sm:$0xf]
        %v1685 = vld [vmem:[%s947 + $0x34] sm:$0xf]
        %v1686 = vld [vmem:[%s947 + $0x3c] sm:$0xf]
        %v1687 = vld [vmem:[%s947 + $0x40] sm:$0xf]
        %v1688 = vld [vmem:[%s947 + $0x48] sm:$0xf]
        %v1689 = vld [vmem:[%s947 + $0x4c] sm:$0xf]
        %v1690 = vld [vmem:[%s947 + $0x54] sm:$0xf]
        %v1691 = vld [vmem:[%s947 + $0x58] sm:$0xf]
        %v1692 = vld [vmem:[%s947 + $0x60] sm:$0xf]
        %v1693 = vld [vmem:[%s947 + $0x64] sm:$0xf]
        %v1694 = vld [vmem:[%s947 + $0x6c] sm:$0xf]
        %v1695 = vld [vmem:[%s947 + $0x70] sm:$0xf]
        %v1696 = vld [vmem:[%s947 + $0x78] sm:$0xf]
        %v1697 = vld [vmem:[%s947 + $0x7c] sm:$0xf]
        %v1698 = vld [vmem:[%s947 + $0x84] sm:$0xf]
        %v1699 = vld [vmem:[%s947 + $0x88] sm:$0xf]
        %v1700 = vld [vmem:[%s947 + $0x90] sm:$0xf]
        %v1701 = vld [vmem:[%s947 + $0x94] sm:$0xf]
        %v1702 = vld [vmem:[%s947 + $0x9c] sm:$0xf]
        %v1703 = vld [vmem:[%s947 + $0xa0] sm:$0xf]
        %v1704 = vld [vmem:[%s947 + $0xa8] sm:$0xf]
        %v1705 = vld [vmem:[%s947 + $0xac] sm:$0xf]
        %v1706 = vld [vmem:[%s947 + $0xb4] sm:$0xf]
        %v1707 = vld [vmem:[%s947 + $0xb8] sm:$0xf]
        %v1708 = vld [vmem:[%s947 + $0x8] sm:$0x1]
        %v1709 = vld [vmem:[%s947 + $0x14] sm:$0x1]
        %v1710 = vld [vmem:[%s947 + $0x20] sm:$0x1]
        %v1711 = vld [vmem:[%s947 + $0x2c] sm:$0x1]
        %v1712 = vld [vmem:[%s947 + $0x38] sm:$0x1]
        %v1713 = vld [vmem:[%s947 + $0x44] sm:$0x1]
        %v1714 = vld [vmem:[%s947 + $0x50] sm:$0x1]
        %v1715 = vld [vmem:[%s947 + $0x5c] sm:$0x1]
        %v1716 = vld [vmem:[%s947 + $0x68] sm:$0x1]
        %v1717 = vld [vmem:[%s947 + $0x74] sm:$0x1]
        %v1718 = vld [vmem:[%s947 + $0x80] sm:$0x1]
        %v1719 = vld [vmem:[%s947 + $0x8c] sm:$0x1]
        %v1720 = vld [vmem:[%s947 + $0x98] sm:$0x1]
        %v1721 = vld [vmem:[%s947 + $0xa4] sm:$0x1]
        %v1722 = vld [vmem:[%s947 + $0xb0] sm:$0x1]
        %v1723 = vld [vmem:[%s947 + $0xbc] sm:$0x1]
        %v1725 = vshrl.u32 %v1676, 16
        %v1727 = vrot.slane %v1725, 4
        %v1728 = vshll.u32 %v1676, 16
        %v1730 = vrot.slane %v1728, 5
        %v1731 = vor.u32 %v1727, %v1730
        %v1732 = vrot.slane %v1731, 4
        %v1734 = vshll.u32 %v1677, 16
        %v1736 = vrot.slane %v1734, 5
        %v1737 = vsel %vm1112, %v1732, %v1736
        %v1738 = vshrl.u32 %v1677, 16
        %v1740 = vrot.slane %v1738, 4
        %v1741 = vor.u32 %v1740, %v1736
        %v1742 = vrot.slane %v1741, 4
        %v1744 = vshll.u32 %v1708, 16
        %v1746 = vrot.slane %v1744, 5
        %v1747 = vsel %vm1112, %v1742, %v1746
        %v1749 = vshrl.u32 %v1678, 16
        %v1751 = vrot.slane %v1749, 4
        %v1752 = vshll.u32 %v1678, 16
        %v1754 = vrot.slane %v1752, 5
        %v1755 = vor.u32 %v1751, %v1754
        %v1756 = vrot.slane %v1755, 4
        %v1758 = vshll.u32 %v1679, 16
        %v1760 = vrot.slane %v1758, 5
        %v1761 = vsel %vm1112, %v1756, %v1760
        %v1762 = vshrl.u32 %v1679, 16
        %v1764 = vrot.slane %v1762, 4
        %v1765 = vor.u32 %v1764, %v1760
        %v1766 = vrot.slane %v1765, 4
        %v1768 = vshll.u32 %v1709, 16
        %v1770 = vrot.slane %v1768, 5
        %v1771 = vsel %vm1112, %v1766, %v1770
        %v1773 = vshrl.u32 %v1680, 16
        %v1775 = vrot.slane %v1773, 4
        %v1776 = vshll.u32 %v1680, 16
        %v1778 = vrot.slane %v1776, 5
        %v1779 = vor.u32 %v1775, %v1778
        %v1780 = vrot.slane %v1779, 4
        %v1782 = vshll.u32 %v1681, 16
        %v1784 = vrot.slane %v1782, 5
        %v1785 = vsel %vm1112, %v1780, %v1784
        %v1786 = vshrl.u32 %v1681, 16
        %v1788 = vrot.slane %v1786, 4
        %v1789 = vor.u32 %v1788, %v1784
        %v1790 = vrot.slane %v1789, 4
        %v1792 = vshll.u32 %v1710, 16
        %v1794 = vrot.slane %v1792, 5
        %v1795 = vsel %vm1112, %v1790, %v1794
        %v1797 = vshrl.u32 %v1682, 16
        %v1799 = vrot.slane %v1797, 4
        %v1800 = vshll.u32 %v1682, 16
        %v1802 = vrot.slane %v1800, 5
        %v1803 = vor.u32 %v1799, %v1802
        %v1804 = vrot.slane %v1803, 4
        %v1806 = vshll.u32 %v1683, 16
        %v1808 = vrot.slane %v1806, 5
        %v1809 = vsel %vm1112, %v1804, %v1808
        %v1810 = vshrl.u32 %v1683, 16
        %v1812 = vrot.slane %v1810, 4
        %v1813 = vor.u32 %v1812, %v1808
        %v1814 = vrot.slane %v1813, 4
        %v1816 = vshll.u32 %v1711, 16
        %v1818 = vrot.slane %v1816, 5
        %v1819 = vsel %vm1112, %v1814, %v1818
        %v1821 = vshrl.u32 %v1684, 16
        %v1823 = vrot.slane %v1821, 4
        %v1824 = vshll.u32 %v1684, 16
        %v1826 = vrot.slane %v1824, 5
        %v1827 = vor.u32 %v1823, %v1826
        %v1828 = vrot.slane %v1827, 4
        %v1830 = vshll.u32 %v1685, 16
        %v1832 = vrot.slane %v1830, 5
        %v1833 = vsel %vm1112, %v1828, %v1832
        %v1834 = vshrl.u32 %v1685, 16
        %v1836 = vrot.slane %v1834, 4
        %v1837 = vor.u32 %v1836, %v1832
        %v1838 = vrot.slane %v1837, 4
        %v1840 = vshll.u32 %v1712, 16
        %v1842 = vrot.slane %v1840, 5
        %v1843 = vsel %vm1112, %v1838, %v1842
        %v1845 = vshrl.u32 %v1686, 16
        %v1847 = vrot.slane %v1845, 4
        %v1848 = vshll.u32 %v1686, 16
        %v1850 = vrot.slane %v1848, 5
        %v1851 = vor.u32 %v1847, %v1850
        %v1852 = vrot.slane %v1851, 4
        %v1854 = vshll.u32 %v1687, 16
        %v1856 = vrot.slane %v1854, 5
        %v1857 = vsel %vm1112, %v1852, %v1856
        %v1858 = vshrl.u32 %v1687, 16
        %v1860 = vrot.slane %v1858, 4
        %v1861 = vor.u32 %v1860, %v1856
        %v1862 = vrot.slane %v1861, 4
        %v1864 = vshll.u32 %v1713, 16
        %v1866 = vrot.slane %v1864, 5
        %v1867 = vsel %vm1112, %v1862, %v1866
        %v1869 = vshrl.u32 %v1688, 16
        %v1871 = vrot.slane %v1869, 4
        %v1872 = vshll.u32 %v1688, 16
        %v1874 = vrot.slane %v1872, 5
        %v1875 = vor.u32 %v1871, %v1874
        %v1876 = vrot.slane %v1875, 4
        %v1878 = vshll.u32 %v1689, 16
        %v1880 = vrot.slane %v1878, 5
        %v1881 = vsel %vm1112, %v1876, %v1880
        %v1882 = vshrl.u32 %v1689, 16
        %v1884 = vrot.slane %v1882, 4
        %v1885 = vor.u32 %v1884, %v1880
        %v1886 = vrot.slane %v1885, 4
        %v1888 = vshll.u32 %v1714, 16
        %v1890 = vrot.slane %v1888, 5
        %v1891 = vsel %vm1112, %v1886, %v1890
        %v1893 = vshrl.u32 %v1690, 16
        %v1895 = vrot.slane %v1893, 4
        %v1896 = vshll.u32 %v1690, 16
        %v1898 = vrot.slane %v1896, 5
        %v1899 = vor.u32 %v1895, %v1898
        %v1900 = vrot.slane %v1899, 4
        %v1902 = vshll.u32 %v1691, 16
        %v1904 = vrot.slane %v1902, 5
        %v1905 = vsel %vm1112, %v1900, %v1904
        %v1906 = vshrl.u32 %v1691, 16
        %v1908 = vrot.slane %v1906, 4
        %v1909 = vor.u32 %v1908, %v1904
        %v1910 = vrot.slane %v1909, 4
        %v1912 = vshll.u32 %v1715, 16
        %v1914 = vrot.slane %v1912, 5
        %v1915 = vsel %vm1112, %v1910, %v1914
        %v1917 = vshrl.u32 %v1692, 16
        %v1919 = vrot.slane %v1917, 4
        %v1920 = vshll.u32 %v1692, 16
        %v1922 = vrot.slane %v1920, 5
        %v1923 = vor.u32 %v1919, %v1922
        %v1924 = vrot.slane %v1923, 4
        %v1926 = vshll.u32 %v1693, 16
        %v1928 = vrot.slane %v1926, 5
        %v1929 = vsel %vm1112, %v1924, %v1928
        %v1930 = vshrl.u32 %v1693, 16
        %v1932 = vrot.slane %v1930, 4
        %v1933 = vor.u32 %v1932, %v1928
        %v1934 = vrot.slane %v1933, 4
        %v1936 = vshll.u32 %v1716, 16
        %v1938 = vrot.slane %v1936, 5
        %v1939 = vsel %vm1112, %v1934, %v1938
        %v1941 = vshrl.u32 %v1694, 16
        %v1943 = vrot.slane %v1941, 4
        %v1944 = vshll.u32 %v1694, 16
        %v1946 = vrot.slane %v1944, 5
        %v1947 = vor.u32 %v1943, %v1946
        %v1948 = vrot.slane %v1947, 4
        %v1950 = vshll.u32 %v1695, 16
        %v1952 = vrot.slane %v1950, 5
        %v1953 = vsel %vm1112, %v1948, %v1952
        %v1954 = vshrl.u32 %v1695, 16
        %v1956 = vrot.slane %v1954, 4
        %v1957 = vor.u32 %v1956, %v1952
        %v1958 = vrot.slane %v1957, 4
        %v1960 = vshll.u32 %v1717, 16
        %v1962 = vrot.slane %v1960, 5
        %v1963 = vsel %vm1112, %v1958, %v1962
        %v1965 = vshrl.u32 %v1696, 16
        %v1967 = vrot.slane %v1965, 4
        %v1968 = vshll.u32 %v1696, 16
        %v1970 = vrot.slane %v1968, 5
        %v1971 = vor.u32 %v1967, %v1970
        %v1972 = vrot.slane %v1971, 4
        %v1974 = vshll.u32 %v1697, 16
        %v1976 = vrot.slane %v1974, 5
        %v1977 = vsel %vm1112, %v1972, %v1976
        %v1978 = vshrl.u32 %v1697, 16
        %v1980 = vrot.slane %v1978, 4
        %v1981 = vor.u32 %v1980, %v1976
        %v1982 = vrot.slane %v1981, 4
        %v1984 = vshll.u32 %v1718, 16
        %v1986 = vrot.slane %v1984, 5
        %v1987 = vsel %vm1112, %v1982, %v1986
        %v1989 = vshrl.u32 %v1698, 16
        %v1991 = vrot.slane %v1989, 4
        %v1992 = vshll.u32 %v1698, 16
        %v1994 = vrot.slane %v1992, 5
        %v1995 = vor.u32 %v1991, %v1994
        %v1996 = vrot.slane %v1995, 4
        %v1998 = vshll.u32 %v1699, 16
        %v2000 = vrot.slane %v1998, 5
        %v2001 = vsel %vm1112, %v1996, %v2000
        %v2002 = vshrl.u32 %v1699, 16
        %v2004 = vrot.slane %v2002, 4
        %v2005 = vor.u32 %v2004, %v2000
        %v2006 = vrot.slane %v2005, 4
        %v2008 = vshll.u32 %v1719, 16
        %v2010 = vrot.slane %v2008, 5
        %v2011 = vsel %vm1112, %v2006, %v2010
        %v2013 = vshrl.u32 %v1700, 16
        %v2015 = vrot.slane %v2013, 4
        %v2016 = vshll.u32 %v1700, 16
        %v2018 = vrot.slane %v2016, 5
        %v2019 = vor.u32 %v2015, %v2018
        %v2020 = vrot.slane %v2019, 4
        %v2022 = vshll.u32 %v1701, 16
        %v2024 = vrot.slane %v2022, 5
        %v2025 = vsel %vm1112, %v2020, %v2024
        %v2026 = vshrl.u32 %v1701, 16
        %v2028 = vrot.slane %v2026, 4
        %v2029 = vor.u32 %v2028, %v2024
        %v2030 = vrot.slane %v2029, 4
        %v2032 = vshll.u32 %v1720, 16
        %v2034 = vrot.slane %v2032, 5
        %v2035 = vsel %vm1112, %v2030, %v2034
        %v2037 = vshrl.u32 %v1702, 16
        %v2039 = vrot.slane %v2037, 4
        %v2040 = vshll.u32 %v1702, 16
        %v2042 = vrot.slane %v2040, 5
        %v2043 = vor.u32 %v2039, %v2042
        %v2044 = vrot.slane %v2043, 4
        %v2046 = vshll.u32 %v1703, 16
        %v2048 = vrot.slane %v2046, 5
        %v2049 = vsel %vm1112, %v2044, %v2048
        %v2050 = vshrl.u32 %v1703, 16
        %v2052 = vrot.slane %v2050, 4
        %v2053 = vor.u32 %v2052, %v2048
        %v2054 = vrot.slane %v2053, 4
        %v2056 = vshll.u32 %v1721, 16
        %v2058 = vrot.slane %v2056, 5
        %v2059 = vsel %vm1112, %v2054, %v2058
        %v2061 = vshrl.u32 %v1704, 16
        %v2063 = vrot.slane %v2061, 4
        %v2064 = vshll.u32 %v1704, 16
        %v2066 = vrot.slane %v2064, 5
        %v2067 = vor.u32 %v2063, %v2066
        %v2068 = vrot.slane %v2067, 4
        %v2070 = vshll.u32 %v1705, 16
        %v2072 = vrot.slane %v2070, 5
        %v2073 = vsel %vm1112, %v2068, %v2072
        %v2074 = vshrl.u32 %v1705, 16
        %v2076 = vrot.slane %v2074, 4
        %v2077 = vor.u32 %v2076, %v2072
        %v2078 = vrot.slane %v2077, 4
        %v2080 = vshll.u32 %v1722, 16
        %v2082 = vrot.slane %v2080, 5
        %v2083 = vsel %vm1112, %v2078, %v2082
        %v2085 = vshrl.u32 %v1706, 16
        %v2087 = vrot.slane %v2085, 4
        %v2088 = vshll.u32 %v1706, 16
        %v2090 = vrot.slane %v2088, 5
        %v2091 = vor.u32 %v2087, %v2090
        %v2092 = vrot.slane %v2091, 4
        %v2094 = vshll.u32 %v1707, 16
        %v2096 = vrot.slane %v2094, 5
        %v2097 = vsel %vm1112, %v2092, %v2096
        %v2098 = vshrl.u32 %v1707, 16
        %v2100 = vrot.slane %v2098, 4
        %v2101 = vor.u32 %v2100, %v2096
        %v2102 = vrot.slane %v2101, 4
        %v2104 = vshll.u32 %v1723, 16
        %v2106 = vrot.slane %v2104, 5
        %v2107 = vsel %vm1112, %v2102, %v2106
        %v2108 = vld [vmem:[%s947] sm:$0xe]
        %v2109 = vld [vmem:[%s947 + $0xc] sm:$0xe]
        %v2110 = vld [vmem:[%s947 + $0x18] sm:$0xe]
        %v2111 = vld [vmem:[%s947 + $0x24] sm:$0xe]
        %v2112 = vld [vmem:[%s947 + $0x30] sm:$0xe]
        %v2113 = vld [vmem:[%s947 + $0x3c] sm:$0xe]
        %v2114 = vld [vmem:[%s947 + $0x48] sm:$0xe]
        %v2115 = vld [vmem:[%s947 + $0x54] sm:$0xe]
        %v2116 = vld [vmem:[%s947 + $0x60] sm:$0xe]
        %v2117 = vld [vmem:[%s947 + $0x6c] sm:$0xe]
        %v2118 = vld [vmem:[%s947 + $0x78] sm:$0xe]
        %v2119 = vld [vmem:[%s947 + $0x84] sm:$0xe]
        %v2120 = vld [vmem:[%s947 + $0x90] sm:$0xe]
        %v2121 = vld [vmem:[%s947 + $0x9c] sm:$0xe]
        %v2122 = vld [vmem:[%s947 + $0xa8] sm:$0xe]
        %v2123 = vld [vmem:[%s947 + $0xb4] sm:$0xe]
        %v2172 = vrot.slane %v2108, 5
        %v2173 = vrot.slane %v2172, 4
        %v2174 = vrot.slane %v1677, 5
        %v2175 = vsel %vm1563, %v2173, %v2174
        %v2176 = vrot.slane %v2174, 4
        %v2177 = vrot.slane %v1708, 5
        %v2178 = vsel %vm1563, %v2176, %v2177
        %v2179 = vrot.slane %v2109, 5
        %v2180 = vrot.slane %v2179, 4
        %v2181 = vrot.slane %v1679, 5
        %v2182 = vsel %vm1563, %v2180, %v2181
        %v2183 = vrot.slane %v2181, 4
        %v2184 = vrot.slane %v1709, 5
        %v2185 = vsel %vm1563, %v2183, %v2184
        %v2186 = vrot.slane %v2110, 5
        %v2187 = vrot.slane %v2186, 4
        %v2188 = vrot.slane %v1681, 5
        %v2189 = vsel %vm1563, %v2187, %v2188
        %v2190 = vrot.slane %v2188, 4
        %v2191 = vrot.slane %v1710, 5
        %v2192 = vsel %vm1563, %v2190, %v2191
        %v2193 = vrot.slane %v2111, 5
        %v2194 = vrot.slane %v2193, 4
        %v2195 = vrot.slane %v1683, 5
        %v2196 = vsel %vm1563, %v2194, %v2195
        %v2197 = vrot.slane %v2195, 4
        %v2198 = vrot.slane %v1711, 5
        %v2199 = vsel %vm1563, %v2197, %v2198
        %v2200 = vrot.slane %v2112, 5
        %v2201 = vrot.slane %v2200, 4
        %v2202 = vrot.slane %v1685, 5
        %v2203 = vsel %vm1563, %v2201, %v2202
        %v2204 = vrot.slane %v2202, 4
        %v2205 = vrot.slane %v1712, 5
        %v2206 = vsel %vm1563, %v2204, %v2205
        %v2207 = vrot.slane %v2113, 5
        %v2208 = vrot.slane %v2207, 4
        %v2209 = vrot.slane %v1687, 5
        %v2210 = vsel %vm1563, %v2208, %v2209
        %v2211 = vrot.slane %v2209, 4
        %v2212 = vrot.slane %v1713, 5
        %v2213 = vsel %vm1563, %v2211, %v2212
        %v2214 = vrot.slane %v2114, 5
        %v2215 = vrot.slane %v2214, 4
        %v2216 = vrot.slane %v1689, 5
        %v2217 = vsel %vm1563, %v2215, %v2216
        %v2218 = vrot.slane %v2216, 4
        %v2219 = vrot.slane %v1714, 5
        %v2220 = vsel %vm1563, %v2218, %v2219
        %v2221 = vrot.slane %v2115, 5
        %v2222 = vrot.slane %v2221, 4
        %v2223 = vrot.slane %v1691, 5
        %v2224 = vsel %vm1563, %v2222, %v2223
        %v2225 = vrot.slane %v2223, 4
        %v2226 = vrot.slane %v1715, 5
        %v2227 = vsel %vm1563, %v2225, %v2226
        %v2228 = vrot.slane %v2116, 5
        %v2229 = vrot.slane %v2228, 4
        %v2230 = vrot.slane %v1693, 5
        %v2231 = vsel %vm1563, %v2229, %v2230
        %v2232 = vrot.slane %v2230, 4
        %v2233 = vrot.slane %v1716, 5
        %v2234 = vsel %vm1563, %v2232, %v2233
        %v2235 = vrot.slane %v2117, 5
        %v2236 = vrot.slane %v2235, 4
        %v2237 = vrot.slane %v1695, 5
        %v2238 = vsel %vm1563, %v2236, %v2237
        %v2239 = vrot.slane %v2237, 4
        %v2240 = vrot.slane %v1717, 5
        %v2241 = vsel %vm1563, %v2239, %v2240
        %v2242 = vrot.slane %v2118, 5
        %v2243 = vrot.slane %v2242, 4
        %v2244 = vrot.slane %v1697, 5
        %v2245 = vsel %vm1563, %v2243, %v2244
        %v2246 = vrot.slane %v2244, 4
        %v2247 = vrot.slane %v1718, 5
        %v2248 = vsel %vm1563, %v2246, %v2247
        %v2249 = vrot.slane %v2119, 5
        %v2250 = vrot.slane %v2249, 4
        %v2251 = vrot.slane %v1699, 5
        %v2252 = vsel %vm1563, %v2250, %v2251
        %v2253 = vrot.slane %v2251, 4
        %v2254 = vrot.slane %v1719, 5
        %v2255 = vsel %vm1563, %v2253, %v2254
        %v2256 = vrot.slane %v2120, 5
        %v2257 = vrot.slane %v2256, 4
        %v2258 = vrot.slane %v1701, 5
        %v2259 = vsel %vm1563, %v2257, %v2258
        %v2260 = vrot.slane %v2258, 4
        %v2261 = vrot.slane %v1720, 5
        %v2262 = vsel %vm1563, %v2260, %v2261
        %v2263 = vrot.slane %v2121, 5
        %v2264 = vrot.slane %v2263, 4
        %v2265 = vrot.slane %v1703, 5
        %v2266 = vsel %vm1563, %v2264, %v2265
        %v2267 = vrot.slane %v2265, 4
        %v2268 = vrot.slane %v1721, 5
        %v2269 = vsel %vm1563, %v2267, %v2268
        %v2270 = vrot.slane %v2122, 5
        %v2271 = vrot.slane %v2270, 4
        %v2272 = vrot.slane %v1705, 5
        %v2273 = vsel %vm1563, %v2271, %v2272
        %v2274 = vrot.slane %v2272, 4
        %v2275 = vrot.slane %v1722, 5
        %v2276 = vsel %vm1563, %v2274, %v2275
        %v2277 = vrot.slane %v2123, 5
        %v2278 = vrot.slane %v2277, 4
        %v2279 = vrot.slane %v1707, 5
        %v2280 = vsel %vm1563, %v2278, %v2279
        %v2281 = vrot.slane %v2279, 4
        %v2282 = vrot.slane %v1723, 5
        %v2283 = vsel %vm1563, %v2281, %v2282
        %s2284 = scalar_lea.vmem [#allocation2], 24
        %v2285 = vld [vmem:[%s2284] sm:$0xf]
        %v2286 = vld [vmem:[%s2284 + $0x4] sm:$0xf]
        %v2287 = vld [vmem:[%s2284 + $0xc] sm:$0xf]
        %v2288 = vld [vmem:[%s2284 + $0x10] sm:$0xf]
        %v2289 = vld [vmem:[%s2284 + $0x18] sm:$0xf]
        %v2290 = vld [vmem:[%s2284 + $0x1c] sm:$0xf]
        %v2291 = vld [vmem:[%s2284 + $0x24] sm:$0xf]
        %v2292 = vld [vmem:[%s2284 + $0x28] sm:$0xf]
        %v2293 = vld [vmem:[%s2284 + $0x30] sm:$0xf]
        %v2294 = vld [vmem:[%s2284 + $0x34] sm:$0xf]
        %v2295 = vld [vmem:[%s2284 + $0x3c] sm:$0xf]
        %v2296 = vld [vmem:[%s2284 + $0x40] sm:$0xf]
        %v2297 = vld [vmem:[%s2284 + $0x48] sm:$0xf]
        %v2298 = vld [vmem:[%s2284 + $0x4c] sm:$0xf]
        %v2299 = vld [vmem:[%s2284 + $0x54] sm:$0xf]
        %v2300 = vld [vmem:[%s2284 + $0x58] sm:$0xf]
        %v2301 = vld [vmem:[%s2284 + $0x60] sm:$0xf]
        %v2302 = vld [vmem:[%s2284 + $0x64] sm:$0xf]
        %v2303 = vld [vmem:[%s2284 + $0x6c] sm:$0xf]
        %v2304 = vld [vmem:[%s2284 + $0x70] sm:$0xf]
        %v2305 = vld [vmem:[%s2284 + $0x78] sm:$0xf]
        %v2306 = vld [vmem:[%s2284 + $0x7c] sm:$0xf]
        %v2307 = vld [vmem:[%s2284 + $0x84] sm:$0xf]
        %v2308 = vld [vmem:[%s2284 + $0x88] sm:$0xf]
        %v2309 = vld [vmem:[%s2284 + $0x90] sm:$0xf]
        %v2310 = vld [vmem:[%s2284 + $0x94] sm:$0xf]
        %v2311 = vld [vmem:[%s2284 + $0x9c] sm:$0xf]
        %v2312 = vld [vmem:[%s2284 + $0xa0] sm:$0xf]
        %v2313 = vld [vmem:[%s2284 + $0xa8] sm:$0xf]
        %v2314 = vld [vmem:[%s2284 + $0xac] sm:$0xf]
        %v2315 = vld [vmem:[%s2284 + $0xb4] sm:$0xf]
        %v2316 = vld [vmem:[%s2284 + $0xb8] sm:$0xf]
        %v2317 = vld [vmem:[%s2284 + $0x8] sm:$0x1]
        %v2318 = vld [vmem:[%s2284 + $0x14] sm:$0x1]
        %v2319 = vld [vmem:[%s2284 + $0x20] sm:$0x1]
        %v2320 = vld [vmem:[%s2284 + $0x2c] sm:$0x1]
        %v2321 = vld [vmem:[%s2284 + $0x38] sm:$0x1]
        %v2322 = vld [vmem:[%s2284 + $0x44] sm:$0x1]
        %v2323 = vld [vmem:[%s2284 + $0x50] sm:$0x1]
        %v2324 = vld [vmem:[%s2284 + $0x5c] sm:$0x1]
        %v2325 = vld [vmem:[%s2284 + $0x68] sm:$0x1]
        %v2326 = vld [vmem:[%s2284 + $0x74] sm:$0x1]
        %v2327 = vld [vmem:[%s2284 + $0x80] sm:$0x1]
        %v2328 = vld [vmem:[%s2284 + $0x8c] sm:$0x1]
        %v2329 = vld [vmem:[%s2284 + $0x98] sm:$0x1]
        %v2330 = vld [vmem:[%s2284 + $0xa4] sm:$0x1]
        %v2331 = vld [vmem:[%s2284 + $0xb0] sm:$0x1]
        %v2332 = vld [vmem:[%s2284 + $0xbc] sm:$0x1]
        %v2334 = vshrl.u32 %v2285, 16
        %v2336 = vrot.slane %v2334, 4
        %v2337 = vshll.u32 %v2285, 16
        %v2339 = vrot.slane %v2337, 5
        %v2340 = vor.u32 %v2336, %v2339
        %v2341 = vrot.slane %v2340, 4
        %v2343 = vshll.u32 %v2286, 16
        %v2345 = vrot.slane %v2343, 5
        %v2346 = vsel %vm1112, %v2341, %v2345
        %v2347 = vshrl.u32 %v2286, 16
        %v2349 = vrot.slane %v2347, 4
        %v2350 = vor.u32 %v2349, %v2345
        %v2351 = vrot.slane %v2350, 4
        %v2353 = vshll.u32 %v2317, 16
        %v2355 = vrot.slane %v2353, 5
        %v2356 = vsel %vm1112, %v2351, %v2355
        %v2358 = vshrl.u32 %v2287, 16
        %v2360 = vrot.slane %v2358, 4
        %v2361 = vshll.u32 %v2287, 16
        %v2363 = vrot.slane %v2361, 5
        %v2364 = vor.u32 %v2360, %v2363
        %v2365 = vrot.slane %v2364, 4
        %v2367 = vshll.u32 %v2288, 16
        %v2369 = vrot.slane %v2367, 5
        %v2370 = vsel %vm1112, %v2365, %v2369
        %v2371 = vshrl.u32 %v2288, 16
        %v2373 = vrot.slane %v2371, 4
        %v2374 = vor.u32 %v2373, %v2369
        %v2375 = vrot.slane %v2374, 4
        %v2377 = vshll.u32 %v2318, 16
        %v2379 = vrot.slane %v2377, 5
        %v2380 = vsel %vm1112, %v2375, %v2379
        %v2382 = vshrl.u32 %v2289, 16
        %v2384 = vrot.slane %v2382, 4
        %v2385 = vshll.u32 %v2289, 16
        %v2387 = vrot.slane %v2385, 5
        %v2388 = vor.u32 %v2384, %v2387
        %v2389 = vrot.slane %v2388, 4
        %v2391 = vshll.u32 %v2290, 16
        %v2393 = vrot.slane %v2391, 5
        %v2394 = vsel %vm1112, %v2389, %v2393
        %v2395 = vshrl.u32 %v2290, 16
        %v2397 = vrot.slane %v2395, 4
        %v2398 = vor.u32 %v2397, %v2393
        %v2399 = vrot.slane %v2398, 4
        %v2401 = vshll.u32 %v2319, 16
        %v2403 = vrot.slane %v2401, 5
        %v2404 = vsel %vm1112, %v2399, %v2403
        %v2406 = vshrl.u32 %v2291, 16
        %v2408 = vrot.slane %v2406, 4
        %v2409 = vshll.u32 %v2291, 16
        %v2411 = vrot.slane %v2409, 5
        %v2412 = vor.u32 %v2408, %v2411
        %v2413 = vrot.slane %v2412, 4
        %v2415 = vshll.u32 %v2292, 16
        %v2417 = vrot.slane %v2415, 5
        %v2418 = vsel %vm1112, %v2413, %v2417
        %v2419 = vshrl.u32 %v2292, 16
        %v2421 = vrot.slane %v2419, 4
        %v2422 = vor.u32 %v2421, %v2417
        %v2423 = vrot.slane %v2422, 4
        %v2425 = vshll.u32 %v2320, 16
        %v2427 = vrot.slane %v2425, 5
        %v2428 = vsel %vm1112, %v2423, %v2427
        %v2430 = vshrl.u32 %v2293, 16
        %v2432 = vrot.slane %v2430, 4
        %v2433 = vshll.u32 %v2293, 16
        %v2435 = vrot.slane %v2433, 5
        %v2436 = vor.u32 %v2432, %v2435
        %v2437 = vrot.slane %v2436, 4
        %v2439 = vshll.u32 %v2294, 16
        %v2441 = vrot.slane %v2439, 5
        %v2442 = vsel %vm1112, %v2437, %v2441
        %v2443 = vshrl.u32 %v2294, 16
        %v2445 = vrot.slane %v2443, 4
        %v2446 = vor.u32 %v2445, %v2441
        %v2447 = vrot.slane %v2446, 4
        %v2449 = vshll.u32 %v2321, 16
        %v2451 = vrot.slane %v2449, 5
        %v2452 = vsel %vm1112, %v2447, %v2451
        %v2454 = vshrl.u32 %v2295, 16
        %v2456 = vrot.slane %v2454, 4
        %v2457 = vshll.u32 %v2295, 16
        %v2459 = vrot.slane %v2457, 5
        %v2460 = vor.u32 %v2456, %v2459
        %v2461 = vrot.slane %v2460, 4
        %v2463 = vshll.u32 %v2296, 16
        %v2465 = vrot.slane %v2463, 5
        %v2466 = vsel %vm1112, %v2461, %v2465
        %v2467 = vshrl.u32 %v2296, 16
        %v2469 = vrot.slane %v2467, 4
        %v2470 = vor.u32 %v2469, %v2465
        %v2471 = vrot.slane %v2470, 4
        %v2473 = vshll.u32 %v2322, 16
        %v2475 = vrot.slane %v2473, 5
        %v2476 = vsel %vm1112, %v2471, %v2475
        %v2478 = vshrl.u32 %v2297, 16
        %v2480 = vrot.slane %v2478, 4
        %v2481 = vshll.u32 %v2297, 16
        %v2483 = vrot.slane %v2481, 5
        %v2484 = vor.u32 %v2480, %v2483
        %v2485 = vrot.slane %v2484, 4
        %v2487 = vshll.u32 %v2298, 16
        %v2489 = vrot.slane %v2487, 5
        %v2490 = vsel %vm1112, %v2485, %v2489
        %v2491 = vshrl.u32 %v2298, 16
        %v2493 = vrot.slane %v2491, 4
        %v2494 = vor.u32 %v2493, %v2489
        %v2495 = vrot.slane %v2494, 4
        %v2497 = vshll.u32 %v2323, 16
        %v2499 = vrot.slane %v2497, 5
        %v2500 = vsel %vm1112, %v2495, %v2499
        %v2502 = vshrl.u32 %v2299, 16
        %v2504 = vrot.slane %v2502, 4
        %v2505 = vshll.u32 %v2299, 16
        %v2507 = vrot.slane %v2505, 5
        %v2508 = vor.u32 %v2504, %v2507
        %v2509 = vrot.slane %v2508, 4
        %v2511 = vshll.u32 %v2300, 16
        %v2513 = vrot.slane %v2511, 5
        %v2514 = vsel %vm1112, %v2509, %v2513
        %v2515 = vshrl.u32 %v2300, 16
        %v2517 = vrot.slane %v2515, 4
        %v2518 = vor.u32 %v2517, %v2513
        %v2519 = vrot.slane %v2518, 4
        %v2521 = vshll.u32 %v2324, 16
        %v2523 = vrot.slane %v2521, 5
        %v2524 = vsel %vm1112, %v2519, %v2523
        %v2526 = vshrl.u32 %v2301, 16
        %v2528 = vrot.slane %v2526, 4
        %v2529 = vshll.u32 %v2301, 16
        %v2531 = vrot.slane %v2529, 5
        %v2532 = vor.u32 %v2528, %v2531
        %v2533 = vrot.slane %v2532, 4
        %v2535 = vshll.u32 %v2302, 16
        %v2537 = vrot.slane %v2535, 5
        %v2538 = vsel %vm1112, %v2533, %v2537
        %v2539 = vshrl.u32 %v2302, 16
        %v2541 = vrot.slane %v2539, 4
        %v2542 = vor.u32 %v2541, %v2537
        %v2543 = vrot.slane %v2542, 4
        %v2545 = vshll.u32 %v2325, 16
        %v2547 = vrot.slane %v2545, 5
        %v2548 = vsel %vm1112, %v2543, %v2547
        %v2550 = vshrl.u32 %v2303, 16
        %v2552 = vrot.slane %v2550, 4
        %v2553 = vshll.u32 %v2303, 16
        %v2555 = vrot.slane %v2553, 5
        %v2556 = vor.u32 %v2552, %v2555
        %v2557 = vrot.slane %v2556, 4
        %v2559 = vshll.u32 %v2304, 16
        %v2561 = vrot.slane %v2559, 5
        %v2562 = vsel %vm1112, %v2557, %v2561
        %v2563 = vshrl.u32 %v2304, 16
        %v2565 = vrot.slane %v2563, 4
        %v2566 = vor.u32 %v2565, %v2561
        %v2567 = vrot.slane %v2566, 4
        %v2569 = vshll.u32 %v2326, 16
        %v2571 = vrot.slane %v2569, 5
        %v2572 = vsel %vm1112, %v2567, %v2571
        %v2574 = vshrl.u32 %v2305, 16
        %v2576 = vrot.slane %v2574, 4
        %v2577 = vshll.u32 %v2305, 16
        %v2579 = vrot.slane %v2577, 5
        %v2580 = vor.u32 %v2576, %v2579
        %v2581 = vrot.slane %v2580, 4
        %v2583 = vshll.u32 %v2306, 16
        %v2585 = vrot.slane %v2583, 5
        %v2586 = vsel %vm1112, %v2581, %v2585
        %v2587 = vshrl.u32 %v2306, 16
        %v2589 = vrot.slane %v2587, 4
        %v2590 = vor.u32 %v2589, %v2585
        %v2591 = vrot.slane %v2590, 4
        %v2593 = vshll.u32 %v2327, 16
        %v2595 = vrot.slane %v2593, 5
        %v2596 = vsel %vm1112, %v2591, %v2595
        %v2598 = vshrl.u32 %v2307, 16
        %v2600 = vrot.slane %v2598, 4
        %v2601 = vshll.u32 %v2307, 16
        %v2603 = vrot.slane %v2601, 5
        %v2604 = vor.u32 %v2600, %v2603
        %v2605 = vrot.slane %v2604, 4
        %v2607 = vshll.u32 %v2308, 16
        %v2609 = vrot.slane %v2607, 5
        %v2610 = vsel %vm1112, %v2605, %v2609
        %v2611 = vshrl.u32 %v2308, 16
        %v2613 = vrot.slane %v2611, 4
        %v2614 = vor.u32 %v2613, %v2609
        %v2615 = vrot.slane %v2614, 4
        %v2617 = vshll.u32 %v2328, 16
        %v2619 = vrot.slane %v2617, 5
        %v2620 = vsel %vm1112, %v2615, %v2619
        %v2622 = vshrl.u32 %v2309, 16
        %v2624 = vrot.slane %v2622, 4
        %v2625 = vshll.u32 %v2309, 16
        %v2627 = vrot.slane %v2625, 5
        %v2628 = vor.u32 %v2624, %v2627
        %v2629 = vrot.slane %v2628, 4
        %v2631 = vshll.u32 %v2310, 16
        %v2633 = vrot.slane %v2631, 5
        %v2634 = vsel %vm1112, %v2629, %v2633
        %v2635 = vshrl.u32 %v2310, 16
        %v2637 = vrot.slane %v2635, 4
        %v2638 = vor.u32 %v2637, %v2633
        %v2639 = vrot.slane %v2638, 4
        %v2641 = vshll.u32 %v2329, 16
        %v2643 = vrot.slane %v2641, 5
        %v2644 = vsel %vm1112, %v2639, %v2643
        %v2646 = vshrl.u32 %v2311, 16
        %v2648 = vrot.slane %v2646, 4
        %v2649 = vshll.u32 %v2311, 16
        %v2651 = vrot.slane %v2649, 5
        %v2652 = vor.u32 %v2648, %v2651
        %v2653 = vrot.slane %v2652, 4
        %v2655 = vshll.u32 %v2312, 16
        %v2657 = vrot.slane %v2655, 5
        %v2658 = vsel %vm1112, %v2653, %v2657
        %v2659 = vshrl.u32 %v2312, 16
        %v2661 = vrot.slane %v2659, 4
        %v2662 = vor.u32 %v2661, %v2657
        %v2663 = vrot.slane %v2662, 4
        %v2665 = vshll.u32 %v2330, 16
        %v2667 = vrot.slane %v2665, 5
        %v2668 = vsel %vm1112, %v2663, %v2667
        %v2670 = vshrl.u32 %v2313, 16
        %v2672 = vrot.slane %v2670, 4
        %v2673 = vshll.u32 %v2313, 16
        %v2675 = vrot.slane %v2673, 5
        %v2676 = vor.u32 %v2672, %v2675
        %v2677 = vrot.slane %v2676, 4
        %v2679 = vshll.u32 %v2314, 16
        %v2681 = vrot.slane %v2679, 5
        %v2682 = vsel %vm1112, %v2677, %v2681
        %v2683 = vshrl.u32 %v2314, 16
        %v2685 = vrot.slane %v2683, 4
        %v2686 = vor.u32 %v2685, %v2681
        %v2687 = vrot.slane %v2686, 4
        %v2689 = vshll.u32 %v2331, 16
        %v2691 = vrot.slane %v2689, 5
        %v2692 = vsel %vm1112, %v2687, %v2691
        %v2694 = vshrl.u32 %v2315, 16
        %v2696 = vrot.slane %v2694, 4
        %v2697 = vshll.u32 %v2315, 16
        %v2699 = vrot.slane %v2697, 5
        %v2700 = vor.u32 %v2696, %v2699
        %v2701 = vrot.slane %v2700, 4
        %v2703 = vshll.u32 %v2316, 16
        %v2705 = vrot.slane %v2703, 5
        %v2706 = vsel %vm1112, %v2701, %v2705
        %v2707 = vshrl.u32 %v2316, 16
        %v2709 = vrot.slane %v2707, 4
        %v2710 = vor.u32 %v2709, %v2705
        %v2711 = vrot.slane %v2710, 4
        %v2713 = vshll.u32 %v2332, 16
        %v2715 = vrot.slane %v2713, 5
        %v2716 = vsel %vm1112, %v2711, %v2715
        %v2717 = vld [vmem:[%s2284] sm:$0xe]
        %v2718 = vld [vmem:[%s2284 + $0xc] sm:$0xe]
        %v2719 = vld [vmem:[%s2284 + $0x18] sm:$0xe]
        %v2720 = vld [vmem:[%s2284 + $0x24] sm:$0xe]
        %v2721 = vld [vmem:[%s2284 + $0x30] sm:$0xe]
        %v2722 = vld [vmem:[%s2284 + $0x3c] sm:$0xe]
        %v2723 = vld [vmem:[%s2284 + $0x48] sm:$0xe]
        %v2724 = vld [vmem:[%s2284 + $0x54] sm:$0xe]
        %v2725 = vld [vmem:[%s2284 + $0x60] sm:$0xe]
        %v2726 = vld [vmem:[%s2284 + $0x6c] sm:$0xe]
        %v2727 = vld [vmem:[%s2284 + $0x78] sm:$0xe]
        %v2728 = vld [vmem:[%s2284 + $0x84] sm:$0xe]
        %v2729 = vld [vmem:[%s2284 + $0x90] sm:$0xe]
        %v2730 = vld [vmem:[%s2284 + $0x9c] sm:$0xe]
        %v2731 = vld [vmem:[%s2284 + $0xa8] sm:$0xe]
        %v2732 = vld [vmem:[%s2284 + $0xb4] sm:$0xe]
        %v2781 = vrot.slane %v2717, 5
        %v2782 = vrot.slane %v2781, 4
        %v2783 = vrot.slane %v2286, 5
        %v2784 = vsel %vm1563, %v2782, %v2783
        %v2785 = vrot.slane %v2783, 4
        %v2786 = vrot.slane %v2317, 5
        %v2787 = vsel %vm1563, %v2785, %v2786
        %v2788 = vrot.slane %v2718, 5
        %v2789 = vrot.slane %v2788, 4
        %v2790 = vrot.slane %v2288, 5
        %v2791 = vsel %vm1563, %v2789, %v2790
        %v2792 = vrot.slane %v2790, 4
        %v2793 = vrot.slane %v2318, 5
        %v2794 = vsel %vm1563, %v2792, %v2793
        %v2795 = vrot.slane %v2719, 5
        %v2796 = vrot.slane %v2795, 4
        %v2797 = vrot.slane %v2290, 5
        %v2798 = vsel %vm1563, %v2796, %v2797
        %v2799 = vrot.slane %v2797, 4
        %v2800 = vrot.slane %v2319, 5
        %v2801 = vsel %vm1563, %v2799, %v2800
        %v2802 = vrot.slane %v2720, 5
        %v2803 = vrot.slane %v2802, 4
        %v2804 = vrot.slane %v2292, 5
        %v2805 = vsel %vm1563, %v2803, %v2804
        %v2806 = vrot.slane %v2804, 4
        %v2807 = vrot.slane %v2320, 5
        %v2808 = vsel %vm1563, %v2806, %v2807
        %v2809 = vrot.slane %v2721, 5
        %v2810 = vrot.slane %v2809, 4
        %v2811 = vrot.slane %v2294, 5
        %v2812 = vsel %vm1563, %v2810, %v2811
        %v2813 = vrot.slane %v2811, 4
        %v2814 = vrot.slane %v2321, 5
        %v2815 = vsel %vm1563, %v2813, %v2814
        %v2816 = vrot.slane %v2722, 5
        %v2817 = vrot.slane %v2816, 4
        %v2818 = vrot.slane %v2296, 5
        %v2819 = vsel %vm1563, %v2817, %v2818
        %v2820 = vrot.slane %v2818, 4
        %v2821 = vrot.slane %v2322, 5
        %v2822 = vsel %vm1563, %v2820, %v2821
        %v2823 = vrot.slane %v2723, 5
        %v2824 = vrot.slane %v2823, 4
        %v2825 = vrot.slane %v2298, 5
        %v2826 = vsel %vm1563, %v2824, %v2825
        %v2827 = vrot.slane %v2825, 4
        %v2828 = vrot.slane %v2323, 5
        %v2829 = vsel %vm1563, %v2827, %v2828
        %v2830 = vrot.slane %v2724, 5
        %v2831 = vrot.slane %v2830, 4
        %v2832 = vrot.slane %v2300, 5
        %v2833 = vsel %vm1563, %v2831, %v2832
        %v2834 = vrot.slane %v2832, 4
        %v2835 = vrot.slane %v2324, 5
        %v2836 = vsel %vm1563, %v2834, %v2835
        %v2837 = vrot.slane %v2725, 5
        %v2838 = vrot.slane %v2837, 4
        %v2839 = vrot.slane %v2302, 5
        %v2840 = vsel %vm1563, %v2838, %v2839
        %v2841 = vrot.slane %v2839, 4
        %v2842 = vrot.slane %v2325, 5
        %v2843 = vsel %vm1563, %v2841, %v2842
        %v2844 = vrot.slane %v2726, 5
        %v2845 = vrot.slane %v2844, 4
        %v2846 = vrot.slane %v2304, 5
        %v2847 = vsel %vm1563, %v2845, %v2846
        %v2848 = vrot.slane %v2846, 4
        %v2849 = vrot.slane %v2326, 5
        %v2850 = vsel %vm1563, %v2848, %v2849
        %v2851 = vrot.slane %v2727, 5
        %v2852 = vrot.slane %v2851, 4
        %v2853 = vrot.slane %v2306, 5
        %v2854 = vsel %vm1563, %v2852, %v2853
        %v2855 = vrot.slane %v2853, 4
        %v2856 = vrot.slane %v2327, 5
        %v2857 = vsel %vm1563, %v2855, %v2856
        %v2858 = vrot.slane %v2728, 5
        %v2859 = vrot.slane %v2858, 4
        %v2860 = vrot.slane %v2308, 5
        %v2861 = vsel %vm1563, %v2859, %v2860
        %v2862 = vrot.slane %v2860, 4
        %v2863 = vrot.slane %v2328, 5
        %v2864 = vsel %vm1563, %v2862, %v2863
        %v2865 = vrot.slane %v2729, 5
        %v2866 = vrot.slane %v2865, 4
        %v2867 = vrot.slane %v2310, 5
        %v2868 = vsel %vm1563, %v2866, %v2867
        %v2869 = vrot.slane %v2867, 4
        %v2870 = vrot.slane %v2329, 5
        %v2871 = vsel %vm1563, %v2869, %v2870
        %v2872 = vrot.slane %v2730, 5
        %v2873 = vrot.slane %v2872, 4
        %v2874 = vrot.slane %v2312, 5
        %v2875 = vsel %vm1563, %v2873, %v2874
        %v2876 = vrot.slane %v2874, 4
        %v2877 = vrot.slane %v2330, 5
        %v2878 = vsel %vm1563, %v2876, %v2877
        %v2879 = vrot.slane %v2731, 5
        %v2880 = vrot.slane %v2879, 4
        %v2881 = vrot.slane %v2314, 5
        %v2882 = vsel %vm1563, %v2880, %v2881
        %v2883 = vrot.slane %v2881, 4
        %v2884 = vrot.slane %v2331, 5
        %v2885 = vsel %vm1563, %v2883, %v2884
        %v2886 = vrot.slane %v2732, 5
        %v2887 = vrot.slane %v2886, 4
        %v2888 = vrot.slane %v2316, 5
        %v2889 = vsel %vm1563, %v2887, %v2888
        %v2890 = vrot.slane %v2888, 4
        %v2891 = vrot.slane %v2332, 5
        %v2892 = vsel %vm1563, %v2890, %v2891
        %v2909 = vunpack.c.l.b16 %v1062
        %v2910 = vunpack.c.l.b16 %v1063
        %v2911 = vunpack.c.l.b16 %v1064
        %v2912 = vunpack.c.l.b16 %v1065
        %v2913 = vunpack.c.l.b16 %v1066
        %v2914 = vunpack.c.l.b16 %v1067
        %v2915 = vunpack.c.l.b16 %v1068
        %v2916 = vunpack.c.l.b16 %v1069
        %v2917 = vunpack.c.l.b16 %v1070
        %v2918 = vunpack.c.l.b16 %v1071
        %v2919 = vunpack.c.l.b16 %v1072
        %v2920 = vunpack.c.l.b16 %v1073
        %v2921 = vunpack.c.l.b16 %v1074
        %v2922 = vunpack.c.l.b16 %v1075
        %v2923 = vunpack.c.l.b16 %v1076
        %v2924 = vunpack.c.l.b16 %v1077
        %v2925 = vunpack.c.l.b16 %v1078
        %v2926 = vunpack.c.l.b16 %v1079
        %v2927 = vunpack.c.l.b16 %v1080
        %v2928 = vunpack.c.l.b16 %v1081
        %v2929 = vunpack.c.l.b16 %v1082
        %v2930 = vunpack.c.l.b16 %v1083
        %v2931 = vunpack.c.l.b16 %v1084
        %v2932 = vunpack.c.l.b16 %v1085
        %v2933 = vunpack.c.l.b16 %v1086
        %v2934 = vunpack.c.l.b16 %v1087
        %v2935 = vunpack.c.l.b16 %v1088
        %v2936 = vunpack.c.l.b16 %v1089
        %v2937 = vunpack.c.l.b16 %v1090
        %v2938 = vunpack.c.l.b16 %v1091
        %v2939 = vunpack.c.l.b16 %v1092
        %v2940 = vunpack.c.l.b16 %v1093
        %v2941 = vpack.c.b16 %v2910, %v2909
        %v2942 = vpack.c.b16 %v2912, %v2911
        %v2943 = vpack.c.b16 %v2914, %v2913
        %v2944 = vpack.c.b16 %v2916, %v2915
        %v2945 = vpack.c.b16 %v2918, %v2917
        %v2946 = vpack.c.b16 %v2920, %v2919
        %v2947 = vpack.c.b16 %v2922, %v2921
        %v2948 = vpack.c.b16 %v2924, %v2923
        %v2949 = vpack.c.b16 %v2926, %v2925
        %v2950 = vpack.c.b16 %v2928, %v2927
        %v2951 = vpack.c.b16 %v2930, %v2929
        %v2952 = vpack.c.b16 %v2932, %v2931
        %v2953 = vpack.c.b16 %v2934, %v2933
        %v2954 = vpack.c.b16 %v2936, %v2935
        %v2955 = vpack.c.b16 %v2938, %v2937
        %v2956 = vpack.c.b16 %v2940, %v2939
        %v2957 = vunpack.c.l.b16 %v1126
        %v2958 = vunpack.c.l.b16 %v1136
        %v2959 = vunpack.c.l.b16 %v1150
        %v2960 = vunpack.c.l.b16 %v1160
        %v2961 = vunpack.c.l.b16 %v1174
        %v2962 = vunpack.c.l.b16 %v1184
        %v2963 = vunpack.c.l.b16 %v1198
        %v2964 = vunpack.c.l.b16 %v1208
        %v2965 = vunpack.c.l.b16 %v1222
        %v2966 = vunpack.c.l.b16 %v1232
        %v2967 = vunpack.c.l.b16 %v1246
        %v2968 = vunpack.c.l.b16 %v1256
        %v2969 = vunpack.c.l.b16 %v1270
        %v2970 = vunpack.c.l.b16 %v1280
        %v2971 = vunpack.c.l.b16 %v1294
        %v2972 = vunpack.c.l.b16 %v1304
        %v2973 = vunpack.c.l.b16 %v1318
        %v2974 = vunpack.c.l.b16 %v1328
        %v2975 = vunpack.c.l.b16 %v1342
        %v2976 = vunpack.c.l.b16 %v1352
        %v2977 = vunpack.c.l.b16 %v1366
        %v2978 = vunpack.c.l.b16 %v1376
        %v2979 = vunpack.c.l.b16 %v1390
        %v2980 = vunpack.c.l.b16 %v1400
        %v2981 = vunpack.c.l.b16 %v1414
        %v2982 = vunpack.c.l.b16 %v1424
        %v2983 = vunpack.c.l.b16 %v1438
        %v2984 = vunpack.c.l.b16 %v1448
        %v2985 = vunpack.c.l.b16 %v1462
        %v2986 = vunpack.c.l.b16 %v1472
        %v2987 = vunpack.c.l.b16 %v1486
        %v2988 = vunpack.c.l.b16 %v1496
        %v2989 = vpack.c.b16 %v2958, %v2957
        %v2990 = vpack.c.b16 %v2960, %v2959
        %v2991 = vpack.c.b16 %v2962, %v2961
        %v2992 = vpack.c.b16 %v2964, %v2963
        %v2993 = vpack.c.b16 %v2966, %v2965
        %v2994 = vpack.c.b16 %v2968, %v2967
        %v2995 = vpack.c.b16 %v2970, %v2969
        %v2996 = vpack.c.b16 %v2972, %v2971
        %v2997 = vpack.c.b16 %v2974, %v2973
        %v2998 = vpack.c.b16 %v2976, %v2975
        %v2999 = vpack.c.b16 %v2978, %v2977
        %v3000 = vpack.c.b16 %v2980, %v2979
        %v3001 = vpack.c.b16 %v2982, %v2981
        %v3002 = vpack.c.b16 %v2984, %v2983
        %v3003 = vpack.c.b16 %v2986, %v2985
        %v3004 = vpack.c.b16 %v2988, %v2987
        %3005 = vrot.lane.b32.xlu0 %v2989, 4
        %v3006 = vpop.permute.xlu0 %3005
        %3007 = vrot.lane.b32.xlu0 %v2990, 4
        %v3008 = vpop.permute.xlu0 %3007
        %3009 = vrot.lane.b32.xlu0 %v2991, 4
        %v3010 = vpop.permute.xlu0 %3009
        %3011 = vrot.lane.b32.xlu0 %v2992, 4
        %v3012 = vpop.permute.xlu0 %3011
        %3013 = vrot.lane.b32.xlu0 %v2993, 4
        %v3014 = vpop.permute.xlu0 %3013
        %3015 = vrot.lane.b32.xlu0 %v2994, 4
        %v3016 = vpop.permute.xlu0 %3015
        %3017 = vrot.lane.b32.xlu0 %v2995, 4
        %v3018 = vpop.permute.xlu0 %3017
        %3019 = vrot.lane.b32.xlu0 %v2996, 4
        %v3020 = vpop.permute.xlu0 %3019
        %3021 = vrot.lane.b32.xlu0 %v2997, 4
        %v3022 = vpop.permute.xlu0 %3021
        %3023 = vrot.lane.b32.xlu0 %v2998, 4
        %v3024 = vpop.permute.xlu0 %3023
        %3025 = vrot.lane.b32.xlu0 %v2999, 4
        %v3026 = vpop.permute.xlu0 %3025
        %3027 = vrot.lane.b32.xlu0 %v3000, 4
        %v3028 = vpop.permute.xlu0 %3027
        %3029 = vrot.lane.b32.xlu0 %v3001, 4
        %v3030 = vpop.permute.xlu0 %3029
        %3031 = vrot.lane.b32.xlu0 %v3002, 4
        %v3032 = vpop.permute.xlu0 %3031
        %3033 = vrot.lane.b32.xlu0 %v3003, 4
        %v3034 = vpop.permute.xlu0 %3033
        %3035 = vrot.lane.b32.xlu0 %v3004, 4
        %v3036 = vpop.permute.xlu0 %3035
        %v3037 = vunpack.c.l.b16 %v1567
        %v3038 = vunpack.c.l.b16 %v1570
        %v3039 = vunpack.c.l.b16 %v1574
        %v3040 = vunpack.c.l.b16 %v1577
        %v3041 = vunpack.c.l.b16 %v1581
        %v3042 = vunpack.c.l.b16 %v1584
        %v3043 = vunpack.c.l.b16 %v1588
        %v3044 = vunpack.c.l.b16 %v1591
        %v3045 = vunpack.c.l.b16 %v1595
        %v3046 = vunpack.c.l.b16 %v1598
        %v3047 = vunpack.c.l.b16 %v1602
        %v3048 = vunpack.c.l.b16 %v1605
        %v3049 = vunpack.c.l.b16 %v1609
        %v3050 = vunpack.c.l.b16 %v1612
        %v3051 = vunpack.c.l.b16 %v1616
        %v3052 = vunpack.c.l.b16 %v1619
        %v3053 = vunpack.c.l.b16 %v1623
        %v3054 = vunpack.c.l.b16 %v1626
        %v3055 = vunpack.c.l.b16 %v1630
        %v3056 = vunpack.c.l.b16 %v1633
        %v3057 = vunpack.c.l.b16 %v1637
        %v3058 = vunpack.c.l.b16 %v1640
        %v3059 = vunpack.c.l.b16 %v1644
        %v3060 = vunpack.c.l.b16 %v1647
        %v3061 = vunpack.c.l.b16 %v1651
        %v3062 = vunpack.c.l.b16 %v1654
        %v3063 = vunpack.c.l.b16 %v1658
        %v3064 = vunpack.c.l.b16 %v1661
        %v3065 = vunpack.c.l.b16 %v1665
        %v3066 = vunpack.c.l.b16 %v1668
        %v3067 = vunpack.c.l.b16 %v1672
        %v3068 = vunpack.c.l.b16 %v1675
        %v3069 = vpack.c.b16 %v3038, %v3037
        %v3070 = vpack.c.b16 %v3040, %v3039
        %v3071 = vpack.c.b16 %v3042, %v3041
        %v3072 = vpack.c.b16 %v3044, %v3043
        %v3073 = vpack.c.b16 %v3046, %v3045
        %v3074 = vpack.c.b16 %v3048, %v3047
        %v3075 = vpack.c.b16 %v3050, %v3049
        %v3076 = vpack.c.b16 %v3052, %v3051
        %v3077 = vpack.c.b16 %v3054, %v3053
        %v3078 = vpack.c.b16 %v3056, %v3055
        %v3079 = vpack.c.b16 %v3058, %v3057
        %v3080 = vpack.c.b16 %v3060, %v3059
        %v3081 = vpack.c.b16 %v3062, %v3061
        %v3082 = vpack.c.b16 %v3064, %v3063
        %v3083 = vpack.c.b16 %v3066, %v3065
        %v3084 = vpack.c.b16 %v3068, %v3067
        %3085 = vrot.lane.b32.xlu0 %v3069, 8
        %v3086 = vpop.permute.xlu0 %3085
        %3087 = vrot.lane.b32.xlu0 %v3070, 8
        %v3088 = vpop.permute.xlu0 %3087
        %3089 = vrot.lane.b32.xlu0 %v3071, 8
        %v3090 = vpop.permute.xlu0 %3089
        %3091 = vrot.lane.b32.xlu0 %v3072, 8
        %v3092 = vpop.permute.xlu0 %3091
        %3093 = vrot.lane.b32.xlu0 %v3073, 8
        %v3094 = vpop.permute.xlu0 %3093
        %3095 = vrot.lane.b32.xlu0 %v3074, 8
        %v3096 = vpop.permute.xlu0 %3095
        %3097 = vrot.lane.b32.xlu0 %v3075, 8
        %v3098 = vpop.permute.xlu0 %3097
        %3099 = vrot.lane.b32.xlu0 %v3076, 8
        %v3100 = vpop.permute.xlu0 %3099
        %3101 = vrot.lane.b32.xlu0 %v3077, 8
        %v3102 = vpop.permute.xlu0 %3101
        %3103 = vrot.lane.b32.xlu0 %v3078, 8
        %v3104 = vpop.permute.xlu0 %3103
        %3105 = vrot.lane.b32.xlu0 %v3079, 8
        %v3106 = vpop.permute.xlu0 %3105
        %3107 = vrot.lane.b32.xlu0 %v3080, 8
        %v3108 = vpop.permute.xlu0 %3107
        %3109 = vrot.lane.b32.xlu0 %v3081, 8
        %v3110 = vpop.permute.xlu0 %3109
        %3111 = vrot.lane.b32.xlu0 %v3082, 8
        %v3112 = vpop.permute.xlu0 %3111
        %3113 = vrot.lane.b32.xlu0 %v3083, 8
        %v3114 = vpop.permute.xlu0 %3113
        %3115 = vrot.lane.b32.xlu0 %v3084, 8
        %v3116 = vpop.permute.xlu0 %3115
        %v3133 = vunpack.c.l.b16 %v1676
        %v3134 = vunpack.c.l.b16 %v1677
        %v3135 = vunpack.c.l.b16 %v1678
        %v3136 = vunpack.c.l.b16 %v1679
        %v3137 = vunpack.c.l.b16 %v1680
        %v3138 = vunpack.c.l.b16 %v1681
        %v3139 = vunpack.c.l.b16 %v1682
        %v3140 = vunpack.c.l.b16 %v1683
        %v3141 = vunpack.c.l.b16 %v1684
        %v3142 = vunpack.c.l.b16 %v1685
        %v3143 = vunpack.c.l.b16 %v1686
        %v3144 = vunpack.c.l.b16 %v1687
        %v3145 = vunpack.c.l.b16 %v1688
        %v3146 = vunpack.c.l.b16 %v1689
        %v3147 = vunpack.c.l.b16 %v1690
        %v3148 = vunpack.c.l.b16 %v1691
        %v3149 = vunpack.c.l.b16 %v1692
        %v3150 = vunpack.c.l.b16 %v1693
        %v3151 = vunpack.c.l.b16 %v1694
        %v3152 = vunpack.c.l.b16 %v1695
        %v3153 = vunpack.c.l.b16 %v1696
        %v3154 = vunpack.c.l.b16 %v1697
        %v3155 = vunpack.c.l.b16 %v1698
        %v3156 = vunpack.c.l.b16 %v1699
        %v3157 = vunpack.c.l.b16 %v1700
        %v3158 = vunpack.c.l.b16 %v1701
        %v3159 = vunpack.c.l.b16 %v1702
        %v3160 = vunpack.c.l.b16 %v1703
        %v3161 = vunpack.c.l.b16 %v1704
        %v3162 = vunpack.c.l.b16 %v1705
        %v3163 = vunpack.c.l.b16 %v1706
        %v3164 = vunpack.c.l.b16 %v1707
        %v3165 = vpack.c.b16 %v3134, %v3133
        %v3166 = vpack.c.b16 %v3136, %v3135
        %v3167 = vpack.c.b16 %v3138, %v3137
        %v3168 = vpack.c.b16 %v3140, %v3139
        %v3169 = vpack.c.b16 %v3142, %v3141
        %v3170 = vpack.c.b16 %v3144, %v3143
        %v3171 = vpack.c.b16 %v3146, %v3145
        %v3172 = vpack.c.b16 %v3148, %v3147
        %v3173 = vpack.c.b16 %v3150, %v3149
        %v3174 = vpack.c.b16 %v3152, %v3151
        %v3175 = vpack.c.b16 %v3154, %v3153
        %v3176 = vpack.c.b16 %v3156, %v3155
        %v3177 = vpack.c.b16 %v3158, %v3157
        %v3178 = vpack.c.b16 %v3160, %v3159
        %v3179 = vpack.c.b16 %v3162, %v3161
        %v3180 = vpack.c.b16 %v3164, %v3163
        %3181 = vrot.lane.b32.xlu0 %v3165, 12
        %v3182 = vpop.permute.xlu0 %3181
        %3183 = vrot.lane.b32.xlu0 %v3166, 12
        %v3184 = vpop.permute.xlu0 %3183
        %3185 = vrot.lane.b32.xlu0 %v3167, 12
        %v3186 = vpop.permute.xlu0 %3185
        %3187 = vrot.lane.b32.xlu0 %v3168, 12
        %v3188 = vpop.permute.xlu0 %3187
        %3189 = vrot.lane.b32.xlu0 %v3169, 12
        %v3190 = vpop.permute.xlu0 %3189
        %3191 = vrot.lane.b32.xlu0 %v3170, 12
        %v3192 = vpop.permute.xlu0 %3191
        %3193 = vrot.lane.b32.xlu0 %v3171, 12
        %v3194 = vpop.permute.xlu0 %3193
        %3195 = vrot.lane.b32.xlu0 %v3172, 12
        %v3196 = vpop.permute.xlu0 %3195
        %3197 = vrot.lane.b32.xlu0 %v3173, 12
        %v3198 = vpop.permute.xlu0 %3197
        %3199 = vrot.lane.b32.xlu0 %v3174, 12
        %v3200 = vpop.permute.xlu0 %3199
        %3201 = vrot.lane.b32.xlu0 %v3175, 12
        %v3202 = vpop.permute.xlu0 %3201
        %3203 = vrot.lane.b32.xlu0 %v3176, 12
        %v3204 = vpop.permute.xlu0 %3203
        %3205 = vrot.lane.b32.xlu0 %v3177, 12
        %v3206 = vpop.permute.xlu0 %3205
        %3207 = vrot.lane.b32.xlu0 %v3178, 12
        %v3208 = vpop.permute.xlu0 %3207
        %3209 = vrot.lane.b32.xlu0 %v3179, 12
        %v3210 = vpop.permute.xlu0 %3209
        %3211 = vrot.lane.b32.xlu0 %v3180, 12
        %v3212 = vpop.permute.xlu0 %3211
        %v3213 = vunpack.c.l.b16 %v1737
        %v3214 = vunpack.c.l.b16 %v1747
        %v3215 = vunpack.c.l.b16 %v1761
        %v3216 = vunpack.c.l.b16 %v1771
        %v3217 = vunpack.c.l.b16 %v1785
        %v3218 = vunpack.c.l.b16 %v1795
        %v3219 = vunpack.c.l.b16 %v1809
        %v3220 = vunpack.c.l.b16 %v1819
        %v3221 = vunpack.c.l.b16 %v1833
        %v3222 = vunpack.c.l.b16 %v1843
        %v3223 = vunpack.c.l.b16 %v1857
        %v3224 = vunpack.c.l.b16 %v1867
        %v3225 = vunpack.c.l.b16 %v1881
        %v3226 = vunpack.c.l.b16 %v1891
        %v3227 = vunpack.c.l.b16 %v1905
        %v3228 = vunpack.c.l.b16 %v1915
        %v3229 = vunpack.c.l.b16 %v1929
        %v3230 = vunpack.c.l.b16 %v1939
        %v3231 = vunpack.c.l.b16 %v1953
        %v3232 = vunpack.c.l.b16 %v1963
        %v3233 = vunpack.c.l.b16 %v1977
        %v3234 = vunpack.c.l.b16 %v1987
        %v3235 = vunpack.c.l.b16 %v2001
        %v3236 = vunpack.c.l.b16 %v2011
        %v3237 = vunpack.c.l.b16 %v2025
        %v3238 = vunpack.c.l.b16 %v2035
        %v3239 = vunpack.c.l.b16 %v2049
        %v3240 = vunpack.c.l.b16 %v2059
        %v3241 = vunpack.c.l.b16 %v2073
        %v3242 = vunpack.c.l.b16 %v2083
        %v3243 = vunpack.c.l.b16 %v2097
        %v3244 = vunpack.c.l.b16 %v2107
        %v3245 = vpack.c.b16 %v3214, %v3213
        %v3246 = vpack.c.b16 %v3216, %v3215
        %v3247 = vpack.c.b16 %v3218, %v3217
        %v3248 = vpack.c.b16 %v3220, %v3219
        %v3249 = vpack.c.b16 %v3222, %v3221
        %v3250 = vpack.c.b16 %v3224, %v3223
        %v3251 = vpack.c.b16 %v3226, %v3225
        %v3252 = vpack.c.b16 %v3228, %v3227
        %v3253 = vpack.c.b16 %v3230, %v3229
        %v3254 = vpack.c.b16 %v3232, %v3231
        %v3255 = vpack.c.b16 %v3234, %v3233
        %v3256 = vpack.c.b16 %v3236, %v3235
        %v3257 = vpack.c.b16 %v3238, %v3237
        %v3258 = vpack.c.b16 %v3240, %v3239
        %v3259 = vpack.c.b16 %v3242, %v3241
        %v3260 = vpack.c.b16 %v3244, %v3243
        %3261 = vrot.lane.b32.xlu0 %v3245, 16
        %v3262 = vpop.permute.xlu0 %3261
        %3263 = vrot.lane.b32.xlu0 %v3246, 16
        %v3264 = vpop.permute.xlu0 %3263
        %3265 = vrot.lane.b32.xlu0 %v3247, 16
        %v3266 = vpop.permute.xlu0 %3265
        %3267 = vrot.lane.b32.xlu0 %v3248, 16
        %v3268 = vpop.permute.xlu0 %3267
        %3269 = vrot.lane.b32.xlu0 %v3249, 16
        %v3270 = vpop.permute.xlu0 %3269
        %3271 = vrot.lane.b32.xlu0 %v3250, 16
        %v3272 = vpop.permute.xlu0 %3271
        %3273 = vrot.lane.b32.xlu0 %v3251, 16
        %v3274 = vpop.permute.xlu0 %3273
        %3275 = vrot.lane.b32.xlu0 %v3252, 16
        %v3276 = vpop.permute.xlu0 %3275
        %3277 = vrot.lane.b32.xlu0 %v3253, 16
        %v3278 = vpop.permute.xlu0 %3277
        %3279 = vrot.lane.b32.xlu0 %v3254, 16
        %v3280 = vpop.permute.xlu0 %3279
        %3281 = vrot.lane.b32.xlu0 %v3255, 16
        %v3282 = vpop.permute.xlu0 %3281
        %3283 = vrot.lane.b32.xlu0 %v3256, 16
        %v3284 = vpop.permute.xlu0 %3283
        %3285 = vrot.lane.b32.xlu0 %v3257, 16
        %v3286 = vpop.permute.xlu0 %3285
        %3287 = vrot.lane.b32.xlu0 %v3258, 16
        %v3288 = vpop.permute.xlu0 %3287
        %3289 = vrot.lane.b32.xlu0 %v3259, 16
        %v3290 = vpop.permute.xlu0 %3289
        %3291 = vrot.lane.b32.xlu0 %v3260, 16
        %v3292 = vpop.permute.xlu0 %3291
        %v3293 = vunpack.c.l.b16 %v2175
        %v3294 = vunpack.c.l.b16 %v2178
        %v3295 = vunpack.c.l.b16 %v2182
        %v3296 = vunpack.c.l.b16 %v2185
        %v3297 = vunpack.c.l.b16 %v2189
        %v3298 = vunpack.c.l.b16 %v2192
        %v3299 = vunpack.c.l.b16 %v2196
        %v3300 = vunpack.c.l.b16 %v2199
        %v3301 = vunpack.c.l.b16 %v2203
        %v3302 = vunpack.c.l.b16 %v2206
        %v3303 = vunpack.c.l.b16 %v2210
        %v3304 = vunpack.c.l.b16 %v2213
        %v3305 = vunpack.c.l.b16 %v2217
        %v3306 = vunpack.c.l.b16 %v2220
        %v3307 = vunpack.c.l.b16 %v2224
        %v3308 = vunpack.c.l.b16 %v2227
        %v3309 = vunpack.c.l.b16 %v2231
        %v3310 = vunpack.c.l.b16 %v2234
        %v3311 = vunpack.c.l.b16 %v2238
        %v3312 = vunpack.c.l.b16 %v2241
        %v3313 = vunpack.c.l.b16 %v2245
        %v3314 = vunpack.c.l.b16 %v2248
        %v3315 = vunpack.c.l.b16 %v2252
        %v3316 = vunpack.c.l.b16 %v2255
        %v3317 = vunpack.c.l.b16 %v2259
        %v3318 = vunpack.c.l.b16 %v2262
        %v3319 = vunpack.c.l.b16 %v2266
        %v3320 = vunpack.c.l.b16 %v2269
        %v3321 = vunpack.c.l.b16 %v2273
        %v3322 = vunpack.c.l.b16 %v2276
        %v3323 = vunpack.c.l.b16 %v2280
        %v3324 = vunpack.c.l.b16 %v2283
        %v3325 = vpack.c.b16 %v3294, %v3293
        %v3326 = vpack.c.b16 %v3296, %v3295
        %v3327 = vpack.c.b16 %v3298, %v3297
        %v3328 = vpack.c.b16 %v3300, %v3299
        %v3329 = vpack.c.b16 %v3302, %v3301
        %v3330 = vpack.c.b16 %v3304, %v3303
        %v3331 = vpack.c.b16 %v3306, %v3305
        %v3332 = vpack.c.b16 %v3308, %v3307
        %v3333 = vpack.c.b16 %v3310, %v3309
        %v3334 = vpack.c.b16 %v3312, %v3311
        %v3335 = vpack.c.b16 %v3314, %v3313
        %v3336 = vpack.c.b16 %v3316, %v3315
        %v3337 = vpack.c.b16 %v3318, %v3317
        %v3338 = vpack.c.b16 %v3320, %v3319
        %v3339 = vpack.c.b16 %v3322, %v3321
        %v3340 = vpack.c.b16 %v3324, %v3323
        %3341 = vrot.lane.b32.xlu0 %v3325, 20
        %v3342 = vpop.permute.xlu0 %3341
        %3343 = vrot.lane.b32.xlu0 %v3326, 20
        %v3344 = vpop.permute.xlu0 %3343
        %3345 = vrot.lane.b32.xlu0 %v3327, 20
        %v3346 = vpop.permute.xlu0 %3345
        %3347 = vrot.lane.b32.xlu0 %v3328, 20
        %v3348 = vpop.permute.xlu0 %3347
        %3349 = vrot.lane.b32.xlu0 %v3329, 20
        %v3350 = vpop.permute.xlu0 %3349
        %3351 = vrot.lane.b32.xlu0 %v3330, 20
        %v3352 = vpop.permute.xlu0 %3351
        %3353 = vrot.lane.b32.xlu0 %v3331, 20
        %v3354 = vpop.permute.xlu0 %3353
        %3355 = vrot.lane.b32.xlu0 %v3332, 20
        %v3356 = vpop.permute.xlu0 %3355
        %3357 = vrot.lane.b32.xlu0 %v3333, 20
        %v3358 = vpop.permute.xlu0 %3357
        %3359 = vrot.lane.b32.xlu0 %v3334, 20
        %v3360 = vpop.permute.xlu0 %3359
        %3361 = vrot.lane.b32.xlu0 %v3335, 20
        %v3362 = vpop.permute.xlu0 %3361
        %3363 = vrot.lane.b32.xlu0 %v3336, 20
        %v3364 = vpop.permute.xlu0 %3363
        %3365 = vrot.lane.b32.xlu0 %v3337, 20
        %v3366 = vpop.permute.xlu0 %3365
        %3367 = vrot.lane.b32.xlu0 %v3338, 20
        %v3368 = vpop.permute.xlu0 %3367
        %3369 = vrot.lane.b32.xlu0 %v3339, 20
        %v3370 = vpop.permute.xlu0 %3369
        %3371 = vrot.lane.b32.xlu0 %v3340, 20
        %v3372 = vpop.permute.xlu0 %3371
        %v3389 = vunpack.c.l.b16 %v2285
        %v3390 = vunpack.c.l.b16 %v2286
        %v3391 = vunpack.c.l.b16 %v2287
        %v3392 = vunpack.c.l.b16 %v2288
        %v3393 = vunpack.c.l.b16 %v2289
        %v3394 = vunpack.c.l.b16 %v2290
        %v3395 = vunpack.c.l.b16 %v2291
        %v3396 = vunpack.c.l.b16 %v2292
        %v3397 = vunpack.c.l.b16 %v2293
        %v3398 = vunpack.c.l.b16 %v2294
        %v3399 = vunpack.c.l.b16 %v2295
        %v3400 = vunpack.c.l.b16 %v2296
        %v3401 = vunpack.c.l.b16 %v2297
        %v3402 = vunpack.c.l.b16 %v2298
        %v3403 = vunpack.c.l.b16 %v2299
        %v3404 = vunpack.c.l.b16 %v2300
        %v3405 = vunpack.c.l.b16 %v2301
        %v3406 = vunpack.c.l.b16 %v2302
        %v3407 = vunpack.c.l.b16 %v2303
        %v3408 = vunpack.c.l.b16 %v2304
        %v3409 = vunpack.c.l.b16 %v2305
        %v3410 = vunpack.c.l.b16 %v2306
        %v3411 = vunpack.c.l.b16 %v2307
        %v3412 = vunpack.c.l.b16 %v2308
        %v3413 = vunpack.c.l.b16 %v2309
        %v3414 = vunpack.c.l.b16 %v2310
        %v3415 = vunpack.c.l.b16 %v2311
        %v3416 = vunpack.c.l.b16 %v2312
        %v3417 = vunpack.c.l.b16 %v2313
        %v3418 = vunpack.c.l.b16 %v2314
        %v3419 = vunpack.c.l.b16 %v2315
        %v3420 = vunpack.c.l.b16 %v2316
        %v3421 = vpack.c.b16 %v3390, %v3389
        %v3422 = vpack.c.b16 %v3392, %v3391
        %v3423 = vpack.c.b16 %v3394, %v3393
        %v3424 = vpack.c.b16 %v3396, %v3395
        %v3425 = vpack.c.b16 %v3398, %v3397
        %v3426 = vpack.c.b16 %v3400, %v3399
        %v3427 = vpack.c.b16 %v3402, %v3401
        %v3428 = vpack.c.b16 %v3404, %v3403
        %v3429 = vpack.c.b16 %v3406, %v3405
        %v3430 = vpack.c.b16 %v3408, %v3407
        %v3431 = vpack.c.b16 %v3410, %v3409
        %v3432 = vpack.c.b16 %v3412, %v3411
        %v3433 = vpack.c.b16 %v3414, %v3413
        %v3434 = vpack.c.b16 %v3416, %v3415
        %v3435 = vpack.c.b16 %v3418, %v3417
        %v3436 = vpack.c.b16 %v3420, %v3419
        %3437 = vrot.lane.b32.xlu0 %v3421, 24
        %v3438 = vpop.permute.xlu0 %3437
        %3439 = vrot.lane.b32.xlu0 %v3422, 24
        %v3440 = vpop.permute.xlu0 %3439
        %3441 = vrot.lane.b32.xlu0 %v3423, 24
        %v3442 = vpop.permute.xlu0 %3441
        %3443 = vrot.lane.b32.xlu0 %v3424, 24
        %v3444 = vpop.permute.xlu0 %3443
        %3445 = vrot.lane.b32.xlu0 %v3425, 24
        %v3446 = vpop.permute.xlu0 %3445
        %3447 = vrot.lane.b32.xlu0 %v3426, 24
        %v3448 = vpop.permute.xlu0 %3447
        %3449 = vrot.lane.b32.xlu0 %v3427, 24
        %v3450 = vpop.permute.xlu0 %3449
        %3451 = vrot.lane.b32.xlu0 %v3428, 24
        %v3452 = vpop.permute.xlu0 %3451
        %3453 = vrot.lane.b32.xlu0 %v3429, 24
        %v3454 = vpop.permute.xlu0 %3453
        %3455 = vrot.lane.b32.xlu0 %v3430, 24
        %v3456 = vpop.permute.xlu0 %3455
        %3457 = vrot.lane.b32.xlu0 %v3431, 24
        %v3458 = vpop.permute.xlu0 %3457
        %3459 = vrot.lane.b32.xlu0 %v3432, 24
        %v3460 = vpop.permute.xlu0 %3459
        %3461 = vrot.lane.b32.xlu0 %v3433, 24
        %v3462 = vpop.permute.xlu0 %3461
        %3463 = vrot.lane.b32.xlu0 %v3434, 24
        %v3464 = vpop.permute.xlu0 %3463
        %3465 = vrot.lane.b32.xlu0 %v3435, 24
        %v3466 = vpop.permute.xlu0 %3465
        %3467 = vrot.lane.b32.xlu0 %v3436, 24
        %v3468 = vpop.permute.xlu0 %3467
        %v3469 = vunpack.c.l.b16 %v2346
        %v3470 = vunpack.c.l.b16 %v2356
        %v3471 = vunpack.c.l.b16 %v2370
        %v3472 = vunpack.c.l.b16 %v2380
        %v3473 = vunpack.c.l.b16 %v2394
        %v3474 = vunpack.c.l.b16 %v2404
        %v3475 = vunpack.c.l.b16 %v2418
        %v3476 = vunpack.c.l.b16 %v2428
        %v3477 = vunpack.c.l.b16 %v2442
        %v3478 = vunpack.c.l.b16 %v2452
        %v3479 = vunpack.c.l.b16 %v2466
        %v3480 = vunpack.c.l.b16 %v2476
        %v3481 = vunpack.c.l.b16 %v2490
        %v3482 = vunpack.c.l.b16 %v2500
        %v3483 = vunpack.c.l.b16 %v2514
        %v3484 = vunpack.c.l.b16 %v2524
        %v3485 = vunpack.c.l.b16 %v2538
        %v3486 = vunpack.c.l.b16 %v2548
        %v3487 = vunpack.c.l.b16 %v2562
        %v3488 = vunpack.c.l.b16 %v2572
        %v3489 = vunpack.c.l.b16 %v2586
        %v3490 = vunpack.c.l.b16 %v2596
        %v3491 = vunpack.c.l.b16 %v2610
        %v3492 = vunpack.c.l.b16 %v2620
        %v3493 = vunpack.c.l.b16 %v2634
        %v3494 = vunpack.c.l.b16 %v2644
        %v3495 = vunpack.c.l.b16 %v2658
        %v3496 = vunpack.c.l.b16 %v2668
        %v3497 = vunpack.c.l.b16 %v2682
        %v3498 = vunpack.c.l.b16 %v2692
        %v3499 = vunpack.c.l.b16 %v2706
        %v3500 = vunpack.c.l.b16 %v2716
        %v3501 = vpack.c.b16 %v3470, %v3469
        %v3502 = vpack.c.b16 %v3472, %v3471
        %v3503 = vpack.c.b16 %v3474, %v3473
        %v3504 = vpack.c.b16 %v3476, %v3475
        %v3505 = vpack.c.b16 %v3478, %v3477
        %v3506 = vpack.c.b16 %v3480, %v3479
        %v3507 = vpack.c.b16 %v3482, %v3481
        %v3508 = vpack.c.b16 %v3484, %v3483
        %v3509 = vpack.c.b16 %v3486, %v3485
        %v3510 = vpack.c.b16 %v3488, %v3487
        %v3511 = vpack.c.b16 %v3490, %v3489
        %v3512 = vpack.c.b16 %v3492, %v3491
        %v3513 = vpack.c.b16 %v3494, %v3493
        %v3514 = vpack.c.b16 %v3496, %v3495
        %v3515 = vpack.c.b16 %v3498, %v3497
        %v3516 = vpack.c.b16 %v3500, %v3499
        %3517 = vrot.lane.b32.xlu0 %v3501, 28
        %v3518 = vpop.permute.xlu0 %3517
        %3519 = vrot.lane.b32.xlu0 %v3502, 28
        %v3520 = vpop.permute.xlu0 %3519
        %3521 = vrot.lane.b32.xlu0 %v3503, 28
        %v3522 = vpop.permute.xlu0 %3521
        %3523 = vrot.lane.b32.xlu0 %v3504, 28
        %v3524 = vpop.permute.xlu0 %3523
        %3525 = vrot.lane.b32.xlu0 %v3505, 28
        %v3526 = vpop.permute.xlu0 %3525
        %3527 = vrot.lane.b32.xlu0 %v3506, 28
        %v3528 = vpop.permute.xlu0 %3527
        %3529 = vrot.lane.b32.xlu0 %v3507, 28
        %v3530 = vpop.permute.xlu0 %3529
        %3531 = vrot.lane.b32.xlu0 %v3508, 28
        %v3532 = vpop.permute.xlu0 %3531
        %3533 = vrot.lane.b32.xlu0 %v3509, 28
        %v3534 = vpop.permute.xlu0 %3533
        %3535 = vrot.lane.b32.xlu0 %v3510, 28
        %v3536 = vpop.permute.xlu0 %3535
        %3537 = vrot.lane.b32.xlu0 %v3511, 28
        %v3538 = vpop.permute.xlu0 %3537
        %3539 = vrot.lane.b32.xlu0 %v3512, 28
        %v3540 = vpop.permute.xlu0 %3539
        %3541 = vrot.lane.b32.xlu0 %v3513, 28
        %v3542 = vpop.permute.xlu0 %3541
        %3543 = vrot.lane.b32.xlu0 %v3514, 28
        %v3544 = vpop.permute.xlu0 %3543
        %3545 = vrot.lane.b32.xlu0 %v3515, 28
        %v3546 = vpop.permute.xlu0 %3545
        %3547 = vrot.lane.b32.xlu0 %v3516, 28
        %v3548 = vpop.permute.xlu0 %3547
        %v3549 = vunpack.c.l.b16 %v2784
        %v3550 = vunpack.c.l.b16 %v2787
        %v3551 = vunpack.c.l.b16 %v2791
        %v3552 = vunpack.c.l.b16 %v2794
        %v3553 = vunpack.c.l.b16 %v2798
        %v3554 = vunpack.c.l.b16 %v2801
        %v3555 = vunpack.c.l.b16 %v2805
        %v3556 = vunpack.c.l.b16 %v2808
        %v3557 = vunpack.c.l.b16 %v2812
        %v3558 = vunpack.c.l.b16 %v2815
        %v3559 = vunpack.c.l.b16 %v2819
        %v3560 = vunpack.c.l.b16 %v2822
        %v3561 = vunpack.c.l.b16 %v2826
        %v3562 = vunpack.c.l.b16 %v2829
        %v3563 = vunpack.c.l.b16 %v2833
        %v3564 = vunpack.c.l.b16 %v2836
        %v3565 = vunpack.c.l.b16 %v2840
        %v3566 = vunpack.c.l.b16 %v2843
        %v3567 = vunpack.c.l.b16 %v2847
        %v3568 = vunpack.c.l.b16 %v2850
        %v3569 = vunpack.c.l.b16 %v2854
        %v3570 = vunpack.c.l.b16 %v2857
        %v3571 = vunpack.c.l.b16 %v2861
        %v3572 = vunpack.c.l.b16 %v2864
        %v3573 = vunpack.c.l.b16 %v2868
        %v3574 = vunpack.c.l.b16 %v2871
        %v3575 = vunpack.c.l.b16 %v2875
        %v3576 = vunpack.c.l.b16 %v2878
        %v3577 = vunpack.c.l.b16 %v2882
        %v3578 = vunpack.c.l.b16 %v2885
        %v3579 = vunpack.c.l.b16 %v2889
        %v3580 = vunpack.c.l.b16 %v2892
        %v3581 = vpack.c.b16 %v3550, %v3549
        %v3582 = vpack.c.b16 %v3552, %v3551
        %v3583 = vpack.c.b16 %v3554, %v3553
        %v3584 = vpack.c.b16 %v3556, %v3555
        %v3585 = vpack.c.b16 %v3558, %v3557
        %v3586 = vpack.c.b16 %v3560, %v3559
        %v3587 = vpack.c.b16 %v3562, %v3561
        %v3588 = vpack.c.b16 %v3564, %v3563
        %v3589 = vpack.c.b16 %v3566, %v3565
        %v3590 = vpack.c.b16 %v3568, %v3567
        %v3591 = vpack.c.b16 %v3570, %v3569
        %v3592 = vpack.c.b16 %v3572, %v3571
        %v3593 = vpack.c.b16 %v3574, %v3573
        %v3594 = vpack.c.b16 %v3576, %v3575
        %v3595 = vpack.c.b16 %v3578, %v3577
        %v3596 = vpack.c.b16 %v3580, %v3579
        %3597 = vrot.lane.b32.xlu0 %v3581, 32
        %v3598 = vpop.permute.xlu0 %3597
        %3599 = vrot.lane.b32.xlu0 %v3582, 32
        %v3600 = vpop.permute.xlu0 %3599
        %3601 = vrot.lane.b32.xlu0 %v3583, 32
        %v3602 = vpop.permute.xlu0 %3601
        %3603 = vrot.lane.b32.xlu0 %v3584, 32
        %v3604 = vpop.permute.xlu0 %3603
        %3605 = vrot.lane.b32.xlu0 %v3585, 32
        %v3606 = vpop.permute.xlu0 %3605
        %3607 = vrot.lane.b32.xlu0 %v3586, 32
        %v3608 = vpop.permute.xlu0 %3607
        %3609 = vrot.lane.b32.xlu0 %v3587, 32
        %v3610 = vpop.permute.xlu0 %3609
        %3611 = vrot.lane.b32.xlu0 %v3588, 32
        %v3612 = vpop.permute.xlu0 %3611
        %3613 = vrot.lane.b32.xlu0 %v3589, 32
        %v3614 = vpop.permute.xlu0 %3613
        %3615 = vrot.lane.b32.xlu0 %v3590, 32
        %v3616 = vpop.permute.xlu0 %3615
        %3617 = vrot.lane.b32.xlu0 %v3591, 32
        %v3618 = vpop.permute.xlu0 %3617
        %3619 = vrot.lane.b32.xlu0 %v3592, 32
        %v3620 = vpop.permute.xlu0 %3619
        %3621 = vrot.lane.b32.xlu0 %v3593, 32
        %v3622 = vpop.permute.xlu0 %3621
        %3623 = vrot.lane.b32.xlu0 %v3594, 32
        %v3624 = vpop.permute.xlu0 %3623
        %3625 = vrot.lane.b32.xlu0 %v3595, 32
        %v3626 = vpop.permute.xlu0 %3625
        %3627 = vrot.lane.b32.xlu0 %v3596, 32
        %v3628 = vpop.permute.xlu0 %3627
        %vm3629 = vcmask 31744
        %v3632 = vsel %vm3629, %v2941, %v3006
        %v3635 = vsel %vm3629, %v2942, %v3008
        %v3638 = vsel %vm3629, %v2943, %v3010
        %v3641 = vsel %vm3629, %v2944, %v3012
        %v3644 = vsel %vm3629, %v2945, %v3014
        %v3647 = vsel %vm3629, %v2946, %v3016
        %v3650 = vsel %vm3629, %v2947, %v3018
        %v3653 = vsel %vm3629, %v2948, %v3020
        %v3656 = vsel %vm3629, %v2949, %v3022
        %v3659 = vsel %vm3629, %v2950, %v3024
        %v3662 = vsel %vm3629, %v2951, %v3026
        %v3665 = vsel %vm3629, %v2952, %v3028
        %v3668 = vsel %vm3629, %v2953, %v3030
        %v3671 = vsel %vm3629, %v2954, %v3032
        %v3674 = vsel %vm3629, %v2955, %v3034
        %v3677 = vsel %vm3629, %v2956, %v3036
        %vm3678 = vcmask 64512
        %v3680 = vsel %vm3678, %v3632, %v3086
        %v3682 = vsel %vm3678, %v3635, %v3088
        %v3684 = vsel %vm3678, %v3638, %v3090
        %v3686 = vsel %vm3678, %v3641, %v3092
        %v3688 = vsel %vm3678, %v3644, %v3094
        %v3690 = vsel %vm3678, %v3647, %v3096
        %v3692 = vsel %vm3678, %v3650, %v3098
        %v3694 = vsel %vm3678, %v3653, %v3100
        %v3696 = vsel %vm3678, %v3656, %v3102
        %v3698 = vsel %vm3678, %v3659, %v3104
        %v3700 = vsel %vm3678, %v3662, %v3106
        %v3702 = vsel %vm3678, %v3665, %v3108
        %v3704 = vsel %vm3678, %v3668, %v3110
        %v3706 = vsel %vm3678, %v3671, %v3112
        %v3708 = vsel %vm3678, %v3674, %v3114
        %v3710 = vsel %vm3678, %v3677, %v3116
        %vm3711 = vcmask 97280
        %v3713 = vsel %vm3711, %v3680, %v3182
        %v3715 = vsel %vm3711, %v3682, %v3184
        %v3717 = vsel %vm3711, %v3684, %v3186
        %v3719 = vsel %vm3711, %v3686, %v3188
        %v3721 = vsel %vm3711, %v3688, %v3190
        %v3723 = vsel %vm3711, %v3690, %v3192
        %v3725 = vsel %vm3711, %v3692, %v3194
        %v3727 = vsel %vm3711, %v3694, %v3196
        %v3729 = vsel %vm3711, %v3696, %v3198
        %v3731 = vsel %vm3711, %v3698, %v3200
        %v3733 = vsel %vm3711, %v3700, %v3202
        %v3735 = vsel %vm3711, %v3702, %v3204
        %v3737 = vsel %vm3711, %v3704, %v3206
        %v3739 = vsel %vm3711, %v3706, %v3208
        %v3741 = vsel %vm3711, %v3708, %v3210
        %v3743 = vsel %vm3711, %v3710, %v3212
        %vm3744 = vcmask 130048
        %v3746 = vsel %vm3744, %v3713, %v3262
        %v3748 = vsel %vm3744, %v3715, %v3264
        %v3750 = vsel %vm3744, %v3717, %v3266
        %v3752 = vsel %vm3744, %v3719, %v3268
        %v3754 = vsel %vm3744, %v3721, %v3270
        %v3756 = vsel %vm3744, %v3723, %v3272
        %v3758 = vsel %vm3744, %v3725, %v3274
        %v3760 = vsel %vm3744, %v3727, %v3276
        %v3762 = vsel %vm3744, %v3729, %v3278
        %v3764 = vsel %vm3744, %v3731, %v3280
        %v3766 = vsel %vm3744, %v3733, %v3282
        %v3768 = vsel %vm3744, %v3735, %v3284
        %v3770 = vsel %vm3744, %v3737, %v3286
        %v3772 = vsel %vm3744, %v3739, %v3288
        %v3774 = vsel %vm3744, %v3741, %v3290
        %v3776 = vsel %vm3744, %v3743, %v3292
        %vm3777 = vcmask 162816
        %v3779 = vsel %vm3777, %v3746, %v3342
        %v3781 = vsel %vm3777, %v3748, %v3344
        %v3783 = vsel %vm3777, %v3750, %v3346
        %v3785 = vsel %vm3777, %v3752, %v3348
        %v3787 = vsel %vm3777, %v3754, %v3350
        %v3789 = vsel %vm3777, %v3756, %v3352
        %v3791 = vsel %vm3777, %v3758, %v3354
        %v3793 = vsel %vm3777, %v3760, %v3356
        %v3795 = vsel %vm3777, %v3762, %v3358
        %v3797 = vsel %vm3777, %v3764, %v3360
        %v3799 = vsel %vm3777, %v3766, %v3362
        %v3801 = vsel %vm3777, %v3768, %v3364
        %v3803 = vsel %vm3777, %v3770, %v3366
        %v3805 = vsel %vm3777, %v3772, %v3368
        %v3807 = vsel %vm3777, %v3774, %v3370
        %v3809 = vsel %vm3777, %v3776, %v3372
        %vm3810 = vcmask 195584
        %v3812 = vsel %vm3810, %v3779, %v3438
        %v3814 = vsel %vm3810, %v3781, %v3440
        %v3816 = vsel %vm3810, %v3783, %v3442
        %v3818 = vsel %vm3810, %v3785, %v3444
        %v3820 = vsel %vm3810, %v3787, %v3446
        %v3822 = vsel %vm3810, %v3789, %v3448
        %v3824 = vsel %vm3810, %v3791, %v3450
        %v3826 = vsel %vm3810, %v3793, %v3452
        %v3828 = vsel %vm3810, %v3795, %v3454
        %v3830 = vsel %vm3810, %v3797, %v3456
        %v3832 = vsel %vm3810, %v3799, %v3458
        %v3834 = vsel %vm3810, %v3801, %v3460
        %v3836 = vsel %vm3810, %v3803, %v3462
        %v3838 = vsel %vm3810, %v3805, %v3464
        %v3840 = vsel %vm3810, %v3807, %v3466
        %v3842 = vsel %vm3810, %v3809, %v3468
        %vm3843 = vcmask 228352
        %v3845 = vsel %vm3843, %v3812, %v3518
        %v3847 = vsel %vm3843, %v3814, %v3520
        %v3849 = vsel %vm3843, %v3816, %v3522
        %v3851 = vsel %vm3843, %v3818, %v3524
        %v3853 = vsel %vm3843, %v3820, %v3526
        %v3855 = vsel %vm3843, %v3822, %v3528
        %v3857 = vsel %vm3843, %v3824, %v3530
        %v3859 = vsel %vm3843, %v3826, %v3532
        %v3861 = vsel %vm3843, %v3828, %v3534
        %v3863 = vsel %vm3843, %v3830, %v3536
        %v3865 = vsel %vm3843, %v3832, %v3538
        %v3867 = vsel %vm3843, %v3834, %v3540
        %v3869 = vsel %vm3843, %v3836, %v3542
        %v3871 = vsel %vm3843, %v3838, %v3544
        %v3873 = vsel %vm3843, %v3840, %v3546
        %v3875 = vsel %vm3843, %v3842, %v3548
        %vm3876 = vcmask 261120
        %v3878 = vsel %vm3876, %v3845, %v3598
        %v3880 = vsel %vm3876, %v3847, %v3600
        %v3882 = vsel %vm3876, %v3849, %v3602
        %v3884 = vsel %vm3876, %v3851, %v3604
        %v3886 = vsel %vm3876, %v3853, %v3606
        %v3888 = vsel %vm3876, %v3855, %v3608
        %v3890 = vsel %vm3876, %v3857, %v3610
        %v3892 = vsel %vm3876, %v3859, %v3612
        %v3894 = vsel %vm3876, %v3861, %v3614
        %v3896 = vsel %vm3876, %v3863, %v3616
        %v3898 = vsel %vm3876, %v3865, %v3618
        %v3900 = vsel %vm3876, %v3867, %v3620
        %v3902 = vsel %vm3876, %v3869, %v3622
        %v3904 = vsel %vm3876, %v3871, %v3624
        %v3906 = vsel %vm3876, %v3873, %v3626
        %v3908 = vsel %vm3876, %v3875, %v3628
        %v3909 = vld [vmem:[%s1] sm:$0xf]
        %v3910 = vld [vmem:[%s1 + $0x4] sm:$0xf]
        %v3911 = vld [vmem:[%s1 + $0x8] sm:$0xf]
        %v3912 = vld [vmem:[%s1 + $0xc] sm:$0xf]
        %v3913 = vld [vmem:[%s1 + $0x10] sm:$0x3]
        %v3914 = vld [vmem:[%s2] sm:$0x1]
        %v3916 = vlaneseq
        %v3917 = vshrl.u32 %v3916, 7
        %v3918 = vsub.s32 0, %v3917
        %v3919 = vrot.slane %v3914, %v3918
        %v3926 = vunpack.c.l.b16 %v3909
        %v3927 = vunpack.c.l.b16 %v3910
        %v3928 = vunpack.c.l.b16 %v3911
        %v3929 = vunpack.c.l.b16 %v3912
        %v3930 = vunpack.c.l.b16 %v3913
        %v3931 = vpack.c.b16 %v3927, %v3926
        %v3932 = vpack.c.b16 %v3929, %v3928
        %v3933 = vpack.c.b16 %v3930, %v3930
        %vm3936 = vcmask 293888
        %v3937 = vsel %vm3936, %v3878, 0
        %v3939 = vsel %vm3936, %v3880, 0
        %v3941 = vsel %vm3936, %v3882, 0
        %v3943 = vsel %vm3936, %v3884, 0
        %v3945 = vsel %vm3936, %v3886, 0
        %v3947 = vsel %vm3936, %v3888, 0
        %v3949 = vsel %vm3936, %v3890, 0
        %v3951 = vsel %vm3936, %v3892, 0
        %v3953 = vsel %vm3936, %v3894, 0
        %v3955 = vsel %vm3936, %v3896, 0
        %v3957 = vsel %vm3936, %v3898, 0
        %v3959 = vsel %vm3936, %v3900, 0
        %v3961 = vsel %vm3936, %v3902, 0
        %v3963 = vsel %vm3936, %v3904, 0
        %v3965 = vsel %vm3936, %v3906, 0
        %v3967 = vsel %vm3936, %v3908, 0
        %vm3969 = vcmask 1041408
        %v3971 = vsel %vm3969, %v3933, 0
        %3973 = vmatprep.subr.bf16.mxu0 0
        %3974 = vmatpush1.bf16.msra.mxu0 %v3931
        %3975 = vmatprep.subr.bf16.mxu0 0
        %3976 = vmatpush1.bf16.msra.mxu0 %v3932
        %3977 = vmatprep.subr.bf16.mxu0 0
        %3978 = vmatpush1.bf16.msra.mxu0 %v3971
        %3979 = vmatprep.subr.bf16.mxu0 0
        %3980 = vmatpush1.bf16.msra.mxu0 0
        %3981 = vmatprep.subr.bf16.mxu0 0
        %3982 = vmatpush1.bf16.msra.mxu0 0
        %3983 = vmatprep.subr.bf16.mxu0 0
        %3984 = vmatpush1.bf16.msra.mxu0 0
        %3985 = vmatprep.subr.bf16.mxu0 0
        %3986 = vmatpush1.bf16.msra.mxu0 0
        %3987 = vmatprep.subr.bf16.mxu0 0
        %3988 = vmatpush1.bf16.msra.mxu0 0
        %3989 = vmatprep.subr.bf16.mxu0 0
        %3990 = vmatpush1.bf16.msra.mxu0 0
        %3991 = vmatprep.subr.bf16.mxu0 0
        %3992 = vmatpush1.bf16.msra.mxu0 0
        %3993 = vmatprep.subr.bf16.mxu0 0
        %3994 = vmatpush1.bf16.msra.mxu0 0
        %3995 = vmatprep.subr.bf16.mxu0 0
        %3996 = vmatpush1.bf16.msra.mxu0 0
        %3997 = vmatprep.subr.bf16.mxu0 0
        %3998 = vmatpush1.bf16.msra.mxu0 0
        %3999 = vmatprep.subr.bf16.mxu0 0
        %4000 = vmatpush1.bf16.msra.mxu0 0
        %4001 = vmatprep.subr.bf16.mxu0 0
        %4002 = vmatpush1.bf16.msra.mxu0 0
        %4003 = vmatprep.subr.bf16.mxu0 0
        %4004 = vmatpush1.bf16.msra.mxu0 0
        %4005 = vmatprep.mubr.bf16.mxu0 0
        %4006 = vmatmul.mubr.bf16.gmra.mrb[0].mxu0 %v3937
        %v4007 = vpop.f32.mrb[0].mxu0
        %v4008 = vadd.f32 %v3919, %v4007
        %v4009 = vpop.f32.mrb[0].mxu0
        %v4010 = vpop.f32.mrb[0].mxu0
        %v4011 = vadd.f32 %v3919, %v4010
        %v4012 = vpop.f32.mrb[0].mxu0
        %4013 = vmatprep.mubr.bf16.mxu0 0
        %4014 = vmatmul.mubr.bf16.gmra.mrb[0].mxu0 %v3939
        %v4015 = vpop.f32.mrb[0].mxu0
        %v4016 = vadd.f32 %v3919, %v4015
        %v4017 = vpop.f32.mrb[0].mxu0
        %v4018 = vpop.f32.mrb[0].mxu0
        %v4019 = vadd.f32 %v3919, %v4018
        %v4020 = vpop.f32.mrb[0].mxu0
        %4021 = vmatprep.mubr.bf16.mxu0 0
        %4022 = vmatmul.mubr.bf16.gmra.mrb[0].mxu0 %v3941
        %v4023 = vpop.f32.mrb[0].mxu0
        %v4024 = vadd.f32 %v3919, %v4023
        %v4025 = vpop.f32.mrb[0].mxu0
        %v4026 = vpop.f32.mrb[0].mxu0
        %v4027 = vadd.f32 %v3919, %v4026
        %v4028 = vpop.f32.mrb[0].mxu0
        %4029 = vmatprep.mubr.bf16.mxu0 0
        %4030 = vmatmul.mubr.bf16.gmra.mrb[0].mxu0 %v3943
        %v4031 = vpop.f32.mrb[0].mxu0
        %v4032 = vadd.f32 %v3919, %v4031
        %v4033 = vpop.f32.mrb[0].mxu0
        %v4034 = vpop.f32.mrb[0].mxu0
        %v4035 = vadd.f32 %v3919, %v4034
        %v4036 = vpop.f32.mrb[0].mxu0
        %4037 = vmatprep.mubr.bf16.mxu0 0
        %4038 = vmatmul.mubr.bf16.gmra.mrb[0].mxu0 %v3945
        %v4039 = vpop.f32.mrb[0].mxu0
        %v4040 = vadd.f32 %v3919, %v4039
        %v4041 = vpop.f32.mrb[0].mxu0
        %v4042 = vpop.f32.mrb[0].mxu0
        %v4043 = vadd.f32 %v3919, %v4042
        %v4044 = vpop.f32.mrb[0].mxu0
        %4045 = vmatprep.mubr.bf16.mxu0 0
        %4046 = vmatmul.mubr.bf16.gmra.mrb[0].mxu0 %v3947
        %v4047 = vpop.f32.mrb[0].mxu0
        %v4048 = vadd.f32 %v3919, %v4047
        %v4049 = vpop.f32.mrb[0].mxu0
        %v4050 = vpop.f32.mrb[0].mxu0
        %v4051 = vadd.f32 %v3919, %v4050
        %v4052 = vpop.f32.mrb[0].mxu0
        %4053 = vmatprep.mubr.bf16.mxu0 0
        %4054 = vmatmul.mubr.bf16.gmra.mrb[0].mxu0 %v3949
        %v4055 = vpop.f32.mrb[0].mxu0
        %v4056 = vadd.f32 %v3919, %v4055
        %v4057 = vpop.f32.mrb[0].mxu0
        %v4058 = vpop.f32.mrb[0].mxu0
        %v4059 = vadd.f32 %v3919, %v4058
        %v4060 = vpop.f32.mrb[0].mxu0
        %4061 = vmatprep.mubr.bf16.mxu0 0
        %4062 = vmatmul.mubr.bf16.gmra.mrb[0].mxu0 %v3951
        %v4063 = vpop.f32.mrb[0].mxu0
        %v4064 = vadd.f32 %v3919, %v4063
        %v4065 = vpop.f32.mrb[0].mxu0
        %v4066 = vpop.f32.mrb[0].mxu0
        %v4067 = vadd.f32 %v3919, %v4066
        %v4068 = vpop.f32.mrb[0].mxu0
        %4069 = vmatprep.mubr.bf16.mxu0 0
        %4070 = vmatmul.mubr.bf16.gmra.mrb[0].mxu0 %v3953
        %v4071 = vpop.f32.mrb[0].mxu0
        %v4072 = vadd.f32 %v3919, %v4071
        %v4073 = vpop.f32.mrb[0].mxu0
        %v4074 = vpop.f32.mrb[0].mxu0
        %v4075 = vadd.f32 %v3919, %v4074
        %v4076 = vpop.f32.mrb[0].mxu0
        %4077 = vmatprep.mubr.bf16.mxu0 0
        %4078 = vmatmul.mubr.bf16.gmra.mrb[0].mxu0 %v3955
        %v4079 = vpop.f32.mrb[0].mxu0
        %v4080 = vadd.f32 %v3919, %v4079
        %v4081 = vpop.f32.mrb[0].mxu0
        %v4082 = vpop.f32.mrb[0].mxu0
        %v4083 = vadd.f32 %v3919, %v4082
        %v4084 = vpop.f32.mrb[0].mxu0
        %4085 = vmatprep.mubr.bf16.mxu0 0
        %4086 = vmatmul.mubr.bf16.gmra.mrb[0].mxu0 %v3957
        %v4087 = vpop.f32.mrb[0].mxu0
        %v4088 = vadd.f32 %v3919, %v4087
        %v4089 = vpop.f32.mrb[0].mxu0
        %v4090 = vpop.f32.mrb[0].mxu0
        %v4091 = vadd.f32 %v3919, %v4090
        %v4092 = vpop.f32.mrb[0].mxu0
        %4093 = vmatprep.mubr.bf16.mxu0 0
        %4094 = vmatmul.mubr.bf16.gmra.mrb[0].mxu0 %v3959
        %v4095 = vpop.f32.mrb[0].mxu0
        %v4096 = vadd.f32 %v3919, %v4095
        %v4097 = vpop.f32.mrb[0].mxu0
        %v4098 = vpop.f32.mrb[0].mxu0
        %v4099 = vadd.f32 %v3919, %v4098
        %v4100 = vpop.f32.mrb[0].mxu0
        %4101 = vmatprep.mubr.bf16.mxu0 0
        %4102 = vmatmul.mubr.bf16.gmra.mrb[0].mxu0 %v3961
        %v4103 = vpop.f32.mrb[0].mxu0
        %v4104 = vadd.f32 %v3919, %v4103
        %v4105 = vpop.f32.mrb[0].mxu0
        %v4106 = vpop.f32.mrb[0].mxu0
        %v4107 = vadd.f32 %v3919, %v4106
        %v4108 = vpop.f32.mrb[0].mxu0
        %4109 = vmatprep.mubr.bf16.mxu0 0
        %4110 = vmatmul.mubr.bf16.gmra.mrb[0].mxu0 %v3963
        %v4111 = vpop.f32.mrb[0].mxu0
        %v4112 = vadd.f32 %v3919, %v4111
        %v4113 = vpop.f32.mrb[0].mxu0
        %v4114 = vpop.f32.mrb[0].mxu0
        %v4115 = vadd.f32 %v3919, %v4114
        %v4116 = vpop.f32.mrb[0].mxu0
        %4117 = vmatprep.mubr.bf16.mxu0 0
        %4118 = vmatmul.mubr.bf16.gmra.mrb[0].mxu0 %v3965
        %v4119 = vpop.f32.mrb[0].mxu0
        %v4120 = vadd.f32 %v3919, %v4119
        %v4121 = vpop.f32.mrb[0].mxu0
        %v4122 = vpop.f32.mrb[0].mxu0
        %v4123 = vadd.f32 %v3919, %v4122
        %v4124 = vpop.f32.mrb[0].mxu0
        %4125 = vmatprep.mubr.bf16.mxu0 0
        %4126 = vmatmul.mubr.bf16.gmra.mrb[0].mxu0 %v3967
        %v4127 = vpop.f32.mrb[0].mxu0
        %v4128 = vadd.f32 %v3919, %v4127
        %v4129 = vpop.f32.mrb[0].mxu0
        %v4130 = vpop.f32.mrb[0].mxu0
        %v4131 = vadd.f32 %v3919, %v4130
        %v4132 = vpop.f32.mrb[0].mxu0
        %4133 = vdwg.mxu0
        %v4134 = vmax.f32 %v4008, 0.0
        %v4135 = vmax.f32 %v4011, 0.0
        %v4136 = vmax.f32 %v4016, 0.0
        %v4137 = vmax.f32 %v4019, 0.0
        %v4138 = vmax.f32 %v4024, 0.0
        %v4139 = vmax.f32 %v4027, 0.0
        %v4140 = vmax.f32 %v4032, 0.0
        %v4141 = vmax.f32 %v4035, 0.0
        %v4142 = vmax.f32 %v4040, 0.0
        %v4143 = vmax.f32 %v4043, 0.0
        %v4144 = vmax.f32 %v4048, 0.0
        %v4145 = vmax.f32 %v4051, 0.0
        %v4146 = vmax.f32 %v4056, 0.0
        %v4147 = vmax.f32 %v4059, 0.0
        %v4148 = vmax.f32 %v4064, 0.0
        %v4149 = vmax.f32 %v4067, 0.0
        %v4150 = vmax.f32 %v4072, 0.0
        %v4151 = vmax.f32 %v4075, 0.0
        %v4152 = vmax.f32 %v4080, 0.0
        %v4153 = vmax.f32 %v4083, 0.0
        %v4154 = vmax.f32 %v4088, 0.0
        %v4155 = vmax.f32 %v4091, 0.0
        %v4156 = vmax.f32 %v4096, 0.0
        %v4157 = vmax.f32 %v4099, 0.0
        %v4158 = vmax.f32 %v4104, 0.0
        %v4159 = vmax.f32 %v4107, 0.0
        %v4160 = vmax.f32 %v4112, 0.0
        %v4161 = vmax.f32 %v4115, 0.0
        %v4162 = vmax.f32 %v4120, 0.0
        %v4163 = vmax.f32 %v4123, 0.0
        %v4164 = vmax.f32 %v4128, 0.0
        %v4165 = vmax.f32 %v4131, 0.0
        %v4166 = vpack.c.bf16 %v4135, %v4134
        %v4167 = vpack.c.bf16 %v4137, %v4136
        %v4168 = vpack.c.bf16 %v4139, %v4138
        %v4169 = vpack.c.bf16 %v4141, %v4140
        %v4170 = vpack.c.bf16 %v4143, %v4142
        %v4171 = vpack.c.bf16 %v4145, %v4144
        %v4172 = vpack.c.bf16 %v4147, %v4146
        %v4173 = vpack.c.bf16 %v4149, %v4148
        %v4174 = vpack.c.bf16 %v4151, %v4150
        %v4175 = vpack.c.bf16 %v4153, %v4152
        %v4176 = vpack.c.bf16 %v4155, %v4154
        %v4177 = vpack.c.bf16 %v4157, %v4156
        %v4178 = vpack.c.bf16 %v4159, %v4158
        %v4179 = vpack.c.bf16 %v4161, %v4160
        %v4180 = vpack.c.bf16 %v4163, %v4162
        %v4181 = vpack.c.bf16 %v4165, %v4164
        %v4198 = vunpack.c.l.b16 %v4166
        %v4199 = vunpack.c.h.b16 %v4166
        %v4200 = vunpack.c.l.b16 %v4167
        %v4201 = vunpack.c.h.b16 %v4167
        %v4202 = vunpack.c.l.b16 %v4168
        %v4203 = vunpack.c.h.b16 %v4168
        %v4204 = vunpack.c.l.b16 %v4169
        %v4205 = vunpack.c.h.b16 %v4169
        %v4206 = vunpack.c.l.b16 %v4170
        %v4207 = vunpack.c.h.b16 %v4170
        %v4208 = vunpack.c.l.b16 %v4171
        %v4209 = vunpack.c.h.b16 %v4171
        %v4210 = vunpack.c.l.b16 %v4172
        %v4211 = vunpack.c.h.b16 %v4172
        %v4212 = vunpack.c.l.b16 %v4173
        %v4213 = vunpack.c.h.b16 %v4173
        %v4214 = vunpack.c.l.b16 %v4174
        %v4215 = vunpack.c.h.b16 %v4174
        %v4216 = vunpack.c.l.b16 %v4175
        %v4217 = vunpack.c.h.b16 %v4175
        %v4218 = vunpack.c.l.b16 %v4176
        %v4219 = vunpack.c.h.b16 %v4176
        %v4220 = vunpack.c.l.b16 %v4177
        %v4221 = vunpack.c.h.b16 %v4177
        %v4222 = vunpack.c.l.b16 %v4178
        %v4223 = vunpack.c.h.b16 %v4178
        %v4224 = vunpack.c.l.b16 %v4179
        %v4225 = vunpack.c.h.b16 %v4179
        %v4226 = vunpack.c.l.b16 %v4180
        %v4227 = vunpack.c.h.b16 %v4180
        %v4228 = vunpack.c.l.b16 %v4181
        %v4229 = vunpack.c.h.b16 %v4181
        %v4230 = vpack.c.b16 %v4198, %v4198
        %v4231 = vpack.c.b16 %v4199, %v4199
        %v4232 = vpack.c.b16 %v4200, %v4200
        %v4233 = vpack.c.b16 %v4201, %v4201
        %v4234 = vpack.c.b16 %v4202, %v4202
        %v4235 = vpack.c.b16 %v4203, %v4203
        %v4236 = vpack.c.b16 %v4204, %v4204
        %v4237 = vpack.c.b16 %v4205, %v4205
        %v4238 = vpack.c.b16 %v4206, %v4206
        %v4239 = vpack.c.b16 %v4207, %v4207
        %v4240 = vpack.c.b16 %v4208, %v4208
        %v4241 = vpack.c.b16 %v4209, %v4209
        %v4242 = vpack.c.b16 %v4210, %v4210
        %v4243 = vpack.c.b16 %v4211, %v4211
        %v4244 = vpack.c.b16 %v4212, %v4212
        %v4245 = vpack.c.b16 %v4213, %v4213
        %v4246 = vpack.c.b16 %v4214, %v4214
        %v4247 = vpack.c.b16 %v4215, %v4215
        %v4248 = vpack.c.b16 %v4216, %v4216
        %v4249 = vpack.c.b16 %v4217, %v4217
        %v4250 = vpack.c.b16 %v4218, %v4218
        %v4251 = vpack.c.b16 %v4219, %v4219
        %v4252 = vpack.c.b16 %v4220, %v4220
        %v4253 = vpack.c.b16 %v4221, %v4221
        %v4254 = vpack.c.b16 %v4222, %v4222
        %v4255 = vpack.c.b16 %v4223, %v4223
        %v4256 = vpack.c.b16 %v4224, %v4224
        %v4257 = vpack.c.b16 %v4225, %v4225
        %v4258 = vpack.c.b16 %v4226, %v4226
        %v4259 = vpack.c.b16 %v4227, %v4227
        %v4260 = vpack.c.b16 %v4228, %v4228
        %v4261 = vpack.c.b16 %v4229, %v4229
        %v4263 = vshrl.u32 %v4230, 16
        %v4265 = vrot.slane %v4263, 7
        %v4266 = vshll.u32 %v4230, 16
        %v4268 = vor.u32 %v4265, %v4266
        %v4269 = vrot.slane %v4265, 4
        %v4271 = vshrl.u32 %v4231, 16
        %v4273 = vrot.slane %v4271, 7
        %v4274 = vshll.u32 %v4231, 16
        %v4276 = vor.u32 %v4273, %v4274
        %v4277 = vsel %vm626, %v4269, %v4276
        %v4278 = vrot.slane %v4273, 4
        %v4280 = vshrl.u32 %v4232, 16
        %v4282 = vrot.slane %v4280, 7
        %v4283 = vshll.u32 %v4232, 16
        %v4285 = vor.u32 %v4282, %v4283
        %v4286 = vrot.slane %v4282, 4
        %v4288 = vshrl.u32 %v4233, 16
        %v4290 = vrot.slane %v4288, 7
        %v4291 = vshll.u32 %v4233, 16
        %v4293 = vor.u32 %v4290, %v4291
        %v4294 = vsel %vm626, %v4286, %v4293
        %v4295 = vrot.slane %v4290, 4
        %v4297 = vshrl.u32 %v4234, 16
        %v4299 = vrot.slane %v4297, 7
        %v4300 = vshll.u32 %v4234, 16
        %v4302 = vor.u32 %v4299, %v4300
        %v4303 = vrot.slane %v4299, 4
        %v4305 = vshrl.u32 %v4235, 16
        %v4307 = vrot.slane %v4305, 7
        %v4308 = vshll.u32 %v4235, 16
        %v4310 = vor.u32 %v4307, %v4308
        %v4311 = vsel %vm626, %v4303, %v4310
        %v4312 = vrot.slane %v4307, 4
        %v4314 = vshrl.u32 %v4236, 16
        %v4316 = vrot.slane %v4314, 7
        %v4317 = vshll.u32 %v4236, 16
        %v4319 = vor.u32 %v4316, %v4317
        %v4320 = vrot.slane %v4316, 4
        %v4322 = vshrl.u32 %v4237, 16
        %v4324 = vrot.slane %v4322, 7
        %v4325 = vshll.u32 %v4237, 16
        %v4327 = vor.u32 %v4324, %v4325
        %v4328 = vsel %vm626, %v4320, %v4327
        %v4329 = vrot.slane %v4324, 4
        %v4331 = vshrl.u32 %v4238, 16
        %v4333 = vrot.slane %v4331, 7
        %v4334 = vshll.u32 %v4238, 16
        %v4336 = vor.u32 %v4333, %v4334
        %v4337 = vrot.slane %v4333, 4
        %v4339 = vshrl.u32 %v4239, 16
        %v4341 = vrot.slane %v4339, 7
        %v4342 = vshll.u32 %v4239, 16
        %v4344 = vor.u32 %v4341, %v4342
        %v4345 = vsel %vm626, %v4337, %v4344
        %v4346 = vrot.slane %v4341, 4
        %v4348 = vshrl.u32 %v4240, 16
        %v4350 = vrot.slane %v4348, 7
        %v4351 = vshll.u32 %v4240, 16
        %v4353 = vor.u32 %v4350, %v4351
        %v4354 = vrot.slane %v4350, 4
        %v4356 = vshrl.u32 %v4241, 16
        %v4358 = vrot.slane %v4356, 7
        %v4359 = vshll.u32 %v4241, 16
        %v4361 = vor.u32 %v4358, %v4359
        %v4362 = vsel %vm626, %v4354, %v4361
        %v4363 = vrot.slane %v4358, 4
        %v4365 = vshrl.u32 %v4242, 16
        %v4367 = vrot.slane %v4365, 7
        %v4368 = vshll.u32 %v4242, 16
        %v4370 = vor.u32 %v4367, %v4368
        %v4371 = vrot.slane %v4367, 4
        %v4373 = vshrl.u32 %v4243, 16
        %v4375 = vrot.slane %v4373, 7
        %v4376 = vshll.u32 %v4243, 16
        %v4378 = vor.u32 %v4375, %v4376
        %v4379 = vsel %vm626, %v4371, %v4378
        %v4380 = vrot.slane %v4375, 4
        %v4382 = vshrl.u32 %v4244, 16
        %v4384 = vrot.slane %v4382, 7
        %v4385 = vshll.u32 %v4244, 16
        %v4387 = vor.u32 %v4384, %v4385
        %v4388 = vrot.slane %v4384, 4
        %v4390 = vshrl.u32 %v4245, 16
        %v4392 = vrot.slane %v4390, 7
        %v4393 = vshll.u32 %v4245, 16
        %v4395 = vor.u32 %v4392, %v4393
        %v4396 = vsel %vm626, %v4388, %v4395
        %v4397 = vrot.slane %v4392, 4
        %v4399 = vshrl.u32 %v4246, 16
        %v4401 = vrot.slane %v4399, 7
        %v4402 = vshll.u32 %v4246, 16
        %v4404 = vor.u32 %v4401, %v4402
        %v4405 = vrot.slane %v4401, 4
        %v4407 = vshrl.u32 %v4247, 16
        %v4409 = vrot.slane %v4407, 7
        %v4410 = vshll.u32 %v4247, 16
        %v4412 = vor.u32 %v4409, %v4410
        %v4413 = vsel %vm626, %v4405, %v4412
        %v4414 = vrot.slane %v4409, 4
        %v4416 = vshrl.u32 %v4248, 16
        %v4418 = vrot.slane %v4416, 7
        %v4419 = vshll.u32 %v4248, 16
        %v4421 = vor.u32 %v4418, %v4419
        %v4422 = vrot.slane %v4418, 4
        %v4424 = vshrl.u32 %v4249, 16
        %v4426 = vrot.slane %v4424, 7
        %v4427 = vshll.u32 %v4249, 16
        %v4429 = vor.u32 %v4426, %v4427
        %v4430 = vsel %vm626, %v4422, %v4429
        %v4431 = vrot.slane %v4426, 4
        %v4433 = vshrl.u32 %v4250, 16
        %v4435 = vrot.slane %v4433, 7
        %v4436 = vshll.u32 %v4250, 16
        %v4438 = vor.u32 %v4435, %v4436
        %v4439 = vrot.slane %v4435, 4
        %v4441 = vshrl.u32 %v4251, 16
        %v4443 = vrot.slane %v4441, 7
        %v4444 = vshll.u32 %v4251, 16
        %v4446 = vor.u32 %v4443, %v4444
        %v4447 = vsel %vm626, %v4439, %v4446
        %v4448 = vrot.slane %v4443, 4
        %v4450 = vshrl.u32 %v4252, 16
        %v4452 = vrot.slane %v4450, 7
        %v4453 = vshll.u32 %v4252, 16
        %v4455 = vor.u32 %v4452, %v4453
        %v4456 = vrot.slane %v4452, 4
        %v4458 = vshrl.u32 %v4253, 16
        %v4460 = vrot.slane %v4458, 7
        %v4461 = vshll.u32 %v4253, 16
        %v4463 = vor.u32 %v4460, %v4461
        %v4464 = vsel %vm626, %v4456, %v4463
        %v4465 = vrot.slane %v4460, 4
        %v4467 = vshrl.u32 %v4254, 16
        %v4469 = vrot.slane %v4467, 7
        %v4470 = vshll.u32 %v4254, 16
        %v4472 = vor.u32 %v4469, %v4470
        %v4473 = vrot.slane %v4469, 4
        %v4475 = vshrl.u32 %v4255, 16
        %v4477 = vrot.slane %v4475, 7
        %v4478 = vshll.u32 %v4255, 16
        %v4480 = vor.u32 %v4477, %v4478
        %v4481 = vsel %vm626, %v4473, %v4480
        %v4482 = vrot.slane %v4477, 4
        %v4484 = vshrl.u32 %v4256, 16
        %v4486 = vrot.slane %v4484, 7
        %v4487 = vshll.u32 %v4256, 16
        %v4489 = vor.u32 %v4486, %v4487
        %v4490 = vrot.slane %v4486, 4
        %v4492 = vshrl.u32 %v4257, 16
        %v4494 = vrot.slane %v4492, 7
        %v4495 = vshll.u32 %v4257, 16
        %v4497 = vor.u32 %v4494, %v4495
        %v4498 = vsel %vm626, %v4490, %v4497
        %v4499 = vrot.slane %v4494, 4
        %v4501 = vshrl.u32 %v4258, 16
        %v4503 = vrot.slane %v4501, 7
        %v4504 = vshll.u32 %v4258, 16
        %v4506 = vor.u32 %v4503, %v4504
        %v4507 = vrot.slane %v4503, 4
        %v4509 = vshrl.u32 %v4259, 16
        %v4511 = vrot.slane %v4509, 7
        %v4512 = vshll.u32 %v4259, 16
        %v4514 = vor.u32 %v4511, %v4512
        %v4515 = vsel %vm626, %v4507, %v4514
        %v4516 = vrot.slane %v4511, 4
        %v4518 = vshrl.u32 %v4260, 16
        %v4520 = vrot.slane %v4518, 7
        %v4521 = vshll.u32 %v4260, 16
        %v4523 = vor.u32 %v4520, %v4521
        %v4524 = vrot.slane %v4520, 4
        %v4526 = vshrl.u32 %v4261, 16
        %v4528 = vrot.slane %v4526, 7
        %v4529 = vshll.u32 %v4261, 16
        %v4531 = vor.u32 %v4528, %v4529
        %v4532 = vsel %vm626, %v4524, %v4531
        %v4533 = vrot.slane %v4528, 4
        %s4582 = scalar_lea.vmem [#allocation3], 12
        %v4583 = vld [vmem:[%s4582] sm:$0xf]
        %v4584 = vsel %vm949, %v4268, %v4583
        %4585 = vst [vmem:[%s4582] sm:$0xf] %v4584
        %4586 = vst.msk [vmem:[%s4582 + $0x4] sm:$0xf] %vm225, %v4277
        %v4587 = vld [vmem:[%s4582 + $0x8] sm:$0x1]
        %v4588 = vsel %vm236, %v4278, %v4587
        %4589 = vst [vmem:[%s4582 + $0x8] sm:$0x1] %v4588
        %v4590 = vld [vmem:[%s4582 + $0xc] sm:$0xf]
        %v4591 = vsel %vm949, %v4285, %v4590
        %4592 = vst [vmem:[%s4582 + $0xc] sm:$0xf] %v4591
        %4593 = vst.msk [vmem:[%s4582 + $0x10] sm:$0xf] %vm225, %v4294
        %v4594 = vld [vmem:[%s4582 + $0x14] sm:$0x1]
        %v4595 = vsel %vm236, %v4295, %v4594
        %4596 = vst [vmem:[%s4582 + $0x14] sm:$0x1] %v4595
        %v4597 = vld [vmem:[%s4582 + $0x18] sm:$0xf]
        %v4598 = vsel %vm949, %v4302, %v4597
        %4599 = vst [vmem:[%s4582 + $0x18] sm:$0xf] %v4598
        %4600 = vst.msk [vmem:[%s4582 + $0x1c] sm:$0xf] %vm225, %v4311
        %v4601 = vld [vmem:[%s4582 + $0x20] sm:$0x1]
        %v4602 = vsel %vm236, %v4312, %v4601
        %4603 = vst [vmem:[%s4582 + $0x20] sm:$0x1] %v4602
        %v4604 = vld [vmem:[%s4582 + $0x24] sm:$0xf]
        %v4605 = vsel %vm949, %v4319, %v4604
        %4606 = vst [vmem:[%s4582 + $0x24] sm:$0xf] %v4605
        %4607 = vst.msk [vmem:[%s4582 + $0x28] sm:$0xf] %vm225, %v4328
        %v4608 = vld [vmem:[%s4582 + $0x2c] sm:$0x1]
        %v4609 = vsel %vm236, %v4329, %v4608
        %4610 = vst [vmem:[%s4582 + $0x2c] sm:$0x1] %v4609
        %v4611 = vld [vmem:[%s4582 + $0x30] sm:$0xf]
        %v4612 = vsel %vm949, %v4336, %v4611
        %4613 = vst [vmem:[%s4582 + $0x30] sm:$0xf] %v4612
        %4614 = vst.msk [vmem:[%s4582 + $0x34] sm:$0xf] %vm225, %v4345
        %v4615 = vld [vmem:[%s4582 + $0x38] sm:$0x1]
        %v4616 = vsel %vm236, %v4346, %v4615
        %4617 = vst [vmem:[%s4582 + $0x38] sm:$0x1] %v4616
        %v4618 = vld [vmem:[%s4582 + $0x3c] sm:$0xf]
        %v4619 = vsel %vm949, %v4353, %v4618
        %4620 = vst [vmem:[%s4582 + $0x3c] sm:$0xf] %v4619
        %4621 = vst.msk [vmem:[%s4582 + $0x40] sm:$0xf] %vm225, %v4362
        %v4622 = vld [vmem:[%s4582 + $0x44] sm:$0x1]
        %v4623 = vsel %vm236, %v4363, %v4622
        %4624 = vst [vmem:[%s4582 + $0x44] sm:$0x1] %v4623
        %v4625 = vld [vmem:[%s4582 + $0x48] sm:$0xf]
        %v4626 = vsel %vm949, %v4370, %v4625
        %4627 = vst [vmem:[%s4582 + $0x48] sm:$0xf] %v4626
        %4628 = vst.msk [vmem:[%s4582 + $0x4c] sm:$0xf] %vm225, %v4379
        %v4629 = vld [vmem:[%s4582 + $0x50] sm:$0x1]
        %v4630 = vsel %vm236, %v4380, %v4629
        %4631 = vst [vmem:[%s4582 + $0x50] sm:$0x1] %v4630
        %v4632 = vld [vmem:[%s4582 + $0x54] sm:$0xf]
        %v4633 = vsel %vm949, %v4387, %v4632
        %4634 = vst [vmem:[%s4582 + $0x54] sm:$0xf] %v4633
        %4635 = vst.msk [vmem:[%s4582 + $0x58] sm:$0xf] %vm225, %v4396
        %v4636 = vld [vmem:[%s4582 + $0x5c] sm:$0x1]
        %v4637 = vsel %vm236, %v4397, %v4636
        %4638 = vst [vmem:[%s4582 + $0x5c] sm:$0x1] %v4637
        %v4639 = vld [vmem:[%s4582 + $0x60] sm:$0xf]
        %v4640 = vsel %vm949, %v4404, %v4639
        %4641 = vst [vmem:[%s4582 + $0x60] sm:$0xf] %v4640
        %4642 = vst.msk [vmem:[%s4582 + $0x64] sm:$0xf] %vm225, %v4413
        %v4643 = vld [vmem:[%s4582 + $0x68] sm:$0x1]
        %v4644 = vsel %vm236, %v4414, %v4643
        %4645 = vst [vmem:[%s4582 + $0x68] sm:$0x1] %v4644
        %v4646 = vld [vmem:[%s4582 + $0x6c] sm:$0xf]
        %v4647 = vsel %vm949, %v4421, %v4646
        %4648 = vst [vmem:[%s4582 + $0x6c] sm:$0xf] %v4647
        %4649 = vst.msk [vmem:[%s4582 + $0x70] sm:$0xf] %vm225, %v4430
        %v4650 = vld [vmem:[%s4582 + $0x74] sm:$0x1]
        %v4651 = vsel %vm236, %v4431, %v4650
        %4652 = vst [vmem:[%s4582 + $0x74] sm:$0x1] %v4651
        %v4653 = vld [vmem:[%s4582 + $0x78] sm:$0xf]
        %v4654 = vsel %vm949, %v4438, %v4653
        %4655 = vst [vmem:[%s4582 + $0x78] sm:$0xf] %v4654
        %4656 = vst.msk [vmem:[%s4582 + $0x7c] sm:$0xf] %vm225, %v4447
        %v4657 = vld [vmem:[%s4582 + $0x80] sm:$0x1]
        %v4658 = vsel %vm236, %v4448, %v4657
        %4659 = vst [vmem:[%s4582 + $0x80] sm:$0x1] %v4658
        %v4660 = vld [vmem:[%s4582 + $0x84] sm:$0xf]
        %v4661 = vsel %vm949, %v4455, %v4660
        %4662 = vst [vmem:[%s4582 + $0x84] sm:$0xf] %v4661
        %4663 = vst.msk [vmem:[%s4582 + $0x88] sm:$0xf] %vm225, %v4464
        %v4664 = vld [vmem:[%s4582 + $0x8c] sm:$0x1]
        %v4665 = vsel %vm236, %v4465, %v4664
        %4666 = vst [vmem:[%s4582 + $0x8c] sm:$0x1] %v4665
        %v4667 = vld [vmem:[%s4582 + $0x90] sm:$0xf]
        %v4668 = vsel %vm949, %v4472, %v4667
        %4669 = vst [vmem:[%s4582 + $0x90] sm:$0xf] %v4668
        %4670 = vst.msk [vmem:[%s4582 + $0x94] sm:$0xf] %vm225, %v4481
        %v4671 = vld [vmem:[%s4582 + $0x98] sm:$0x1]
        %v4672 = vsel %vm236, %v4482, %v4671
        %4673 = vst [vmem:[%s4582 + $0x98] sm:$0x1] %v4672
        %v4674 = vld [vmem:[%s4582 + $0x9c] sm:$0xf]
        %v4675 = vsel %vm949, %v4489, %v4674
        %4676 = vst [vmem:[%s4582 + $0x9c] sm:$0xf] %v4675
        %4677 = vst.msk [vmem:[%s4582 + $0xa0] sm:$0xf] %vm225, %v4498
        %v4678 = vld [vmem:[%s4582 + $0xa4] sm:$0x1]
        %v4679 = vsel %vm236, %v4499, %v4678
        %4680 = vst [vmem:[%s4582 + $0xa4] sm:$0x1] %v4679
        %v4681 = vld [vmem:[%s4582 + $0xa8] sm:$0xf]
        %v4682 = vsel %vm949, %v4506, %v4681
        %4683 = vst [vmem:[%s4582 + $0xa8] sm:$0xf] %v4682
        %4684 = vst.msk [vmem:[%s4582 + $0xac] sm:$0xf] %vm225, %v4515
        %v4685 = vld [vmem:[%s4582 + $0xb0] sm:$0x1]
        %v4686 = vsel %vm236, %v4516, %v4685
        %4687 = vst [vmem:[%s4582 + $0xb0] sm:$0x1] %v4686
        %v4688 = vld [vmem:[%s4582 + $0xb4] sm:$0xf]
        %v4689 = vsel %vm949, %v4523, %v4688
        %4690 = vst [vmem:[%s4582 + $0xb4] sm:$0xf] %v4689
        %4691 = vst.msk [vmem:[%s4582 + $0xb8] sm:$0xf] %vm225, %v4532
        %v4692 = vld [vmem:[%s4582 + $0xbc] sm:$0x1]
        %v4693 = vsel %vm236, %v4533, %v4692
        %4694 = vst [vmem:[%s4582 + $0xbc] sm:$0x1] %v4693
        %v4695 = vld [vmem:[#allocation3] sm:$0xf]
        %v4696 = vld [vmem:[#allocation3 + $0x4] sm:$0xf]
        %v4697 = vld [vmem:[#allocation3 + $0xc] sm:$0xf]
        %v4698 = vld [vmem:[#allocation3 + $0x10] sm:$0xf]
        %v4699 = vld [vmem:[#allocation3 + $0x18] sm:$0xf]
        %v4700 = vld [vmem:[#allocation3 + $0x1c] sm:$0xf]
        %v4701 = vld [vmem:[#allocation3 + $0x24] sm:$0xf]
        %v4702 = vld [vmem:[#allocation3 + $0x28] sm:$0xf]
        %v4703 = vld [vmem:[#allocation3 + $0x30] sm:$0xf]
        %v4704 = vld [vmem:[#allocation3 + $0x34] sm:$0xf]
        %v4705 = vld [vmem:[#allocation3 + $0x3c] sm:$0xf]
        %v4706 = vld [vmem:[#allocation3 + $0x40] sm:$0xf]
        %v4707 = vld [vmem:[#allocation3 + $0x48] sm:$0xf]
        %v4708 = vld [vmem:[#allocation3 + $0x4c] sm:$0xf]
        %v4709 = vld [vmem:[#allocation3 + $0x54] sm:$0xf]
        %v4710 = vld [vmem:[#allocation3 + $0x58] sm:$0xf]
        %v4711 = vld [vmem:[#allocation3 + $0x60] sm:$0xf]
        %v4712 = vld [vmem:[#allocation3 + $0x64] sm:$0xf]
        %v4713 = vld [vmem:[#allocation3 + $0x6c] sm:$0xf]
        %v4714 = vld [vmem:[#allocation3 + $0x70] sm:$0xf]
        %v4715 = vld [vmem:[#allocation3 + $0x78] sm:$0xf]
        %v4716 = vld [vmem:[#allocation3 + $0x7c] sm:$0xf]
        %v4717 = vld [vmem:[#allocation3 + $0x84] sm:$0xf]
        %v4718 = vld [vmem:[#allocation3 + $0x88] sm:$0xf]
        %v4719 = vld [vmem:[#allocation3 + $0x90] sm:$0xf]
        %v4720 = vld [vmem:[#allocation3 + $0x94] sm:$0xf]
        %v4721 = vld [vmem:[#allocation3 + $0x9c] sm:$0xf]
        %v4722 = vld [vmem:[#allocation3 + $0xa0] sm:$0xf]
        %v4723 = vld [vmem:[#allocation3 + $0xa8] sm:$0xf]
        %v4724 = vld [vmem:[#allocation3 + $0xac] sm:$0xf]
        %v4725 = vld [vmem:[#allocation3 + $0xb4] sm:$0xf]
        %v4726 = vld [vmem:[#allocation3 + $0xb8] sm:$0xf]
        %v4727 = vld [vmem:[#allocation3 + $0x8] sm:$0x1]
        %v4728 = vld [vmem:[#allocation3 + $0x14] sm:$0x1]
        %v4729 = vld [vmem:[#allocation3 + $0x20] sm:$0x1]
        %v4730 = vld [vmem:[#allocation3 + $0x2c] sm:$0x1]
        %v4731 = vld [vmem:[#allocation3 + $0x38] sm:$0x1]
        %v4732 = vld [vmem:[#allocation3 + $0x44] sm:$0x1]
        %v4733 = vld [vmem:[#allocation3 + $0x50] sm:$0x1]
        %v4734 = vld [vmem:[#allocation3 + $0x5c] sm:$0x1]
        %v4735 = vld [vmem:[#allocation3 + $0x68] sm:$0x1]
        %v4736 = vld [vmem:[#allocation3 + $0x74] sm:$0x1]
        %v4737 = vld [vmem:[#allocation3 + $0x80] sm:$0x1]
        %v4738 = vld [vmem:[#allocation3 + $0x8c] sm:$0x1]
        %v4739 = vld [vmem:[#allocation3 + $0x98] sm:$0x1]
        %v4740 = vld [vmem:[#allocation3 + $0xa4] sm:$0x1]
        %v4741 = vld [vmem:[#allocation3 + $0xb0] sm:$0x1]
        %v4742 = vld [vmem:[#allocation3 + $0xbc] sm:$0x1]
        %v4744 = vshrl.u32 %v4695, 16
        %v4746 = vrot.slane %v4744, 4
        %v4747 = vshll.u32 %v4695, 16
        %v4749 = vrot.slane %v4747, 5
        %v4750 = vor.u32 %v4746, %v4749
        %v4751 = vrot.slane %v4750, 4
        %v4753 = vshll.u32 %v4696, 16
        %v4755 = vrot.slane %v4753, 5
        %v4756 = vsel %vm1112, %v4751, %v4755
        %v4757 = vshrl.u32 %v4696, 16
        %v4759 = vrot.slane %v4757, 4
        %v4760 = vor.u32 %v4759, %v4755
        %v4761 = vrot.slane %v4760, 4
        %v4763 = vshll.u32 %v4727, 16
        %v4765 = vrot.slane %v4763, 5
        %v4766 = vsel %vm1112, %v4761, %v4765
        %v4768 = vshrl.u32 %v4697, 16
        %v4770 = vrot.slane %v4768, 4
        %v4771 = vshll.u32 %v4697, 16
        %v4773 = vrot.slane %v4771, 5
        %v4774 = vor.u32 %v4770, %v4773
        %v4775 = vrot.slane %v4774, 4
        %v4777 = vshll.u32 %v4698, 16
        %v4779 = vrot.slane %v4777, 5
        %v4780 = vsel %vm1112, %v4775, %v4779
        %v4781 = vshrl.u32 %v4698, 16
        %v4783 = vrot.slane %v4781, 4
        %v4784 = vor.u32 %v4783, %v4779
        %v4785 = vrot.slane %v4784, 4
        %v4787 = vshll.u32 %v4728, 16
        %v4789 = vrot.slane %v4787, 5
        %v4790 = vsel %vm1112, %v4785, %v4789
        %v4792 = vshrl.u32 %v4699, 16
        %v4794 = vrot.slane %v4792, 4
        %v4795 = vshll.u32 %v4699, 16
        %v4797 = vrot.slane %v4795, 5
        %v4798 = vor.u32 %v4794, %v4797
        %v4799 = vrot.slane %v4798, 4
        %v4801 = vshll.u32 %v4700, 16
        %v4803 = vrot.slane %v4801, 5
        %v4804 = vsel %vm1112, %v4799, %v4803
        %v4805 = vshrl.u32 %v4700, 16
        %v4807 = vrot.slane %v4805, 4
        %v4808 = vor.u32 %v4807, %v4803
        %v4809 = vrot.slane %v4808, 4
        %v4811 = vshll.u32 %v4729, 16
        %v4813 = vrot.slane %v4811, 5
        %v4814 = vsel %vm1112, %v4809, %v4813
        %v4816 = vshrl.u32 %v4701, 16
        %v4818 = vrot.slane %v4816, 4
        %v4819 = vshll.u32 %v4701, 16
        %v4821 = vrot.slane %v4819, 5
        %v4822 = vor.u32 %v4818, %v4821
        %v4823 = vrot.slane %v4822, 4
        %v4825 = vshll.u32 %v4702, 16
        %v4827 = vrot.slane %v4825, 5
        %v4828 = vsel %vm1112, %v4823, %v4827
        %v4829 = vshrl.u32 %v4702, 16
        %v4831 = vrot.slane %v4829, 4
        %v4832 = vor.u32 %v4831, %v4827
        %v4833 = vrot.slane %v4832, 4
        %v4835 = vshll.u32 %v4730, 16
        %v4837 = vrot.slane %v4835, 5
        %v4838 = vsel %vm1112, %v4833, %v4837
        %v4840 = vshrl.u32 %v4703, 16
        %v4842 = vrot.slane %v4840, 4
        %v4843 = vshll.u32 %v4703, 16
        %v4845 = vrot.slane %v4843, 5
        %v4846 = vor.u32 %v4842, %v4845
        %v4847 = vrot.slane %v4846, 4
        %v4849 = vshll.u32 %v4704, 16
        %v4851 = vrot.slane %v4849, 5
        %v4852 = vsel %vm1112, %v4847, %v4851
        %v4853 = vshrl.u32 %v4704, 16
        %v4855 = vrot.slane %v4853, 4
        %v4856 = vor.u32 %v4855, %v4851
        %v4857 = vrot.slane %v4856, 4
        %v4859 = vshll.u32 %v4731, 16
        %v4861 = vrot.slane %v4859, 5
        %v4862 = vsel %vm1112, %v4857, %v4861
        %v4864 = vshrl.u32 %v4705, 16
        %v4866 = vrot.slane %v4864, 4
        %v4867 = vshll.u32 %v4705, 16
        %v4869 = vrot.slane %v4867, 5
        %v4870 = vor.u32 %v4866, %v4869
        %v4871 = vrot.slane %v4870, 4
        %v4873 = vshll.u32 %v4706, 16
        %v4875 = vrot.slane %v4873, 5
        %v4876 = vsel %vm1112, %v4871, %v4875
        %v4877 = vshrl.u32 %v4706, 16
        %v4879 = vrot.slane %v4877, 4
        %v4880 = vor.u32 %v4879, %v4875
        %v4881 = vrot.slane %v4880, 4
        %v4883 = vshll.u32 %v4732, 16
        %v4885 = vrot.slane %v4883, 5
        %v4886 = vsel %vm1112, %v4881, %v4885
        %v4888 = vshrl.u32 %v4707, 16
        %v4890 = vrot.slane %v4888, 4
        %v4891 = vshll.u32 %v4707, 16
        %v4893 = vrot.slane %v4891, 5
        %v4894 = vor.u32 %v4890, %v4893
        %v4895 = vrot.slane %v4894, 4
        %v4897 = vshll.u32 %v4708, 16
        %v4899 = vrot.slane %v4897, 5
        %v4900 = vsel %vm1112, %v4895, %v4899
        %v4901 = vshrl.u32 %v4708, 16
        %v4903 = vrot.slane %v4901, 4
        %v4904 = vor.u32 %v4903, %v4899
        %v4905 = vrot.slane %v4904, 4
        %v4907 = vshll.u32 %v4733, 16
        %v4909 = vrot.slane %v4907, 5
        %v4910 = vsel %vm1112, %v4905, %v4909
        %v4912 = vshrl.u32 %v4709, 16
        %v4914 = vrot.slane %v4912, 4
        %v4915 = vshll.u32 %v4709, 16
        %v4917 = vrot.slane %v4915, 5
        %v4918 = vor.u32 %v4914, %v4917
        %v4919 = vrot.slane %v4918, 4
        %v4921 = vshll.u32 %v4710, 16
        %v4923 = vrot.slane %v4921, 5
        %v4924 = vsel %vm1112, %v4919, %v4923
        %v4925 = vshrl.u32 %v4710, 16
        %v4927 = vrot.slane %v4925, 4
        %v4928 = vor.u32 %v4927, %v4923
        %v4929 = vrot.slane %v4928, 4
        %v4931 = vshll.u32 %v4734, 16
        %v4933 = vrot.slane %v4931, 5
        %v4934 = vsel %vm1112, %v4929, %v4933
        %v4936 = vshrl.u32 %v4711, 16
        %v4938 = vrot.slane %v4936, 4
        %v4939 = vshll.u32 %v4711, 16
        %v4941 = vrot.slane %v4939, 5
        %v4942 = vor.u32 %v4938, %v4941
        %v4943 = vrot.slane %v4942, 4
        %v4945 = vshll.u32 %v4712, 16
        %v4947 = vrot.slane %v4945, 5
        %v4948 = vsel %vm1112, %v4943, %v4947
        %v4949 = vshrl.u32 %v4712, 16
        %v4951 = vrot.slane %v4949, 4
        %v4952 = vor.u32 %v4951, %v4947
        %v4953 = vrot.slane %v4952, 4
        %v4955 = vshll.u32 %v4735, 16
        %v4957 = vrot.slane %v4955, 5
        %v4958 = vsel %vm1112, %v4953, %v4957
        %v4960 = vshrl.u32 %v4713, 16
        %v4962 = vrot.slane %v4960, 4
        %v4963 = vshll.u32 %v4713, 16
        %v4965 = vrot.slane %v4963, 5
        %v4966 = vor.u32 %v4962, %v4965
        %v4967 = vrot.slane %v4966, 4
        %v4969 = vshll.u32 %v4714, 16
        %v4971 = vrot.slane %v4969, 5
        %v4972 = vsel %vm1112, %v4967, %v4971
        %v4973 = vshrl.u32 %v4714, 16
        %v4975 = vrot.slane %v4973, 4
        %v4976 = vor.u32 %v4975, %v4971
        %v4977 = vrot.slane %v4976, 4
        %v4979 = vshll.u32 %v4736, 16
        %v4981 = vrot.slane %v4979, 5
        %v4982 = vsel %vm1112, %v4977, %v4981
        %v4984 = vshrl.u32 %v4715, 16
        %v4986 = vrot.slane %v4984, 4
        %v4987 = vshll.u32 %v4715, 16
        %v4989 = vrot.slane %v4987, 5
        %v4990 = vor.u32 %v4986, %v4989
        %v4991 = vrot.slane %v4990, 4
        %v4993 = vshll.u32 %v4716, 16
        %v4995 = vrot.slane %v4993, 5
        %v4996 = vsel %vm1112, %v4991, %v4995
        %v4997 = vshrl.u32 %v4716, 16
        %v4999 = vrot.slane %v4997, 4
        %v5000 = vor.u32 %v4999, %v4995
        %v5001 = vrot.slane %v5000, 4
        %v5003 = vshll.u32 %v4737, 16
        %v5005 = vrot.slane %v5003, 5
        %v5006 = vsel %vm1112, %v5001, %v5005
        %v5008 = vshrl.u32 %v4717, 16
        %v5010 = vrot.slane %v5008, 4
        %v5011 = vshll.u32 %v4717, 16
        %v5013 = vrot.slane %v5011, 5
        %v5014 = vor.u32 %v5010, %v5013
        %v5015 = vrot.slane %v5014, 4
        %v5017 = vshll.u32 %v4718, 16
        %v5019 = vrot.slane %v5017, 5
        %v5020 = vsel %vm1112, %v5015, %v5019
        %v5021 = vshrl.u32 %v4718, 16
        %v5023 = vrot.slane %v5021, 4
        %v5024 = vor.u32 %v5023, %v5019
        %v5025 = vrot.slane %v5024, 4
        %v5027 = vshll.u32 %v4738, 16
        %v5029 = vrot.slane %v5027, 5
        %v5030 = vsel %vm1112, %v5025, %v5029
        %v5032 = vshrl.u32 %v4719, 16
        %v5034 = vrot.slane %v5032, 4
        %v5035 = vshll.u32 %v4719, 16
        %v5037 = vrot.slane %v5035, 5
        %v5038 = vor.u32 %v5034, %v5037
        %v5039 = vrot.slane %v5038, 4
        %v5041 = vshll.u32 %v4720, 16
        %v5043 = vrot.slane %v5041, 5
        %v5044 = vsel %vm1112, %v5039, %v5043
        %v5045 = vshrl.u32 %v4720, 16
        %v5047 = vrot.slane %v5045, 4
        %v5048 = vor.u32 %v5047, %v5043
        %v5049 = vrot.slane %v5048, 4
        %v5051 = vshll.u32 %v4739, 16
        %v5053 = vrot.slane %v5051, 5
        %v5054 = vsel %vm1112, %v5049, %v5053
        %v5056 = vshrl.u32 %v4721, 16
        %v5058 = vrot.slane %v5056, 4
        %v5059 = vshll.u32 %v4721, 16
        %v5061 = vrot.slane %v5059, 5
        %v5062 = vor.u32 %v5058, %v5061
        %v5063 = vrot.slane %v5062, 4
        %v5065 = vshll.u32 %v4722, 16
        %v5067 = vrot.slane %v5065, 5
        %v5068 = vsel %vm1112, %v5063, %v5067
        %v5069 = vshrl.u32 %v4722, 16
        %v5071 = vrot.slane %v5069, 4
        %v5072 = vor.u32 %v5071, %v5067
        %v5073 = vrot.slane %v5072, 4
        %v5075 = vshll.u32 %v4740, 16
        %v5077 = vrot.slane %v5075, 5
        %v5078 = vsel %vm1112, %v5073, %v5077
        %v5080 = vshrl.u32 %v4723, 16
        %v5082 = vrot.slane %v5080, 4
        %v5083 = vshll.u32 %v4723, 16
        %v5085 = vrot.slane %v5083, 5
        %v5086 = vor.u32 %v5082, %v5085
        %v5087 = vrot.slane %v5086, 4
        %v5089 = vshll.u32 %v4724, 16
        %v5091 = vrot.slane %v5089, 5
        %v5092 = vsel %vm1112, %v5087, %v5091
        %v5093 = vshrl.u32 %v4724, 16
        %v5095 = vrot.slane %v5093, 4
        %v5096 = vor.u32 %v5095, %v5091
        %v5097 = vrot.slane %v5096, 4
        %v5099 = vshll.u32 %v4741, 16
        %v5101 = vrot.slane %v5099, 5
        %v5102 = vsel %vm1112, %v5097, %v5101
        %v5104 = vshrl.u32 %v4725, 16
        %v5106 = vrot.slane %v5104, 4
        %v5107 = vshll.u32 %v4725, 16
        %v5109 = vrot.slane %v5107, 5
        %v5110 = vor.u32 %v5106, %v5109
        %v5111 = vrot.slane %v5110, 4
        %v5113 = vshll.u32 %v4726, 16
        %v5115 = vrot.slane %v5113, 5
        %v5116 = vsel %vm1112, %v5111, %v5115
        %v5117 = vshrl.u32 %v4726, 16
        %v5119 = vrot.slane %v5117, 4
        %v5120 = vor.u32 %v5119, %v5115
        %v5121 = vrot.slane %v5120, 4
        %v5123 = vshll.u32 %v4742, 16
        %v5125 = vrot.slane %v5123, 5
        %v5126 = vsel %vm1112, %v5121, %v5125
        %v5127 = vld [vmem:[#allocation3] sm:$0xe]
        %v5128 = vld [vmem:[#allocation3 + $0xc] sm:$0xe]
        %v5129 = vld [vmem:[#allocation3 + $0x18] sm:$0xe]
        %v5130 = vld [vmem:[#allocation3 + $0x24] sm:$0xe]
        %v5131 = vld [vmem:[#allocation3 + $0x30] sm:$0xe]
        %v5132 = vld [vmem:[#allocation3 + $0x3c] sm:$0xe]
        %v5133 = vld [vmem:[#allocation3 + $0x48] sm:$0xe]
        %v5134 = vld [vmem:[#allocation3 + $0x54] sm:$0xe]
        %v5135 = vld [vmem:[#allocation3 + $0x60] sm:$0xe]
        %v5136 = vld [vmem:[#allocation3 + $0x6c] sm:$0xe]
        %v5137 = vld [vmem:[#allocation3 + $0x78] sm:$0xe]
        %v5138 = vld [vmem:[#allocation3 + $0x84] sm:$0xe]
        %v5139 = vld [vmem:[#allocation3 + $0x90] sm:$0xe]
        %v5140 = vld [vmem:[#allocation3 + $0x9c] sm:$0xe]
        %v5141 = vld [vmem:[#allocation3 + $0xa8] sm:$0xe]
        %v5142 = vld [vmem:[#allocation3 + $0xb4] sm:$0xe]
        %v5191 = vrot.slane %v5127, 5
        %v5192 = vrot.slane %v5191, 4
        %v5193 = vrot.slane %v4696, 5
        %v5194 = vsel %vm1563, %v5192, %v5193
        %v5195 = vrot.slane %v5193, 4
        %v5196 = vrot.slane %v4727, 5
        %v5197 = vsel %vm1563, %v5195, %v5196
        %v5198 = vrot.slane %v5128, 5
        %v5199 = vrot.slane %v5198, 4
        %v5200 = vrot.slane %v4698, 5
        %v5201 = vsel %vm1563, %v5199, %v5200
        %v5202 = vrot.slane %v5200, 4
        %v5203 = vrot.slane %v4728, 5
        %v5204 = vsel %vm1563, %v5202, %v5203
        %v5205 = vrot.slane %v5129, 5
        %v5206 = vrot.slane %v5205, 4
        %v5207 = vrot.slane %v4700, 5
        %v5208 = vsel %vm1563, %v5206, %v5207
        %v5209 = vrot.slane %v5207, 4
        %v5210 = vrot.slane %v4729, 5
        %v5211 = vsel %vm1563, %v5209, %v5210
        %v5212 = vrot.slane %v5130, 5
        %v5213 = vrot.slane %v5212, 4
        %v5214 = vrot.slane %v4702, 5
        %v5215 = vsel %vm1563, %v5213, %v5214
        %v5216 = vrot.slane %v5214, 4
        %v5217 = vrot.slane %v4730, 5
        %v5218 = vsel %vm1563, %v5216, %v5217
        %v5219 = vrot.slane %v5131, 5
        %v5220 = vrot.slane %v5219, 4
        %v5221 = vrot.slane %v4704, 5
        %v5222 = vsel %vm1563, %v5220, %v5221
        %v5223 = vrot.slane %v5221, 4
        %v5224 = vrot.slane %v4731, 5
        %v5225 = vsel %vm1563, %v5223, %v5224
        %v5226 = vrot.slane %v5132, 5
        %v5227 = vrot.slane %v5226, 4
        %v5228 = vrot.slane %v4706, 5
        %v5229 = vsel %vm1563, %v5227, %v5228
        %v5230 = vrot.slane %v5228, 4
        %v5231 = vrot.slane %v4732, 5
        %v5232 = vsel %vm1563, %v5230, %v5231
        %v5233 = vrot.slane %v5133, 5
        %v5234 = vrot.slane %v5233, 4
        %v5235 = vrot.slane %v4708, 5
        %v5236 = vsel %vm1563, %v5234, %v5235
        %v5237 = vrot.slane %v5235, 4
        %v5238 = vrot.slane %v4733, 5
        %v5239 = vsel %vm1563, %v5237, %v5238
        %v5240 = vrot.slane %v5134, 5
        %v5241 = vrot.slane %v5240, 4
        %v5242 = vrot.slane %v4710, 5
        %v5243 = vsel %vm1563, %v5241, %v5242
        %v5244 = vrot.slane %v5242, 4
        %v5245 = vrot.slane %v4734, 5
        %v5246 = vsel %vm1563, %v5244, %v5245
        %v5247 = vrot.slane %v5135, 5
        %v5248 = vrot.slane %v5247, 4
        %v5249 = vrot.slane %v4712, 5
        %v5250 = vsel %vm1563, %v5248, %v5249
        %v5251 = vrot.slane %v5249, 4
        %v5252 = vrot.slane %v4735, 5
        %v5253 = vsel %vm1563, %v5251, %v5252
        %v5254 = vrot.slane %v5136, 5
        %v5255 = vrot.slane %v5254, 4
        %v5256 = vrot.slane %v4714, 5
        %v5257 = vsel %vm1563, %v5255, %v5256
        %v5258 = vrot.slane %v5256, 4
        %v5259 = vrot.slane %v4736, 5
        %v5260 = vsel %vm1563, %v5258, %v5259
        %v5261 = vrot.slane %v5137, 5
        %v5262 = vrot.slane %v5261, 4
        %v5263 = vrot.slane %v4716, 5
        %v5264 = vsel %vm1563, %v5262, %v5263
        %v5265 = vrot.slane %v5263, 4
        %v5266 = vrot.slane %v4737, 5
        %v5267 = vsel %vm1563, %v5265, %v5266
        %v5268 = vrot.slane %v5138, 5
        %v5269 = vrot.slane %v5268, 4
        %v5270 = vrot.slane %v4718, 5
        %v5271 = vsel %vm1563, %v5269, %v5270
        %v5272 = vrot.slane %v5270, 4
        %v5273 = vrot.slane %v4738, 5
        %v5274 = vsel %vm1563, %v5272, %v5273
        %v5275 = vrot.slane %v5139, 5
        %v5276 = vrot.slane %v5275, 4
        %v5277 = vrot.slane %v4720, 5
        %v5278 = vsel %vm1563, %v5276, %v5277
        %v5279 = vrot.slane %v5277, 4
        %v5280 = vrot.slane %v4739, 5
        %v5281 = vsel %vm1563, %v5279, %v5280
        %v5282 = vrot.slane %v5140, 5
        %v5283 = vrot.slane %v5282, 4
        %v5284 = vrot.slane %v4722, 5
        %v5285 = vsel %vm1563, %v5283, %v5284
        %v5286 = vrot.slane %v5284, 4
        %v5287 = vrot.slane %v4740, 5
        %v5288 = vsel %vm1563, %v5286, %v5287
        %v5289 = vrot.slane %v5141, 5
        %v5290 = vrot.slane %v5289, 4
        %v5291 = vrot.slane %v4724, 5
        %v5292 = vsel %vm1563, %v5290, %v5291
        %v5293 = vrot.slane %v5291, 4
        %v5294 = vrot.slane %v4741, 5
        %v5295 = vsel %vm1563, %v5293, %v5294
        %v5296 = vrot.slane %v5142, 5
        %v5297 = vrot.slane %v5296, 4
        %v5298 = vrot.slane %v4726, 5
        %v5299 = vsel %vm1563, %v5297, %v5298
        %v5300 = vrot.slane %v5298, 4
        %v5301 = vrot.slane %v4742, 5
        %v5302 = vsel %vm1563, %v5300, %v5301
        %v5303 = vld [vmem:[%s4582] sm:$0xf]
        %v5304 = vld [vmem:[%s4582 + $0x4] sm:$0xf]
        %v5305 = vld [vmem:[%s4582 + $0xc] sm:$0xf]
        %v5306 = vld [vmem:[%s4582 + $0x10] sm:$0xf]
        %v5307 = vld [vmem:[%s4582 + $0x18] sm:$0xf]
        %v5308 = vld [vmem:[%s4582 + $0x1c] sm:$0xf]
        %v5309 = vld [vmem:[%s4582 + $0x24] sm:$0xf]
        %v5310 = vld [vmem:[%s4582 + $0x28] sm:$0xf]
        %v5311 = vld [vmem:[%s4582 + $0x30] sm:$0xf]
        %v5312 = vld [vmem:[%s4582 + $0x34] sm:$0xf]
        %v5313 = vld [vmem:[%s4582 + $0x3c] sm:$0xf]
        %v5314 = vld [vmem:[%s4582 + $0x40] sm:$0xf]
        %v5315 = vld [vmem:[%s4582 + $0x48] sm:$0xf]
        %v5316 = vld [vmem:[%s4582 + $0x4c] sm:$0xf]
        %v5317 = vld [vmem:[%s4582 + $0x54] sm:$0xf]
        %v5318 = vld [vmem:[%s4582 + $0x58] sm:$0xf]
        %v5319 = vld [vmem:[%s4582 + $0x60] sm:$0xf]
        %v5320 = vld [vmem:[%s4582 + $0x64] sm:$0xf]
        %v5321 = vld [vmem:[%s4582 + $0x6c] sm:$0xf]
        %v5322 = vld [vmem:[%s4582 + $0x70] sm:$0xf]
        %v5323 = vld [vmem:[%s4582 + $0x78] sm:$0xf]
        %v5324 = vld [vmem:[%s4582 + $0x7c] sm:$0xf]
        %v5325 = vld [vmem:[%s4582 + $0x84] sm:$0xf]
        %v5326 = vld [vmem:[%s4582 + $0x88] sm:$0xf]
        %v5327 = vld [vmem:[%s4582 + $0x90] sm:$0xf]
        %v5328 = vld [vmem:[%s4582 + $0x94] sm:$0xf]
        %v5329 = vld [vmem:[%s4582 + $0x9c] sm:$0xf]
        %v5330 = vld [vmem:[%s4582 + $0xa0] sm:$0xf]
        %v5331 = vld [vmem:[%s4582 + $0xa8] sm:$0xf]
        %v5332 = vld [vmem:[%s4582 + $0xac] sm:$0xf]
        %v5333 = vld [vmem:[%s4582 + $0xb4] sm:$0xf]
        %v5334 = vld [vmem:[%s4582 + $0xb8] sm:$0xf]
        %v5335 = vld [vmem:[%s4582 + $0x8] sm:$0x1]
        %v5336 = vld [vmem:[%s4582 + $0x14] sm:$0x1]
        %v5337 = vld [vmem:[%s4582 + $0x20] sm:$0x1]
        %v5338 = vld [vmem:[%s4582 + $0x2c] sm:$0x1]
        %v5339 = vld [vmem:[%s4582 + $0x38] sm:$0x1]
        %v5340 = vld [vmem:[%s4582 + $0x44] sm:$0x1]
        %v5341 = vld [vmem:[%s4582 + $0x50] sm:$0x1]
        %v5342 = vld [vmem:[%s4582 + $0x5c] sm:$0x1]
        %v5343 = vld [vmem:[%s4582 + $0x68] sm:$0x1]
        %v5344 = vld [vmem:[%s4582 + $0x74] sm:$0x1]
        %v5345 = vld [vmem:[%s4582 + $0x80] sm:$0x1]
        %v5346 = vld [vmem:[%s4582 + $0x8c] sm:$0x1]
        %v5347 = vld [vmem:[%s4582 + $0x98] sm:$0x1]
        %v5348 = vld [vmem:[%s4582 + $0xa4] sm:$0x1]
        %v5349 = vld [vmem:[%s4582 + $0xb0] sm:$0x1]
        %v5350 = vld [vmem:[%s4582 + $0xbc] sm:$0x1]
        %v5352 = vshrl.u32 %v5303, 16
        %v5354 = vrot.slane %v5352, 4
        %v5355 = vshll.u32 %v5303, 16
        %v5357 = vrot.slane %v5355, 5
        %v5358 = vor.u32 %v5354, %v5357
        %v5359 = vrot.slane %v5358, 4
        %v5361 = vshll.u32 %v5304, 16
        %v5363 = vrot.slane %v5361, 5
        %v5364 = vsel %vm1112, %v5359, %v5363
        %v5365 = vshrl.u32 %v5304, 16
        %v5367 = vrot.slane %v5365, 4
        %v5368 = vor.u32 %v5367, %v5363
        %v5369 = vrot.slane %v5368, 4
        %v5371 = vshll.u32 %v5335, 16
        %v5373 = vrot.slane %v5371, 5
        %v5374 = vsel %vm1112, %v5369, %v5373
        %v5376 = vshrl.u32 %v5305, 16
        %v5378 = vrot.slane %v5376, 4
        %v5379 = vshll.u32 %v5305, 16
        %v5381 = vrot.slane %v5379, 5
        %v5382 = vor.u32 %v5378, %v5381
        %v5383 = vrot.slane %v5382, 4
        %v5385 = vshll.u32 %v5306, 16
        %v5387 = vrot.slane %v5385, 5
        %v5388 = vsel %vm1112, %v5383, %v5387
        %v5389 = vshrl.u32 %v5306, 16
        %v5391 = vrot.slane %v5389, 4
        %v5392 = vor.u32 %v5391, %v5387
        %v5393 = vrot.slane %v5392, 4
        %v5395 = vshll.u32 %v5336, 16
        %v5397 = vrot.slane %v5395, 5
        %v5398 = vsel %vm1112, %v5393, %v5397
        %v5400 = vshrl.u32 %v5307, 16
        %v5402 = vrot.slane %v5400, 4
        %v5403 = vshll.u32 %v5307, 16
        %v5405 = vrot.slane %v5403, 5
        %v5406 = vor.u32 %v5402, %v5405
        %v5407 = vrot.slane %v5406, 4
        %v5409 = vshll.u32 %v5308, 16
        %v5411 = vrot.slane %v5409, 5
        %v5412 = vsel %vm1112, %v5407, %v5411
        %v5413 = vshrl.u32 %v5308, 16
        %v5415 = vrot.slane %v5413, 4
        %v5416 = vor.u32 %v5415, %v5411
        %v5417 = vrot.slane %v5416, 4
        %v5419 = vshll.u32 %v5337, 16
        %v5421 = vrot.slane %v5419, 5
        %v5422 = vsel %vm1112, %v5417, %v5421
        %v5424 = vshrl.u32 %v5309, 16
        %v5426 = vrot.slane %v5424, 4
        %v5427 = vshll.u32 %v5309, 16
        %v5429 = vrot.slane %v5427, 5
        %v5430 = vor.u32 %v5426, %v5429
        %v5431 = vrot.slane %v5430, 4
        %v5433 = vshll.u32 %v5310, 16
        %v5435 = vrot.slane %v5433, 5
        %v5436 = vsel %vm1112, %v5431, %v5435
        %v5437 = vshrl.u32 %v5310, 16
        %v5439 = vrot.slane %v5437, 4
        %v5440 = vor.u32 %v5439, %v5435
        %v5441 = vrot.slane %v5440, 4
        %v5443 = vshll.u32 %v5338, 16
        %v5445 = vrot.slane %v5443, 5
        %v5446 = vsel %vm1112, %v5441, %v5445
        %v5448 = vshrl.u32 %v5311, 16
        %v5450 = vrot.slane %v5448, 4
        %v5451 = vshll.u32 %v5311, 16
        %v5453 = vrot.slane %v5451, 5
        %v5454 = vor.u32 %v5450, %v5453
        %v5455 = vrot.slane %v5454, 4
        %v5457 = vshll.u32 %v5312, 16
        %v5459 = vrot.slane %v5457, 5
        %v5460 = vsel %vm1112, %v5455, %v5459
        %v5461 = vshrl.u32 %v5312, 16
        %v5463 = vrot.slane %v5461, 4
        %v5464 = vor.u32 %v5463, %v5459
        %v5465 = vrot.slane %v5464, 4
        %v5467 = vshll.u32 %v5339, 16
        %v5469 = vrot.slane %v5467, 5
        %v5470 = vsel %vm1112, %v5465, %v5469
        %v5472 = vshrl.u32 %v5313, 16
        %v5474 = vrot.slane %v5472, 4
        %v5475 = vshll.u32 %v5313, 16
        %v5477 = vrot.slane %v5475, 5
        %v5478 = vor.u32 %v5474, %v5477
        %v5479 = vrot.slane %v5478, 4
        %v5481 = vshll.u32 %v5314, 16
        %v5483 = vrot.slane %v5481, 5
        %v5484 = vsel %vm1112, %v5479, %v5483
        %v5485 = vshrl.u32 %v5314, 16
        %v5487 = vrot.slane %v5485, 4
        %v5488 = vor.u32 %v5487, %v5483
        %v5489 = vrot.slane %v5488, 4
        %v5491 = vshll.u32 %v5340, 16
        %v5493 = vrot.slane %v5491, 5
        %v5494 = vsel %vm1112, %v5489, %v5493
        %v5496 = vshrl.u32 %v5315, 16
        %v5498 = vrot.slane %v5496, 4
        %v5499 = vshll.u32 %v5315, 16
        %v5501 = vrot.slane %v5499, 5
        %v5502 = vor.u32 %v5498, %v5501
        %v5503 = vrot.slane %v5502, 4
        %v5505 = vshll.u32 %v5316, 16
        %v5507 = vrot.slane %v5505, 5
        %v5508 = vsel %vm1112, %v5503, %v5507
        %v5509 = vshrl.u32 %v5316, 16
        %v5511 = vrot.slane %v5509, 4
        %v5512 = vor.u32 %v5511, %v5507
        %v5513 = vrot.slane %v5512, 4
        %v5515 = vshll.u32 %v5341, 16
        %v5517 = vrot.slane %v5515, 5
        %v5518 = vsel %vm1112, %v5513, %v5517
        %v5520 = vshrl.u32 %v5317, 16
        %v5522 = vrot.slane %v5520, 4
        %v5523 = vshll.u32 %v5317, 16
        %v5525 = vrot.slane %v5523, 5
        %v5526 = vor.u32 %v5522, %v5525
        %v5527 = vrot.slane %v5526, 4
        %v5529 = vshll.u32 %v5318, 16
        %v5531 = vrot.slane %v5529, 5
        %v5532 = vsel %vm1112, %v5527, %v5531
        %v5533 = vshrl.u32 %v5318, 16
        %v5535 = vrot.slane %v5533, 4
        %v5536 = vor.u32 %v5535, %v5531
        %v5537 = vrot.slane %v5536, 4
        %v5539 = vshll.u32 %v5342, 16
        %v5541 = vrot.slane %v5539, 5
        %v5542 = vsel %vm1112, %v5537, %v5541
        %v5544 = vshrl.u32 %v5319, 16
        %v5546 = vrot.slane %v5544, 4
        %v5547 = vshll.u32 %v5319, 16
        %v5549 = vrot.slane %v5547, 5
        %v5550 = vor.u32 %v5546, %v5549
        %v5551 = vrot.slane %v5550, 4
        %v5553 = vshll.u32 %v5320, 16
        %v5555 = vrot.slane %v5553, 5
        %v5556 = vsel %vm1112, %v5551, %v5555
        %v5557 = vshrl.u32 %v5320, 16
        %v5559 = vrot.slane %v5557, 4
        %v5560 = vor.u32 %v5559, %v5555
        %v5561 = vrot.slane %v5560, 4
        %v5563 = vshll.u32 %v5343, 16
        %v5565 = vrot.slane %v5563, 5
        %v5566 = vsel %vm1112, %v5561, %v5565
        %v5568 = vshrl.u32 %v5321, 16
        %v5570 = vrot.slane %v5568, 4
        %v5571 = vshll.u32 %v5321, 16
        %v5573 = vrot.slane %v5571, 5
        %v5574 = vor.u32 %v5570, %v5573
        %v5575 = vrot.slane %v5574, 4
        %v5577 = vshll.u32 %v5322, 16
        %v5579 = vrot.slane %v5577, 5
        %v5580 = vsel %vm1112, %v5575, %v5579
        %v5581 = vshrl.u32 %v5322, 16
        %v5583 = vrot.slane %v5581, 4
        %v5584 = vor.u32 %v5583, %v5579
        %v5585 = vrot.slane %v5584, 4
        %v5587 = vshll.u32 %v5344, 16
        %v5589 = vrot.slane %v5587, 5
        %v5590 = vsel %vm1112, %v5585, %v5589
        %v5592 = vshrl.u32 %v5323, 16
        %v5594 = vrot.slane %v5592, 4
        %v5595 = vshll.u32 %v5323, 16
        %v5597 = vrot.slane %v5595, 5
        %v5598 = vor.u32 %v5594, %v5597
        %v5599 = vrot.slane %v5598, 4
        %v5601 = vshll.u32 %v5324, 16
        %v5603 = vrot.slane %v5601, 5
        %v5604 = vsel %vm1112, %v5599, %v5603
        %v5605 = vshrl.u32 %v5324, 16
        %v5607 = vrot.slane %v5605, 4
        %v5608 = vor.u32 %v5607, %v5603
        %v5609 = vrot.slane %v5608, 4
        %v5611 = vshll.u32 %v5345, 16
        %v5613 = vrot.slane %v5611, 5
        %v5614 = vsel %vm1112, %v5609, %v5613
        %v5616 = vshrl.u32 %v5325, 16
        %v5618 = vrot.slane %v5616, 4
        %v5619 = vshll.u32 %v5325, 16
        %v5621 = vrot.slane %v5619, 5
        %v5622 = vor.u32 %v5618, %v5621
        %v5623 = vrot.slane %v5622, 4
        %v5625 = vshll.u32 %v5326, 16
        %v5627 = vrot.slane %v5625, 5
        %v5628 = vsel %vm1112, %v5623, %v5627
        %v5629 = vshrl.u32 %v5326, 16
        %v5631 = vrot.slane %v5629, 4
        %v5632 = vor.u32 %v5631, %v5627
        %v5633 = vrot.slane %v5632, 4
        %v5635 = vshll.u32 %v5346, 16
        %v5637 = vrot.slane %v5635, 5
        %v5638 = vsel %vm1112, %v5633, %v5637
        %v5640 = vshrl.u32 %v5327, 16
        %v5642 = vrot.slane %v5640, 4
        %v5643 = vshll.u32 %v5327, 16
        %v5645 = vrot.slane %v5643, 5
        %v5646 = vor.u32 %v5642, %v5645
        %v5647 = vrot.slane %v5646, 4
        %v5649 = vshll.u32 %v5328, 16
        %v5651 = vrot.slane %v5649, 5
        %v5652 = vsel %vm1112, %v5647, %v5651
        %v5653 = vshrl.u32 %v5328, 16
        %v5655 = vrot.slane %v5653, 4
        %v5656 = vor.u32 %v5655, %v5651
        %v5657 = vrot.slane %v5656, 4
        %v5659 = vshll.u32 %v5347, 16
        %v5661 = vrot.slane %v5659, 5
        %v5662 = vsel %vm1112, %v5657, %v5661
        %v5664 = vshrl.u32 %v5329, 16
        %v5666 = vrot.slane %v5664, 4
        %v5667 = vshll.u32 %v5329, 16
        %v5669 = vrot.slane %v5667, 5
        %v5670 = vor.u32 %v5666, %v5669
        %v5671 = vrot.slane %v5670, 4
        %v5673 = vshll.u32 %v5330, 16
        %v5675 = vrot.slane %v5673, 5
        %v5676 = vsel %vm1112, %v5671, %v5675
        %v5677 = vshrl.u32 %v5330, 16
        %v5679 = vrot.slane %v5677, 4
        %v5680 = vor.u32 %v5679, %v5675
        %v5681 = vrot.slane %v5680, 4
        %v5683 = vshll.u32 %v5348, 16
        %v5685 = vrot.slane %v5683, 5
        %v5686 = vsel %vm1112, %v5681, %v5685
        %v5688 = vshrl.u32 %v5331, 16
        %v5690 = vrot.slane %v5688, 4
        %v5691 = vshll.u32 %v5331, 16
        %v5693 = vrot.slane %v5691, 5
        %v5694 = vor.u32 %v5690, %v5693
        %v5695 = vrot.slane %v5694, 4
        %v5697 = vshll.u32 %v5332, 16
        %v5699 = vrot.slane %v5697, 5
        %v5700 = vsel %vm1112, %v5695, %v5699
        %v5701 = vshrl.u32 %v5332, 16
        %v5703 = vrot.slane %v5701, 4
        %v5704 = vor.u32 %v5703, %v5699
        %v5705 = vrot.slane %v5704, 4
        %v5707 = vshll.u32 %v5349, 16
        %v5709 = vrot.slane %v5707, 5
        %v5710 = vsel %vm1112, %v5705, %v5709
        %v5712 = vshrl.u32 %v5333, 16
        %v5714 = vrot.slane %v5712, 4
        %v5715 = vshll.u32 %v5333, 16
        %v5717 = vrot.slane %v5715, 5
        %v5718 = vor.u32 %v5714, %v5717
        %v5719 = vrot.slane %v5718, 4
        %v5721 = vshll.u32 %v5334, 16
        %v5723 = vrot.slane %v5721, 5
        %v5724 = vsel %vm1112, %v5719, %v5723
        %v5725 = vshrl.u32 %v5334, 16
        %v5727 = vrot.slane %v5725, 4
        %v5728 = vor.u32 %v5727, %v5723
        %v5729 = vrot.slane %v5728, 4
        %v5731 = vshll.u32 %v5350, 16
        %v5733 = vrot.slane %v5731, 5
        %v5734 = vsel %vm1112, %v5729, %v5733
        %v5735 = vld [vmem:[%s4582] sm:$0xe]
        %v5736 = vld [vmem:[%s4582 + $0xc] sm:$0xe]
        %v5737 = vld [vmem:[%s4582 + $0x18] sm:$0xe]
        %v5738 = vld [vmem:[%s4582 + $0x24] sm:$0xe]
        %v5739 = vld [vmem:[%s4582 + $0x30] sm:$0xe]
        %v5740 = vld [vmem:[%s4582 + $0x3c] sm:$0xe]
        %v5741 = vld [vmem:[%s4582 + $0x48] sm:$0xe]
        %v5742 = vld [vmem:[%s4582 + $0x54] sm:$0xe]
        %v5743 = vld [vmem:[%s4582 + $0x60] sm:$0xe]
        %v5744 = vld [vmem:[%s4582 + $0x6c] sm:$0xe]
        %v5745 = vld [vmem:[%s4582 + $0x78] sm:$0xe]
        %v5746 = vld [vmem:[%s4582 + $0x84] sm:$0xe]
        %v5747 = vld [vmem:[%s4582 + $0x90] sm:$0xe]
        %v5748 = vld [vmem:[%s4582 + $0x9c] sm:$0xe]
        %v5749 = vld [vmem:[%s4582 + $0xa8] sm:$0xe]
        %v5750 = vld [vmem:[%s4582 + $0xb4] sm:$0xe]
        %v5799 = vrot.slane %v5735, 5
        %v5800 = vrot.slane %v5799, 4
        %v5801 = vrot.slane %v5304, 5
        %v5802 = vsel %vm1563, %v5800, %v5801
        %v5803 = vrot.slane %v5801, 4
        %v5804 = vrot.slane %v5335, 5
        %v5805 = vsel %vm1563, %v5803, %v5804
        %v5806 = vrot.slane %v5736, 5
        %v5807 = vrot.slane %v5806, 4
        %v5808 = vrot.slane %v5306, 5
        %v5809 = vsel %vm1563, %v5807, %v5808
        %v5810 = vrot.slane %v5808, 4
        %v5811 = vrot.slane %v5336, 5
        %v5812 = vsel %vm1563, %v5810, %v5811
        %v5813 = vrot.slane %v5737, 5
        %v5814 = vrot.slane %v5813, 4
        %v5815 = vrot.slane %v5308, 5
        %v5816 = vsel %vm1563, %v5814, %v5815
        %v5817 = vrot.slane %v5815, 4
        %v5818 = vrot.slane %v5337, 5
        %v5819 = vsel %vm1563, %v5817, %v5818
        %v5820 = vrot.slane %v5738, 5
        %v5821 = vrot.slane %v5820, 4
        %v5822 = vrot.slane %v5310, 5
        %v5823 = vsel %vm1563, %v5821, %v5822
        %v5824 = vrot.slane %v5822, 4
        %v5825 = vrot.slane %v5338, 5
        %v5826 = vsel %vm1563, %v5824, %v5825
        %v5827 = vrot.slane %v5739, 5
        %v5828 = vrot.slane %v5827, 4
        %v5829 = vrot.slane %v5312, 5
        %v5830 = vsel %vm1563, %v5828, %v5829
        %v5831 = vrot.slane %v5829, 4
        %v5832 = vrot.slane %v5339, 5
        %v5833 = vsel %vm1563, %v5831, %v5832
        %v5834 = vrot.slane %v5740, 5
        %v5835 = vrot.slane %v5834, 4
        %v5836 = vrot.slane %v5314, 5
        %v5837 = vsel %vm1563, %v5835, %v5836
        %v5838 = vrot.slane %v5836, 4
        %v5839 = vrot.slane %v5340, 5
        %v5840 = vsel %vm1563, %v5838, %v5839
        %v5841 = vrot.slane %v5741, 5
        %v5842 = vrot.slane %v5841, 4
        %v5843 = vrot.slane %v5316, 5
        %v5844 = vsel %vm1563, %v5842, %v5843
        %v5845 = vrot.slane %v5843, 4
        %v5846 = vrot.slane %v5341, 5
        %v5847 = vsel %vm1563, %v5845, %v5846
        %v5848 = vrot.slane %v5742, 5
        %v5849 = vrot.slane %v5848, 4
        %v5850 = vrot.slane %v5318, 5
        %v5851 = vsel %vm1563, %v5849, %v5850
        %v5852 = vrot.slane %v5850, 4
        %v5853 = vrot.slane %v5342, 5
        %v5854 = vsel %vm1563, %v5852, %v5853
        %v5855 = vrot.slane %v5743, 5
        %v5856 = vrot.slane %v5855, 4
        %v5857 = vrot.slane %v5320, 5
        %v5858 = vsel %vm1563, %v5856, %v5857
        %v5859 = vrot.slane %v5857, 4
        %v5860 = vrot.slane %v5343, 5
        %v5861 = vsel %vm1563, %v5859, %v5860
        %v5862 = vrot.slane %v5744, 5
        %v5863 = vrot.slane %v5862, 4
        %v5864 = vrot.slane %v5322, 5
        %v5865 = vsel %vm1563, %v5863, %v5864
        %v5866 = vrot.slane %v5864, 4
        %v5867 = vrot.slane %v5344, 5
        %v5868 = vsel %vm1563, %v5866, %v5867
        %v5869 = vrot.slane %v5745, 5
        %v5870 = vrot.slane %v5869, 4
        %v5871 = vrot.slane %v5324, 5
        %v5872 = vsel %vm1563, %v5870, %v5871
        %v5873 = vrot.slane %v5871, 4
        %v5874 = vrot.slane %v5345, 5
        %v5875 = vsel %vm1563, %v5873, %v5874
        %v5876 = vrot.slane %v5746, 5
        %v5877 = vrot.slane %v5876, 4
        %v5878 = vrot.slane %v5326, 5
        %v5879 = vsel %vm1563, %v5877, %v5878
        %v5880 = vrot.slane %v5878, 4
        %v5881 = vrot.slane %v5346, 5
        %v5882 = vsel %vm1563, %v5880, %v5881
        %v5883 = vrot.slane %v5747, 5
        %v5884 = vrot.slane %v5883, 4
        %v5885 = vrot.slane %v5328, 5
        %v5886 = vsel %vm1563, %v5884, %v5885
        %v5887 = vrot.slane %v5885, 4
        %v5888 = vrot.slane %v5347, 5
        %v5889 = vsel %vm1563, %v5887, %v5888
        %v5890 = vrot.slane %v5748, 5
        %v5891 = vrot.slane %v5890, 4
        %v5892 = vrot.slane %v5330, 5
        %v5893 = vsel %vm1563, %v5891, %v5892
        %v5894 = vrot.slane %v5892, 4
        %v5895 = vrot.slane %v5348, 5
        %v5896 = vsel %vm1563, %v5894, %v5895
        %v5897 = vrot.slane %v5749, 5
        %v5898 = vrot.slane %v5897, 4
        %v5899 = vrot.slane %v5332, 5
        %v5900 = vsel %vm1563, %v5898, %v5899
        %v5901 = vrot.slane %v5899, 4
        %v5902 = vrot.slane %v5349, 5
        %v5903 = vsel %vm1563, %v5901, %v5902
        %v5904 = vrot.slane %v5750, 5
        %v5905 = vrot.slane %v5904, 4
        %v5906 = vrot.slane %v5334, 5
        %v5907 = vsel %vm1563, %v5905, %v5906
        %v5908 = vrot.slane %v5906, 4
        %v5909 = vrot.slane %v5350, 5
        %v5910 = vsel %vm1563, %v5908, %v5909
        %s5911 = scalar_lea.vmem [#allocation3], 24
        %v5912 = vld [vmem:[%s5911] sm:$0xf]
        %v5913 = vld [vmem:[%s5911 + $0x4] sm:$0xf]
        %v5914 = vld [vmem:[%s5911 + $0xc] sm:$0xf]
        %v5915 = vld [vmem:[%s5911 + $0x10] sm:$0xf]
        %v5916 = vld [vmem:[%s5911 + $0x18] sm:$0xf]
        %v5917 = vld [vmem:[%s5911 + $0x1c] sm:$0xf]
        %v5918 = vld [vmem:[%s5911 + $0x24] sm:$0xf]
        %v5919 = vld [vmem:[%s5911 + $0x28] sm:$0xf]
        %v5920 = vld [vmem:[%s5911 + $0x30] sm:$0xf]
        %v5921 = vld [vmem:[%s5911 + $0x34] sm:$0xf]
        %v5922 = vld [vmem:[%s5911 + $0x3c] sm:$0xf]
        %v5923 = vld [vmem:[%s5911 + $0x40] sm:$0xf]
        %v5924 = vld [vmem:[%s5911 + $0x48] sm:$0xf]
        %v5925 = vld [vmem:[%s5911 + $0x4c] sm:$0xf]
        %v5926 = vld [vmem:[%s5911 + $0x54] sm:$0xf]
        %v5927 = vld [vmem:[%s5911 + $0x58] sm:$0xf]
        %v5928 = vld [vmem:[%s5911 + $0x60] sm:$0xf]
        %v5929 = vld [vmem:[%s5911 + $0x64] sm:$0xf]
        %v5930 = vld [vmem:[%s5911 + $0x6c] sm:$0xf]
        %v5931 = vld [vmem:[%s5911 + $0x70] sm:$0xf]
        %v5932 = vld [vmem:[%s5911 + $0x78] sm:$0xf]
        %v5933 = vld [vmem:[%s5911 + $0x7c] sm:$0xf]
        %v5934 = vld [vmem:[%s5911 + $0x84] sm:$0xf]
        %v5935 = vld [vmem:[%s5911 + $0x88] sm:$0xf]
        %v5936 = vld [vmem:[%s5911 + $0x90] sm:$0xf]
        %v5937 = vld [vmem:[%s5911 + $0x94] sm:$0xf]
        %v5938 = vld [vmem:[%s5911 + $0x9c] sm:$0xf]
        %v5939 = vld [vmem:[%s5911 + $0xa0] sm:$0xf]
        %v5940 = vld [vmem:[%s5911 + $0xa8] sm:$0xf]
        %v5941 = vld [vmem:[%s5911 + $0xac] sm:$0xf]
        %v5942 = vld [vmem:[%s5911 + $0xb4] sm:$0xf]
        %v5943 = vld [vmem:[%s5911 + $0xb8] sm:$0xf]
        %v5944 = vld [vmem:[%s5911 + $0x8] sm:$0x1]
        %v5945 = vld [vmem:[%s5911 + $0x14] sm:$0x1]
        %v5946 = vld [vmem:[%s5911 + $0x20] sm:$0x1]
        %v5947 = vld [vmem:[%s5911 + $0x2c] sm:$0x1]
        %v5948 = vld [vmem:[%s5911 + $0x38] sm:$0x1]
        %v5949 = vld [vmem:[%s5911 + $0x44] sm:$0x1]
        %v5950 = vld [vmem:[%s5911 + $0x50] sm:$0x1]
        %v5951 = vld [vmem:[%s5911 + $0x5c] sm:$0x1]
        %v5952 = vld [vmem:[%s5911 + $0x68] sm:$0x1]
        %v5953 = vld [vmem:[%s5911 + $0x74] sm:$0x1]
        %v5954 = vld [vmem:[%s5911 + $0x80] sm:$0x1]
        %v5955 = vld [vmem:[%s5911 + $0x8c] sm:$0x1]
        %v5956 = vld [vmem:[%s5911 + $0x98] sm:$0x1]
        %v5957 = vld [vmem:[%s5911 + $0xa4] sm:$0x1]
        %v5958 = vld [vmem:[%s5911 + $0xb0] sm:$0x1]
        %v5959 = vld [vmem:[%s5911 + $0xbc] sm:$0x1]
        %v5961 = vshrl.u32 %v5912, 16
        %v5963 = vrot.slane %v5961, 4
        %v5964 = vshll.u32 %v5912, 16
        %v5966 = vrot.slane %v5964, 5
        %v5967 = vor.u32 %v5963, %v5966
        %v5968 = vrot.slane %v5967, 4
        %v5970 = vshll.u32 %v5913, 16
        %v5972 = vrot.slane %v5970, 5
        %v5973 = vsel %vm1112, %v5968, %v5972
        %v5974 = vshrl.u32 %v5913, 16
        %v5976 = vrot.slane %v5974, 4
        %v5977 = vor.u32 %v5976, %v5972
        %v5978 = vrot.slane %v5977, 4
        %v5980 = vshll.u32 %v5944, 16
        %v5982 = vrot.slane %v5980, 5
        %v5983 = vsel %vm1112, %v5978, %v5982
        %v5985 = vshrl.u32 %v5914, 16
        %v5987 = vrot.slane %v5985, 4
        %v5988 = vshll.u32 %v5914, 16
        %v5990 = vrot.slane %v5988, 5
        %v5991 = vor.u32 %v5987, %v5990
        %v5992 = vrot.slane %v5991, 4
        %v5994 = vshll.u32 %v5915, 16
        %v5996 = vrot.slane %v5994, 5
        %v5997 = vsel %vm1112, %v5992, %v5996
        %v5998 = vshrl.u32 %v5915, 16
        %v6000 = vrot.slane %v5998, 4
        %v6001 = vor.u32 %v6000, %v5996
        %v6002 = vrot.slane %v6001, 4
        %v6004 = vshll.u32 %v5945, 16
        %v6006 = vrot.slane %v6004, 5
        %v6007 = vsel %vm1112, %v6002, %v6006
        %v6009 = vshrl.u32 %v5916, 16
        %v6011 = vrot.slane %v6009, 4
        %v6012 = vshll.u32 %v5916, 16
        %v6014 = vrot.slane %v6012, 5
        %v6015 = vor.u32 %v6011, %v6014
        %v6016 = vrot.slane %v6015, 4
        %v6018 = vshll.u32 %v5917, 16
        %v6020 = vrot.slane %v6018, 5
        %v6021 = vsel %vm1112, %v6016, %v6020
        %v6022 = vshrl.u32 %v5917, 16
        %v6024 = vrot.slane %v6022, 4
        %v6025 = vor.u32 %v6024, %v6020
        %v6026 = vrot.slane %v6025, 4
        %v6028 = vshll.u32 %v5946, 16
        %v6030 = vrot.slane %v6028, 5
        %v6031 = vsel %vm1112, %v6026, %v6030
        %v6033 = vshrl.u32 %v5918, 16
        %v6035 = vrot.slane %v6033, 4
        %v6036 = vshll.u32 %v5918, 16
        %v6038 = vrot.slane %v6036, 5
        %v6039 = vor.u32 %v6035, %v6038
        %v6040 = vrot.slane %v6039, 4
        %v6042 = vshll.u32 %v5919, 16
        %v6044 = vrot.slane %v6042, 5
        %v6045 = vsel %vm1112, %v6040, %v6044
        %v6046 = vshrl.u32 %v5919, 16
        %v6048 = vrot.slane %v6046, 4
        %v6049 = vor.u32 %v6048, %v6044
        %v6050 = vrot.slane %v6049, 4
        %v6052 = vshll.u32 %v5947, 16
        %v6054 = vrot.slane %v6052, 5
        %v6055 = vsel %vm1112, %v6050, %v6054
        %v6057 = vshrl.u32 %v5920, 16
        %v6059 = vrot.slane %v6057, 4
        %v6060 = vshll.u32 %v5920, 16
        %v6062 = vrot.slane %v6060, 5
        %v6063 = vor.u32 %v6059, %v6062
        %v6064 = vrot.slane %v6063, 4
        %v6066 = vshll.u32 %v5921, 16
        %v6068 = vrot.slane %v6066, 5
        %v6069 = vsel %vm1112, %v6064, %v6068
        %v6070 = vshrl.u32 %v5921, 16
        %v6072 = vrot.slane %v6070, 4
        %v6073 = vor.u32 %v6072, %v6068
        %v6074 = vrot.slane %v6073, 4
        %v6076 = vshll.u32 %v5948, 16
        %v6078 = vrot.slane %v6076, 5
        %v6079 = vsel %vm1112, %v6074, %v6078
        %v6081 = vshrl.u32 %v5922, 16
        %v6083 = vrot.slane %v6081, 4
        %v6084 = vshll.u32 %v5922, 16
        %v6086 = vrot.slane %v6084, 5
        %v6087 = vor.u32 %v6083, %v6086
        %v6088 = vrot.slane %v6087, 4
        %v6090 = vshll.u32 %v5923, 16
        %v6092 = vrot.slane %v6090, 5
        %v6093 = vsel %vm1112, %v6088, %v6092
        %v6094 = vshrl.u32 %v5923, 16
        %v6096 = vrot.slane %v6094, 4
        %v6097 = vor.u32 %v6096, %v6092
        %v6098 = vrot.slane %v6097, 4
        %v6100 = vshll.u32 %v5949, 16
        %v6102 = vrot.slane %v6100, 5
        %v6103 = vsel %vm1112, %v6098, %v6102
        %v6105 = vshrl.u32 %v5924, 16
        %v6107 = vrot.slane %v6105, 4
        %v6108 = vshll.u32 %v5924, 16
        %v6110 = vrot.slane %v6108, 5
        %v6111 = vor.u32 %v6107, %v6110
        %v6112 = vrot.slane %v6111, 4
        %v6114 = vshll.u32 %v5925, 16
        %v6116 = vrot.slane %v6114, 5
        %v6117 = vsel %vm1112, %v6112, %v6116
        %v6118 = vshrl.u32 %v5925, 16
        %v6120 = vrot.slane %v6118, 4
        %v6121 = vor.u32 %v6120, %v6116
        %v6122 = vrot.slane %v6121, 4
        %v6124 = vshll.u32 %v5950, 16
        %v6126 = vrot.slane %v6124, 5
        %v6127 = vsel %vm1112, %v6122, %v6126
        %v6129 = vshrl.u32 %v5926, 16
        %v6131 = vrot.slane %v6129, 4
        %v6132 = vshll.u32 %v5926, 16
        %v6134 = vrot.slane %v6132, 5
        %v6135 = vor.u32 %v6131, %v6134
        %v6136 = vrot.slane %v6135, 4
        %v6138 = vshll.u32 %v5927, 16
        %v6140 = vrot.slane %v6138, 5
        %v6141 = vsel %vm1112, %v6136, %v6140
        %v6142 = vshrl.u32 %v5927, 16
        %v6144 = vrot.slane %v6142, 4
        %v6145 = vor.u32 %v6144, %v6140
        %v6146 = vrot.slane %v6145, 4
        %v6148 = vshll.u32 %v5951, 16
        %v6150 = vrot.slane %v6148, 5
        %v6151 = vsel %vm1112, %v6146, %v6150
        %v6153 = vshrl.u32 %v5928, 16
        %v6155 = vrot.slane %v6153, 4
        %v6156 = vshll.u32 %v5928, 16
        %v6158 = vrot.slane %v6156, 5
        %v6159 = vor.u32 %v6155, %v6158
        %v6160 = vrot.slane %v6159, 4
        %v6162 = vshll.u32 %v5929, 16
        %v6164 = vrot.slane %v6162, 5
        %v6165 = vsel %vm1112, %v6160, %v6164
        %v6166 = vshrl.u32 %v5929, 16
        %v6168 = vrot.slane %v6166, 4
        %v6169 = vor.u32 %v6168, %v6164
        %v6170 = vrot.slane %v6169, 4
        %v6172 = vshll.u32 %v5952, 16
        %v6174 = vrot.slane %v6172, 5
        %v6175 = vsel %vm1112, %v6170, %v6174
        %v6177 = vshrl.u32 %v5930, 16
        %v6179 = vrot.slane %v6177, 4
        %v6180 = vshll.u32 %v5930, 16
        %v6182 = vrot.slane %v6180, 5
        %v6183 = vor.u32 %v6179, %v6182
        %v6184 = vrot.slane %v6183, 4
        %v6186 = vshll.u32 %v5931, 16
        %v6188 = vrot.slane %v6186, 5
        %v6189 = vsel %vm1112, %v6184, %v6188
        %v6190 = vshrl.u32 %v5931, 16
        %v6192 = vrot.slane %v6190, 4
        %v6193 = vor.u32 %v6192, %v6188
        %v6194 = vrot.slane %v6193, 4
        %v6196 = vshll.u32 %v5953, 16
        %v6198 = vrot.slane %v6196, 5
        %v6199 = vsel %vm1112, %v6194, %v6198
        %v6201 = vshrl.u32 %v5932, 16
        %v6203 = vrot.slane %v6201, 4
        %v6204 = vshll.u32 %v5932, 16
        %v6206 = vrot.slane %v6204, 5
        %v6207 = vor.u32 %v6203, %v6206
        %v6208 = vrot.slane %v6207, 4
        %v6210 = vshll.u32 %v5933, 16
        %v6212 = vrot.slane %v6210, 5
        %v6213 = vsel %vm1112, %v6208, %v6212
        %v6214 = vshrl.u32 %v5933, 16
        %v6216 = vrot.slane %v6214, 4
        %v6217 = vor.u32 %v6216, %v6212
        %v6218 = vrot.slane %v6217, 4
        %v6220 = vshll.u32 %v5954, 16
        %v6222 = vrot.slane %v6220, 5
        %v6223 = vsel %vm1112, %v6218, %v6222
        %v6225 = vshrl.u32 %v5934, 16
        %v6227 = vrot.slane %v6225, 4
        %v6228 = vshll.u32 %v5934, 16
        %v6230 = vrot.slane %v6228, 5
        %v6231 = vor.u32 %v6227, %v6230
        %v6232 = vrot.slane %v6231, 4
        %v6234 = vshll.u32 %v5935, 16
        %v6236 = vrot.slane %v6234, 5
        %v6237 = vsel %vm1112, %v6232, %v6236
        %v6238 = vshrl.u32 %v5935, 16
        %v6240 = vrot.slane %v6238, 4
        %v6241 = vor.u32 %v6240, %v6236
        %v6242 = vrot.slane %v6241, 4
        %v6244 = vshll.u32 %v5955, 16
        %v6246 = vrot.slane %v6244, 5
        %v6247 = vsel %vm1112, %v6242, %v6246
        %v6249 = vshrl.u32 %v5936, 16
        %v6251 = vrot.slane %v6249, 4
        %v6252 = vshll.u32 %v5936, 16
        %v6254 = vrot.slane %v6252, 5
        %v6255 = vor.u32 %v6251, %v6254
        %v6256 = vrot.slane %v6255, 4
        %v6258 = vshll.u32 %v5937, 16
        %v6260 = vrot.slane %v6258, 5
        %v6261 = vsel %vm1112, %v6256, %v6260
        %v6262 = vshrl.u32 %v5937, 16
        %v6264 = vrot.slane %v6262, 4
        %v6265 = vor.u32 %v6264, %v6260
        %v6266 = vrot.slane %v6265, 4
        %v6268 = vshll.u32 %v5956, 16
        %v6270 = vrot.slane %v6268, 5
        %v6271 = vsel %vm1112, %v6266, %v6270
        %v6273 = vshrl.u32 %v5938, 16
        %v6275 = vrot.slane %v6273, 4
        %v6276 = vshll.u32 %v5938, 16
        %v6278 = vrot.slane %v6276, 5
        %v6279 = vor.u32 %v6275, %v6278
        %v6280 = vrot.slane %v6279, 4
        %v6282 = vshll.u32 %v5939, 16
        %v6284 = vrot.slane %v6282, 5
        %v6285 = vsel %vm1112, %v6280, %v6284
        %v6286 = vshrl.u32 %v5939, 16
        %v6288 = vrot.slane %v6286, 4
        %v6289 = vor.u32 %v6288, %v6284
        %v6290 = vrot.slane %v6289, 4
        %v6292 = vshll.u32 %v5957, 16
        %v6294 = vrot.slane %v6292, 5
        %v6295 = vsel %vm1112, %v6290, %v6294
        %v6297 = vshrl.u32 %v5940, 16
        %v6299 = vrot.slane %v6297, 4
        %v6300 = vshll.u32 %v5940, 16
        %v6302 = vrot.slane %v6300, 5
        %v6303 = vor.u32 %v6299, %v6302
        %v6304 = vrot.slane %v6303, 4
        %v6306 = vshll.u32 %v5941, 16
        %v6308 = vrot.slane %v6306, 5
        %v6309 = vsel %vm1112, %v6304, %v6308
        %v6310 = vshrl.u32 %v5941, 16
        %v6312 = vrot.slane %v6310, 4
        %v6313 = vor.u32 %v6312, %v6308
        %v6314 = vrot.slane %v6313, 4
        %v6316 = vshll.u32 %v5958, 16
        %v6318 = vrot.slane %v6316, 5
        %v6319 = vsel %vm1112, %v6314, %v6318
        %v6321 = vshrl.u32 %v5942, 16
        %v6323 = vrot.slane %v6321, 4
        %v6324 = vshll.u32 %v5942, 16
        %v6326 = vrot.slane %v6324, 5
        %v6327 = vor.u32 %v6323, %v6326
        %v6328 = vrot.slane %v6327, 4
        %v6330 = vshll.u32 %v5943, 16
        %v6332 = vrot.slane %v6330, 5
        %v6333 = vsel %vm1112, %v6328, %v6332
        %v6334 = vshrl.u32 %v5943, 16
        %v6336 = vrot.slane %v6334, 4
        %v6337 = vor.u32 %v6336, %v6332
        %v6338 = vrot.slane %v6337, 4
        %v6340 = vshll.u32 %v5959, 16
        %v6342 = vrot.slane %v6340, 5
        %v6343 = vsel %vm1112, %v6338, %v6342
        %v6344 = vld [vmem:[%s5911] sm:$0xe]
        %v6345 = vld [vmem:[%s5911 + $0xc] sm:$0xe]
        %v6346 = vld [vmem:[%s5911 + $0x18] sm:$0xe]
        %v6347 = vld [vmem:[%s5911 + $0x24] sm:$0xe]
        %v6348 = vld [vmem:[%s5911 + $0x30] sm:$0xe]
        %v6349 = vld [vmem:[%s5911 + $0x3c] sm:$0xe]
        %v6350 = vld [vmem:[%s5911 + $0x48] sm:$0xe]
        %v6351 = vld [vmem:[%s5911 + $0x54] sm:$0xe]
        %v6352 = vld [vmem:[%s5911 + $0x60] sm:$0xe]
        %v6353 = vld [vmem:[%s5911 + $0x6c] sm:$0xe]
        %v6354 = vld [vmem:[%s5911 + $0x78] sm:$0xe]
        %v6355 = vld [vmem:[%s5911 + $0x84] sm:$0xe]
        %v6356 = vld [vmem:[%s5911 + $0x90] sm:$0xe]
        %v6357 = vld [vmem:[%s5911 + $0x9c] sm:$0xe]
        %v6358 = vld [vmem:[%s5911 + $0xa8] sm:$0xe]
        %v6359 = vld [vmem:[%s5911 + $0xb4] sm:$0xe]
        %v6408 = vrot.slane %v6344, 5
        %v6409 = vrot.slane %v6408, 4
        %v6410 = vrot.slane %v5913, 5
        %v6411 = vsel %vm1563, %v6409, %v6410
        %v6412 = vrot.slane %v6410, 4
        %v6413 = vrot.slane %v5944, 5
        %v6414 = vsel %vm1563, %v6412, %v6413
        %v6415 = vrot.slane %v6345, 5
        %v6416 = vrot.slane %v6415, 4
        %v6417 = vrot.slane %v5915, 5
        %v6418 = vsel %vm1563, %v6416, %v6417
        %v6419 = vrot.slane %v6417, 4
        %v6420 = vrot.slane %v5945, 5
        %v6421 = vsel %vm1563, %v6419, %v6420
        %v6422 = vrot.slane %v6346, 5
        %v6423 = vrot.slane %v6422, 4
        %v6424 = vrot.slane %v5917, 5
        %v6425 = vsel %vm1563, %v6423, %v6424
        %v6426 = vrot.slane %v6424, 4
        %v6427 = vrot.slane %v5946, 5
        %v6428 = vsel %vm1563, %v6426, %v6427
        %v6429 = vrot.slane %v6347, 5
        %v6430 = vrot.slane %v6429, 4
        %v6431 = vrot.slane %v5919, 5
        %v6432 = vsel %vm1563, %v6430, %v6431
        %v6433 = vrot.slane %v6431, 4
        %v6434 = vrot.slane %v5947, 5
        %v6435 = vsel %vm1563, %v6433, %v6434
        %v6436 = vrot.slane %v6348, 5
        %v6437 = vrot.slane %v6436, 4
        %v6438 = vrot.slane %v5921, 5
        %v6439 = vsel %vm1563, %v6437, %v6438
        %v6440 = vrot.slane %v6438, 4
        %v6441 = vrot.slane %v5948, 5
        %v6442 = vsel %vm1563, %v6440, %v6441
        %v6443 = vrot.slane %v6349, 5
        %v6444 = vrot.slane %v6443, 4
        %v6445 = vrot.slane %v5923, 5
        %v6446 = vsel %vm1563, %v6444, %v6445
        %v6447 = vrot.slane %v6445, 4
        %v6448 = vrot.slane %v5949, 5
        %v6449 = vsel %vm1563, %v6447, %v6448
        %v6450 = vrot.slane %v6350, 5
        %v6451 = vrot.slane %v6450, 4
        %v6452 = vrot.slane %v5925, 5
        %v6453 = vsel %vm1563, %v6451, %v6452
        %v6454 = vrot.slane %v6452, 4
        %v6455 = vrot.slane %v5950, 5
        %v6456 = vsel %vm1563, %v6454, %v6455
        %v6457 = vrot.slane %v6351, 5
        %v6458 = vrot.slane %v6457, 4
        %v6459 = vrot.slane %v5927, 5
        %v6460 = vsel %vm1563, %v6458, %v6459
        %v6461 = vrot.slane %v6459, 4
        %v6462 = vrot.slane %v5951, 5
        %v6463 = vsel %vm1563, %v6461, %v6462
        %v6464 = vrot.slane %v6352, 5
        %v6465 = vrot.slane %v6464, 4
        %v6466 = vrot.slane %v5929, 5
        %v6467 = vsel %vm1563, %v6465, %v6466
        %v6468 = vrot.slane %v6466, 4
        %v6469 = vrot.slane %v5952, 5
        %v6470 = vsel %vm1563, %v6468, %v6469
        %v6471 = vrot.slane %v6353, 5
        %v6472 = vrot.slane %v6471, 4
        %v6473 = vrot.slane %v5931, 5
        %v6474 = vsel %vm1563, %v6472, %v6473
        %v6475 = vrot.slane %v6473, 4
        %v6476 = vrot.slane %v5953, 5
        %v6477 = vsel %vm1563, %v6475, %v6476
        %v6478 = vrot.slane %v6354, 5
        %v6479 = vrot.slane %v6478, 4
        %v6480 = vrot.slane %v5933, 5
        %v6481 = vsel %vm1563, %v6479, %v6480
        %v6482 = vrot.slane %v6480, 4
        %v6483 = vrot.slane %v5954, 5
        %v6484 = vsel %vm1563, %v6482, %v6483
        %v6485 = vrot.slane %v6355, 5
        %v6486 = vrot.slane %v6485, 4
        %v6487 = vrot.slane %v5935, 5
        %v6488 = vsel %vm1563, %v6486, %v6487
        %v6489 = vrot.slane %v6487, 4
        %v6490 = vrot.slane %v5955, 5
        %v6491 = vsel %vm1563, %v6489, %v6490
        %v6492 = vrot.slane %v6356, 5
        %v6493 = vrot.slane %v6492, 4
        %v6494 = vrot.slane %v5937, 5
        %v6495 = vsel %vm1563, %v6493, %v6494
        %v6496 = vrot.slane %v6494, 4
        %v6497 = vrot.slane %v5956, 5
        %v6498 = vsel %vm1563, %v6496, %v6497
        %v6499 = vrot.slane %v6357, 5
        %v6500 = vrot.slane %v6499, 4
        %v6501 = vrot.slane %v5939, 5
        %v6502 = vsel %vm1563, %v6500, %v6501
        %v6503 = vrot.slane %v6501, 4
        %v6504 = vrot.slane %v5957, 5
        %v6505 = vsel %vm1563, %v6503, %v6504
        %v6506 = vrot.slane %v6358, 5
        %v6507 = vrot.slane %v6506, 4
        %v6508 = vrot.slane %v5941, 5
        %v6509 = vsel %vm1563, %v6507, %v6508
        %v6510 = vrot.slane %v6508, 4
        %v6511 = vrot.slane %v5958, 5
        %v6512 = vsel %vm1563, %v6510, %v6511
        %v6513 = vrot.slane %v6359, 5
        %v6514 = vrot.slane %v6513, 4
        %v6515 = vrot.slane %v5943, 5
        %v6516 = vsel %vm1563, %v6514, %v6515
        %v6517 = vrot.slane %v6515, 4
        %v6518 = vrot.slane %v5959, 5
        %v6519 = vsel %vm1563, %v6517, %v6518
        %v6536 = vunpack.c.l.b16 %v4695
        %v6537 = vunpack.c.l.b16 %v4696
        %v6538 = vunpack.c.l.b16 %v4697
        %v6539 = vunpack.c.l.b16 %v4698
        %v6540 = vunpack.c.l.b16 %v4699
        %v6541 = vunpack.c.l.b16 %v4700
        %v6542 = vunpack.c.l.b16 %v4701
        %v6543 = vunpack.c.l.b16 %v4702
        %v6544 = vunpack.c.l.b16 %v4703
        %v6545 = vunpack.c.l.b16 %v4704
        %v6546 = vunpack.c.l.b16 %v4705
        %v6547 = vunpack.c.l.b16 %v4706
        %v6548 = vunpack.c.l.b16 %v4707
        %v6549 = vunpack.c.l.b16 %v4708
        %v6550 = vunpack.c.l.b16 %v4709
        %v6551 = vunpack.c.l.b16 %v4710
        %v6552 = vunpack.c.l.b16 %v4711
        %v6553 = vunpack.c.l.b16 %v4712
        %v6554 = vunpack.c.l.b16 %v4713
        %v6555 = vunpack.c.l.b16 %v4714
        %v6556 = vunpack.c.l.b16 %v4715
        %v6557 = vunpack.c.l.b16 %v4716
        %v6558 = vunpack.c.l.b16 %v4717
        %v6559 = vunpack.c.l.b16 %v4718
        %v6560 = vunpack.c.l.b16 %v4719
        %v6561 = vunpack.c.l.b16 %v4720
        %v6562 = vunpack.c.l.b16 %v4721
        %v6563 = vunpack.c.l.b16 %v4722
        %v6564 = vunpack.c.l.b16 %v4723
        %v6565 = vunpack.c.l.b16 %v4724
        %v6566 = vunpack.c.l.b16 %v4725
        %v6567 = vunpack.c.l.b16 %v4726
        %v6568 = vpack.c.b16 %v6537, %v6536
        %v6569 = vpack.c.b16 %v6539, %v6538
        %v6570 = vpack.c.b16 %v6541, %v6540
        %v6571 = vpack.c.b16 %v6543, %v6542
        %v6572 = vpack.c.b16 %v6545, %v6544
        %v6573 = vpack.c.b16 %v6547, %v6546
        %v6574 = vpack.c.b16 %v6549, %v6548
        %v6575 = vpack.c.b16 %v6551, %v6550
        %v6576 = vpack.c.b16 %v6553, %v6552
        %v6577 = vpack.c.b16 %v6555, %v6554
        %v6578 = vpack.c.b16 %v6557, %v6556
        %v6579 = vpack.c.b16 %v6559, %v6558
        %v6580 = vpack.c.b16 %v6561, %v6560
        %v6581 = vpack.c.b16 %v6563, %v6562
        %v6582 = vpack.c.b16 %v6565, %v6564
        %v6583 = vpack.c.b16 %v6567, %v6566
        %v6584 = vunpack.c.l.b16 %v4756
        %v6585 = vunpack.c.l.b16 %v4766
        %v6586 = vunpack.c.l.b16 %v4780
        %v6587 = vunpack.c.l.b16 %v4790
        %v6588 = vunpack.c.l.b16 %v4804
        %v6589 = vunpack.c.l.b16 %v4814
        %v6590 = vunpack.c.l.b16 %v4828
        %v6591 = vunpack.c.l.b16 %v4838
        %v6592 = vunpack.c.l.b16 %v4852
        %v6593 = vunpack.c.l.b16 %v4862
        %v6594 = vunpack.c.l.b16 %v4876
        %v6595 = vunpack.c.l.b16 %v4886
        %v6596 = vunpack.c.l.b16 %v4900
        %v6597 = vunpack.c.l.b16 %v4910
        %v6598 = vunpack.c.l.b16 %v4924
        %v6599 = vunpack.c.l.b16 %v4934
        %v6600 = vunpack.c.l.b16 %v4948
        %v6601 = vunpack.c.l.b16 %v4958
        %v6602 = vunpack.c.l.b16 %v4972
        %v6603 = vunpack.c.l.b16 %v4982
        %v6604 = vunpack.c.l.b16 %v4996
        %v6605 = vunpack.c.l.b16 %v5006
        %v6606 = vunpack.c.l.b16 %v5020
        %v6607 = vunpack.c.l.b16 %v5030
        %v6608 = vunpack.c.l.b16 %v5044
        %v6609 = vunpack.c.l.b16 %v5054
        %v6610 = vunpack.c.l.b16 %v5068
        %v6611 = vunpack.c.l.b16 %v5078
        %v6612 = vunpack.c.l.b16 %v5092
        %v6613 = vunpack.c.l.b16 %v5102
        %v6614 = vunpack.c.l.b16 %v5116
        %v6615 = vunpack.c.l.b16 %v5126
        %v6616 = vpack.c.b16 %v6585, %v6584
        %v6617 = vpack.c.b16 %v6587, %v6586
        %v6618 = vpack.c.b16 %v6589, %v6588
        %v6619 = vpack.c.b16 %v6591, %v6590
        %v6620 = vpack.c.b16 %v6593, %v6592
        %v6621 = vpack.c.b16 %v6595, %v6594
        %v6622 = vpack.c.b16 %v6597, %v6596
        %v6623 = vpack.c.b16 %v6599, %v6598
        %v6624 = vpack.c.b16 %v6601, %v6600
        %v6625 = vpack.c.b16 %v6603, %v6602
        %v6626 = vpack.c.b16 %v6605, %v6604
        %v6627 = vpack.c.b16 %v6607, %v6606
        %v6628 = vpack.c.b16 %v6609, %v6608
        %v6629 = vpack.c.b16 %v6611, %v6610
        %v6630 = vpack.c.b16 %v6613, %v6612
        %v6631 = vpack.c.b16 %v6615, %v6614
        %6632 = vrot.lane.b32.xlu0 %v6616, 4
        %v6633 = vpop.permute.xlu0 %6632
        %6634 = vrot.lane.b32.xlu0 %v6617, 4
        %v6635 = vpop.permute.xlu0 %6634
        %6636 = vrot.lane.b32.xlu0 %v6618, 4
        %v6637 = vpop.permute.xlu0 %6636
        %6638 = vrot.lane.b32.xlu0 %v6619, 4
        %v6639 = vpop.permute.xlu0 %6638
        %6640 = vrot.lane.b32.xlu0 %v6620, 4
        %v6641 = vpop.permute.xlu0 %6640
        %6642 = vrot.lane.b32.xlu0 %v6621, 4
        %v6643 = vpop.permute.xlu0 %6642
        %6644 = vrot.lane.b32.xlu0 %v6622, 4
        %v6645 = vpop.permute.xlu0 %6644
        %6646 = vrot.lane.b32.xlu0 %v6623, 4
        %v6647 = vpop.permute.xlu0 %6646
        %6648 = vrot.lane.b32.xlu0 %v6624, 4
        %v6649 = vpop.permute.xlu0 %6648
        %6650 = vrot.lane.b32.xlu0 %v6625, 4
        %v6651 = vpop.permute.xlu0 %6650
        %6652 = vrot.lane.b32.xlu0 %v6626, 4
        %v6653 = vpop.permute.xlu0 %6652
        %6654 = vrot.lane.b32.xlu0 %v6627, 4
        %v6655 = vpop.permute.xlu0 %6654
        %6656 = vrot.lane.b32.xlu0 %v6628, 4
        %v6657 = vpop.permute.xlu0 %6656
        %6658 = vrot.lane.b32.xlu0 %v6629, 4
        %v6659 = vpop.permute.xlu0 %6658
        %6660 = vrot.lane.b32.xlu0 %v6630, 4
        %v6661 = vpop.permute.xlu0 %6660
        %6662 = vrot.lane.b32.xlu0 %v6631, 4
        %v6663 = vpop.permute.xlu0 %6662
        %v6664 = vunpack.c.l.b16 %v5194
        %v6665 = vunpack.c.l.b16 %v5197
        %v6666 = vunpack.c.l.b16 %v5201
        %v6667 = vunpack.c.l.b16 %v5204
        %v6668 = vunpack.c.l.b16 %v5208
        %v6669 = vunpack.c.l.b16 %v5211
        %v6670 = vunpack.c.l.b16 %v5215
        %v6671 = vunpack.c.l.b16 %v5218
        %v6672 = vunpack.c.l.b16 %v5222
        %v6673 = vunpack.c.l.b16 %v5225
        %v6674 = vunpack.c.l.b16 %v5229
        %v6675 = vunpack.c.l.b16 %v5232
        %v6676 = vunpack.c.l.b16 %v5236
        %v6677 = vunpack.c.l.b16 %v5239
        %v6678 = vunpack.c.l.b16 %v5243
        %v6679 = vunpack.c.l.b16 %v5246
        %v6680 = vunpack.c.l.b16 %v5250
        %v6681 = vunpack.c.l.b16 %v5253
        %v6682 = vunpack.c.l.b16 %v5257
        %v6683 = vunpack.c.l.b16 %v5260
        %v6684 = vunpack.c.l.b16 %v5264
        %v6685 = vunpack.c.l.b16 %v5267
        %v6686 = vunpack.c.l.b16 %v5271
        %v6687 = vunpack.c.l.b16 %v5274
        %v6688 = vunpack.c.l.b16 %v5278
        %v6689 = vunpack.c.l.b16 %v5281
        %v6690 = vunpack.c.l.b16 %v5285
        %v6691 = vunpack.c.l.b16 %v5288
        %v6692 = vunpack.c.l.b16 %v5292
        %v6693 = vunpack.c.l.b16 %v5295
        %v6694 = vunpack.c.l.b16 %v5299
        %v6695 = vunpack.c.l.b16 %v5302
        %v6696 = vpack.c.b16 %v6665, %v6664
        %v6697 = vpack.c.b16 %v6667, %v6666
        %v6698 = vpack.c.b16 %v6669, %v6668
        %v6699 = vpack.c.b16 %v6671, %v6670
        %v6700 = vpack.c.b16 %v6673, %v6672
        %v6701 = vpack.c.b16 %v6675, %v6674
        %v6702 = vpack.c.b16 %v6677, %v6676
        %v6703 = vpack.c.b16 %v6679, %v6678
        %v6704 = vpack.c.b16 %v6681, %v6680
        %v6705 = vpack.c.b16 %v6683, %v6682
        %v6706 = vpack.c.b16 %v6685, %v6684
        %v6707 = vpack.c.b16 %v6687, %v6686
        %v6708 = vpack.c.b16 %v6689, %v6688
        %v6709 = vpack.c.b16 %v6691, %v6690
        %v6710 = vpack.c.b16 %v6693, %v6692
        %v6711 = vpack.c.b16 %v6695, %v6694
        %6712 = vrot.lane.b32.xlu0 %v6696, 8
        %v6713 = vpop.permute.xlu0 %6712
        %6714 = vrot.lane.b32.xlu0 %v6697, 8
        %v6715 = vpop.permute.xlu0 %6714
        %6716 = vrot.lane.b32.xlu0 %v6698, 8
        %v6717 = vpop.permute.xlu0 %6716
        %6718 = vrot.lane.b32.xlu0 %v6699, 8
        %v6719 = vpop.permute.xlu0 %6718
        %6720 = vrot.lane.b32.xlu0 %v6700, 8
        %v6721 = vpop.permute.xlu0 %6720
        %6722 = vrot.lane.b32.xlu0 %v6701, 8
        %v6723 = vpop.permute.xlu0 %6722
        %6724 = vrot.lane.b32.xlu0 %v6702, 8
        %v6725 = vpop.permute.xlu0 %6724
        %6726 = vrot.lane.b32.xlu0 %v6703, 8
        %v6727 = vpop.permute.xlu0 %6726
        %6728 = vrot.lane.b32.xlu0 %v6704, 8
        %v6729 = vpop.permute.xlu0 %6728
        %6730 = vrot.lane.b32.xlu0 %v6705, 8
        %v6731 = vpop.permute.xlu0 %6730
        %6732 = vrot.lane.b32.xlu0 %v6706, 8
        %v6733 = vpop.permute.xlu0 %6732
        %6734 = vrot.lane.b32.xlu0 %v6707, 8
        %v6735 = vpop.permute.xlu0 %6734
        %6736 = vrot.lane.b32.xlu0 %v6708, 8
        %v6737 = vpop.permute.xlu0 %6736
        %6738 = vrot.lane.b32.xlu0 %v6709, 8
        %v6739 = vpop.permute.xlu0 %6738
        %6740 = vrot.lane.b32.xlu0 %v6710, 8
        %v6741 = vpop.permute.xlu0 %6740
        %6742 = vrot.lane.b32.xlu0 %v6711, 8
        %v6743 = vpop.permute.xlu0 %6742
        %v6760 = vunpack.c.l.b16 %v5303
        %v6761 = vunpack.c.l.b16 %v5304
        %v6762 = vunpack.c.l.b16 %v5305
        %v6763 = vunpack.c.l.b16 %v5306
        %v6764 = vunpack.c.l.b16 %v5307
        %v6765 = vunpack.c.l.b16 %v5308
        %v6766 = vunpack.c.l.b16 %v5309
        %v6767 = vunpack.c.l.b16 %v5310
        %v6768 = vunpack.c.l.b16 %v5311
        %v6769 = vunpack.c.l.b16 %v5312
        %v6770 = vunpack.c.l.b16 %v5313
        %v6771 = vunpack.c.l.b16 %v5314
        %v6772 = vunpack.c.l.b16 %v5315
        %v6773 = vunpack.c.l.b16 %v5316
        %v6774 = vunpack.c.l.b16 %v5317
        %v6775 = vunpack.c.l.b16 %v5318
        %v6776 = vunpack.c.l.b16 %v5319
        %v6777 = vunpack.c.l.b16 %v5320
        %v6778 = vunpack.c.l.b16 %v5321
        %v6779 = vunpack.c.l.b16 %v5322
        %v6780 = vunpack.c.l.b16 %v5323
        %v6781 = vunpack.c.l.b16 %v5324
        %v6782 = vunpack.c.l.b16 %v5325
        %v6783 = vunpack.c.l.b16 %v5326
        %v6784 = vunpack.c.l.b16 %v5327
        %v6785 = vunpack.c.l.b16 %v5328
        %v6786 = vunpack.c.l.b16 %v5329
        %v6787 = vunpack.c.l.b16 %v5330
        %v6788 = vunpack.c.l.b16 %v5331
        %v6789 = vunpack.c.l.b16 %v5332
        %v6790 = vunpack.c.l.b16 %v5333
        %v6791 = vunpack.c.l.b16 %v5334
        %v6792 = vpack.c.b16 %v6761, %v6760
        %v6793 = vpack.c.b16 %v6763, %v6762
        %v6794 = vpack.c.b16 %v6765, %v6764
        %v6795 = vpack.c.b16 %v6767, %v6766
        %v6796 = vpack.c.b16 %v6769, %v6768
        %v6797 = vpack.c.b16 %v6771, %v6770
        %v6798 = vpack.c.b16 %v6773, %v6772
        %v6799 = vpack.c.b16 %v6775, %v6774
        %v6800 = vpack.c.b16 %v6777, %v6776
        %v6801 = vpack.c.b16 %v6779, %v6778
        %v6802 = vpack.c.b16 %v6781, %v6780
        %v6803 = vpack.c.b16 %v6783, %v6782
        %v6804 = vpack.c.b16 %v6785, %v6784
        %v6805 = vpack.c.b16 %v6787, %v6786
        %v6806 = vpack.c.b16 %v6789, %v6788
        %v6807 = vpack.c.b16 %v6791, %v6790
        %6808 = vrot.lane.b32.xlu0 %v6792, 12
        %v6809 = vpop.permute.xlu0 %6808
        %6810 = vrot.lane.b32.xlu0 %v6793, 12
        %v6811 = vpop.permute.xlu0 %6810
        %6812 = vrot.lane.b32.xlu0 %v6794, 12
        %v6813 = vpop.permute.xlu0 %6812
        %6814 = vrot.lane.b32.xlu0 %v6795, 12
        %v6815 = vpop.permute.xlu0 %6814
        %6816 = vrot.lane.b32.xlu0 %v6796, 12
        %v6817 = vpop.permute.xlu0 %6816
        %6818 = vrot.lane.b32.xlu0 %v6797, 12
        %v6819 = vpop.permute.xlu0 %6818
        %6820 = vrot.lane.b32.xlu0 %v6798, 12
        %v6821 = vpop.permute.xlu0 %6820
        %6822 = vrot.lane.b32.xlu0 %v6799, 12
        %v6823 = vpop.permute.xlu0 %6822
        %6824 = vrot.lane.b32.xlu0 %v6800, 12
        %v6825 = vpop.permute.xlu0 %6824
        %6826 = vrot.lane.b32.xlu0 %v6801, 12
        %v6827 = vpop.permute.xlu0 %6826
        %6828 = vrot.lane.b32.xlu0 %v6802, 12
        %v6829 = vpop.permute.xlu0 %6828
        %6830 = vrot.lane.b32.xlu0 %v6803, 12
        %v6831 = vpop.permute.xlu0 %6830
        %6832 = vrot.lane.b32.xlu0 %v6804, 12
        %v6833 = vpop.permute.xlu0 %6832
        %6834 = vrot.lane.b32.xlu0 %v6805, 12
        %v6835 = vpop.permute.xlu0 %6834
        %6836 = vrot.lane.b32.xlu0 %v6806, 12
        %v6837 = vpop.permute.xlu0 %6836
        %6838 = vrot.lane.b32.xlu0 %v6807, 12
        %v6839 = vpop.permute.xlu0 %6838
        %v6840 = vunpack.c.l.b16 %v5364
        %v6841 = vunpack.c.l.b16 %v5374
        %v6842 = vunpack.c.l.b16 %v5388
        %v6843 = vunpack.c.l.b16 %v5398
        %v6844 = vunpack.c.l.b16 %v5412
        %v6845 = vunpack.c.l.b16 %v5422
        %v6846 = vunpack.c.l.b16 %v5436
        %v6847 = vunpack.c.l.b16 %v5446
        %v6848 = vunpack.c.l.b16 %v5460
        %v6849 = vunpack.c.l.b16 %v5470
        %v6850 = vunpack.c.l.b16 %v5484
        %v6851 = vunpack.c.l.b16 %v5494
        %v6852 = vunpack.c.l.b16 %v5508
        %v6853 = vunpack.c.l.b16 %v5518
        %v6854 = vunpack.c.l.b16 %v5532
        %v6855 = vunpack.c.l.b16 %v5542
        %v6856 = vunpack.c.l.b16 %v5556
        %v6857 = vunpack.c.l.b16 %v5566
        %v6858 = vunpack.c.l.b16 %v5580
        %v6859 = vunpack.c.l.b16 %v5590
        %v6860 = vunpack.c.l.b16 %v5604
        %v6861 = vunpack.c.l.b16 %v5614
        %v6862 = vunpack.c.l.b16 %v5628
        %v6863 = vunpack.c.l.b16 %v5638
        %v6864 = vunpack.c.l.b16 %v5652
        %v6865 = vunpack.c.l.b16 %v5662
        %v6866 = vunpack.c.l.b16 %v5676
        %v6867 = vunpack.c.l.b16 %v5686
        %v6868 = vunpack.c.l.b16 %v5700
        %v6869 = vunpack.c.l.b16 %v5710
        %v6870 = vunpack.c.l.b16 %v5724
        %v6871 = vunpack.c.l.b16 %v5734
        %v6872 = vpack.c.b16 %v6841, %v6840
        %v6873 = vpack.c.b16 %v6843, %v6842
        %v6874 = vpack.c.b16 %v6845, %v6844
        %v6875 = vpack.c.b16 %v6847, %v6846
        %v6876 = vpack.c.b16 %v6849, %v6848
        %v6877 = vpack.c.b16 %v6851, %v6850
        %v6878 = vpack.c.b16 %v6853, %v6852
        %v6879 = vpack.c.b16 %v6855, %v6854
        %v6880 = vpack.c.b16 %v6857, %v6856
        %v6881 = vpack.c.b16 %v6859, %v6858
        %v6882 = vpack.c.b16 %v6861, %v6860
        %v6883 = vpack.c.b16 %v6863, %v6862
        %v6884 = vpack.c.b16 %v6865, %v6864
        %v6885 = vpack.c.b16 %v6867, %v6866
        %v6886 = vpack.c.b16 %v6869, %v6868
        %v6887 = vpack.c.b16 %v6871, %v6870
        %6888 = vrot.lane.b32.xlu0 %v6872, 16
        %v6889 = vpop.permute.xlu0 %6888
        %6890 = vrot.lane.b32.xlu0 %v6873, 16
        %v6891 = vpop.permute.xlu0 %6890
        %6892 = vrot.lane.b32.xlu0 %v6874, 16
        %v6893 = vpop.permute.xlu0 %6892
        %6894 = vrot.lane.b32.xlu0 %v6875, 16
        %v6895 = vpop.permute.xlu0 %6894
        %6896 = vrot.lane.b32.xlu0 %v6876, 16
        %v6897 = vpop.permute.xlu0 %6896
        %6898 = vrot.lane.b32.xlu0 %v6877, 16
        %v6899 = vpop.permute.xlu0 %6898
        %6900 = vrot.lane.b32.xlu0 %v6878, 16
        %v6901 = vpop.permute.xlu0 %6900
        %6902 = vrot.lane.b32.xlu0 %v6879, 16
        %v6903 = vpop.permute.xlu0 %6902
        %6904 = vrot.lane.b32.xlu0 %v6880, 16
        %v6905 = vpop.permute.xlu0 %6904
        %6906 = vrot.lane.b32.xlu0 %v6881, 16
        %v6907 = vpop.permute.xlu0 %6906
        %6908 = vrot.lane.b32.xlu0 %v6882, 16
        %v6909 = vpop.permute.xlu0 %6908
        %6910 = vrot.lane.b32.xlu0 %v6883, 16
        %v6911 = vpop.permute.xlu0 %6910
        %6912 = vrot.lane.b32.xlu0 %v6884, 16
        %v6913 = vpop.permute.xlu0 %6912
        %6914 = vrot.lane.b32.xlu0 %v6885, 16
        %v6915 = vpop.permute.xlu0 %6914
        %6916 = vrot.lane.b32.xlu0 %v6886, 16
        %v6917 = vpop.permute.xlu0 %6916
        %6918 = vrot.lane.b32.xlu0 %v6887, 16
        %v6919 = vpop.permute.xlu0 %6918
        %v6920 = vunpack.c.l.b16 %v5802
        %v6921 = vunpack.c.l.b16 %v5805
        %v6922 = vunpack.c.l.b16 %v5809
        %v6923 = vunpack.c.l.b16 %v5812
        %v6924 = vunpack.c.l.b16 %v5816
        %v6925 = vunpack.c.l.b16 %v5819
        %v6926 = vunpack.c.l.b16 %v5823
        %v6927 = vunpack.c.l.b16 %v5826
        %v6928 = vunpack.c.l.b16 %v5830
        %v6929 = vunpack.c.l.b16 %v5833
        %v6930 = vunpack.c.l.b16 %v5837
        %v6931 = vunpack.c.l.b16 %v5840
        %v6932 = vunpack.c.l.b16 %v5844
        %v6933 = vunpack.c.l.b16 %v5847
        %v6934 = vunpack.c.l.b16 %v5851
        %v6935 = vunpack.c.l.b16 %v5854
        %v6936 = vunpack.c.l.b16 %v5858
        %v6937 = vunpack.c.l.b16 %v5861
        %v6938 = vunpack.c.l.b16 %v5865
        %v6939 = vunpack.c.l.b16 %v5868
        %v6940 = vunpack.c.l.b16 %v5872
        %v6941 = vunpack.c.l.b16 %v5875
        %v6942 = vunpack.c.l.b16 %v5879
        %v6943 = vunpack.c.l.b16 %v5882
        %v6944 = vunpack.c.l.b16 %v5886
        %v6945 = vunpack.c.l.b16 %v5889
        %v6946 = vunpack.c.l.b16 %v5893
        %v6947 = vunpack.c.l.b16 %v5896
        %v6948 = vunpack.c.l.b16 %v5900
        %v6949 = vunpack.c.l.b16 %v5903
        %v6950 = vunpack.c.l.b16 %v5907
        %v6951 = vunpack.c.l.b16 %v5910
        %v6952 = vpack.c.b16 %v6921, %v6920
        %v6953 = vpack.c.b16 %v6923, %v6922
        %v6954 = vpack.c.b16 %v6925, %v6924
        %v6955 = vpack.c.b16 %v6927, %v6926
        %v6956 = vpack.c.b16 %v6929, %v6928
        %v6957 = vpack.c.b16 %v6931, %v6930
        %v6958 = vpack.c.b16 %v6933, %v6932
        %v6959 = vpack.c.b16 %v6935, %v6934
        %v6960 = vpack.c.b16 %v6937, %v6936
        %v6961 = vpack.c.b16 %v6939, %v6938
        %v6962 = vpack.c.b16 %v6941, %v6940
        %v6963 = vpack.c.b16 %v6943, %v6942
        %v6964 = vpack.c.b16 %v6945, %v6944
        %v6965 = vpack.c.b16 %v6947, %v6946
        %v6966 = vpack.c.b16 %v6949, %v6948
        %v6967 = vpack.c.b16 %v6951, %v6950
        %6968 = vrot.lane.b32.xlu0 %v6952, 20
        %v6969 = vpop.permute.xlu0 %6968
        %6970 = vrot.lane.b32.xlu0 %v6953, 20
        %v6971 = vpop.permute.xlu0 %6970
        %6972 = vrot.lane.b32.xlu0 %v6954, 20
        %v6973 = vpop.permute.xlu0 %6972
        %6974 = vrot.lane.b32.xlu0 %v6955, 20
        %v6975 = vpop.permute.xlu0 %6974
        %6976 = vrot.lane.b32.xlu0 %v6956, 20
        %v6977 = vpop.permute.xlu0 %6976
        %6978 = vrot.lane.b32.xlu0 %v6957, 20
        %v6979 = vpop.permute.xlu0 %6978
        %6980 = vrot.lane.b32.xlu0 %v6958, 20
        %v6981 = vpop.permute.xlu0 %6980
        %6982 = vrot.lane.b32.xlu0 %v6959, 20
        %v6983 = vpop.permute.xlu0 %6982
        %6984 = vrot.lane.b32.xlu0 %v6960, 20
        %v6985 = vpop.permute.xlu0 %6984
        %6986 = vrot.lane.b32.xlu0 %v6961, 20
        %v6987 = vpop.permute.xlu0 %6986
        %6988 = vrot.lane.b32.xlu0 %v6962, 20
        %v6989 = vpop.permute.xlu0 %6988
        %6990 = vrot.lane.b32.xlu0 %v6963, 20
        %v6991 = vpop.permute.xlu0 %6990
        %6992 = vrot.lane.b32.xlu0 %v6964, 20
        %v6993 = vpop.permute.xlu0 %6992
        %6994 = vrot.lane.b32.xlu0 %v6965, 20
        %v6995 = vpop.permute.xlu0 %6994
        %6996 = vrot.lane.b32.xlu0 %v6966, 20
        %v6997 = vpop.permute.xlu0 %6996
        %6998 = vrot.lane.b32.xlu0 %v6967, 20
        %v6999 = vpop.permute.xlu0 %6998
        %v7016 = vunpack.c.l.b16 %v5912
        %v7017 = vunpack.c.l.b16 %v5913
        %v7018 = vunpack.c.l.b16 %v5914
        %v7019 = vunpack.c.l.b16 %v5915
        %v7020 = vunpack.c.l.b16 %v5916
        %v7021 = vunpack.c.l.b16 %v5917
        %v7022 = vunpack.c.l.b16 %v5918
        %v7023 = vunpack.c.l.b16 %v5919
        %v7024 = vunpack.c.l.b16 %v5920
        %v7025 = vunpack.c.l.b16 %v5921
        %v7026 = vunpack.c.l.b16 %v5922
        %v7027 = vunpack.c.l.b16 %v5923
        %v7028 = vunpack.c.l.b16 %v5924
        %v7029 = vunpack.c.l.b16 %v5925
        %v7030 = vunpack.c.l.b16 %v5926
        %v7031 = vunpack.c.l.b16 %v5927
        %v7032 = vunpack.c.l.b16 %v5928
        %v7033 = vunpack.c.l.b16 %v5929
        %v7034 = vunpack.c.l.b16 %v5930
        %v7035 = vunpack.c.l.b16 %v5931
        %v7036 = vunpack.c.l.b16 %v5932
        %v7037 = vunpack.c.l.b16 %v5933
        %v7038 = vunpack.c.l.b16 %v5934
        %v7039 = vunpack.c.l.b16 %v5935
        %v7040 = vunpack.c.l.b16 %v5936
        %v7041 = vunpack.c.l.b16 %v5937
        %v7042 = vunpack.c.l.b16 %v5938
        %v7043 = vunpack.c.l.b16 %v5939
        %v7044 = vunpack.c.l.b16 %v5940
        %v7045 = vunpack.c.l.b16 %v5941
        %v7046 = vunpack.c.l.b16 %v5942
        %v7047 = vunpack.c.l.b16 %v5943
        %v7048 = vpack.c.b16 %v7017, %v7016
        %v7049 = vpack.c.b16 %v7019, %v7018
        %v7050 = vpack.c.b16 %v7021, %v7020
        %v7051 = vpack.c.b16 %v7023, %v7022
        %v7052 = vpack.c.b16 %v7025, %v7024
        %v7053 = vpack.c.b16 %v7027, %v7026
        %v7054 = vpack.c.b16 %v7029, %v7028
        %v7055 = vpack.c.b16 %v7031, %v7030
        %v7056 = vpack.c.b16 %v7033, %v7032
        %v7057 = vpack.c.b16 %v7035, %v7034
        %v7058 = vpack.c.b16 %v7037, %v7036
        %v7059 = vpack.c.b16 %v7039, %v7038
        %v7060 = vpack.c.b16 %v7041, %v7040
        %v7061 = vpack.c.b16 %v7043, %v7042
        %v7062 = vpack.c.b16 %v7045, %v7044
        %v7063 = vpack.c.b16 %v7047, %v7046
        %7064 = vrot.lane.b32.xlu0 %v7048, 24
        %v7065 = vpop.permute.xlu0 %7064
        %7066 = vrot.lane.b32.xlu0 %v7049, 24
        %v7067 = vpop.permute.xlu0 %7066
        %7068 = vrot.lane.b32.xlu0 %v7050, 24
        %v7069 = vpop.permute.xlu0 %7068
        %7070 = vrot.lane.b32.xlu0 %v7051, 24
        %v7071 = vpop.permute.xlu0 %7070
        %7072 = vrot.lane.b32.xlu0 %v7052, 24
        %v7073 = vpop.permute.xlu0 %7072
        %7074 = vrot.lane.b32.xlu0 %v7053, 24
        %v7075 = vpop.permute.xlu0 %7074
        %7076 = vrot.lane.b32.xlu0 %v7054, 24
        %v7077 = vpop.permute.xlu0 %7076
        %7078 = vrot.lane.b32.xlu0 %v7055, 24
        %v7079 = vpop.permute.xlu0 %7078
        %7080 = vrot.lane.b32.xlu0 %v7056, 24
        %v7081 = vpop.permute.xlu0 %7080
        %7082 = vrot.lane.b32.xlu0 %v7057, 24
        %v7083 = vpop.permute.xlu0 %7082
        %7084 = vrot.lane.b32.xlu0 %v7058, 24
        %v7085 = vpop.permute.xlu0 %7084
        %7086 = vrot.lane.b32.xlu0 %v7059, 24
        %v7087 = vpop.permute.xlu0 %7086
        %7088 = vrot.lane.b32.xlu0 %v7060, 24
        %v7089 = vpop.permute.xlu0 %7088
        %7090 = vrot.lane.b32.xlu0 %v7061, 24
        %v7091 = vpop.permute.xlu0 %7090
        %7092 = vrot.lane.b32.xlu0 %v7062, 24
        %v7093 = vpop.permute.xlu0 %7092
        %7094 = vrot.lane.b32.xlu0 %v7063, 24
        %v7095 = vpop.permute.xlu0 %7094
        %v7096 = vunpack.c.l.b16 %v5973
        %v7097 = vunpack.c.l.b16 %v5983
        %v7098 = vunpack.c.l.b16 %v5997
        %v7099 = vunpack.c.l.b16 %v6007
        %v7100 = vunpack.c.l.b16 %v6021
        %v7101 = vunpack.c.l.b16 %v6031
        %v7102 = vunpack.c.l.b16 %v6045
        %v7103 = vunpack.c.l.b16 %v6055
        %v7104 = vunpack.c.l.b16 %v6069
        %v7105 = vunpack.c.l.b16 %v6079
        %v7106 = vunpack.c.l.b16 %v6093
        %v7107 = vunpack.c.l.b16 %v6103
        %v7108 = vunpack.c.l.b16 %v6117
        %v7109 = vunpack.c.l.b16 %v6127
        %v7110 = vunpack.c.l.b16 %v6141
        %v7111 = vunpack.c.l.b16 %v6151
        %v7112 = vunpack.c.l.b16 %v6165
        %v7113 = vunpack.c.l.b16 %v6175
        %v7114 = vunpack.c.l.b16 %v6189
        %v7115 = vunpack.c.l.b16 %v6199
        %v7116 = vunpack.c.l.b16 %v6213
        %v7117 = vunpack.c.l.b16 %v6223
        %v7118 = vunpack.c.l.b16 %v6237
        %v7119 = vunpack.c.l.b16 %v6247
        %v7120 = vunpack.c.l.b16 %v6261
        %v7121 = vunpack.c.l.b16 %v6271
        %v7122 = vunpack.c.l.b16 %v6285
        %v7123 = vunpack.c.l.b16 %v6295
        %v7124 = vunpack.c.l.b16 %v6309
        %v7125 = vunpack.c.l.b16 %v6319
        %v7126 = vunpack.c.l.b16 %v6333
        %v7127 = vunpack.c.l.b16 %v6343
        %v7128 = vpack.c.b16 %v7097, %v7096
        %v7129 = vpack.c.b16 %v7099, %v7098
        %v7130 = vpack.c.b16 %v7101, %v7100
        %v7131 = vpack.c.b16 %v7103, %v7102
        %v7132 = vpack.c.b16 %v7105, %v7104
        %v7133 = vpack.c.b16 %v7107, %v7106
        %v7134 = vpack.c.b16 %v7109, %v7108
        %v7135 = vpack.c.b16 %v7111, %v7110
        %v7136 = vpack.c.b16 %v7113, %v7112
        %v7137 = vpack.c.b16 %v7115, %v7114
        %v7138 = vpack.c.b16 %v7117, %v7116
        %v7139 = vpack.c.b16 %v7119, %v7118
        %v7140 = vpack.c.b16 %v7121, %v7120
        %v7141 = vpack.c.b16 %v7123, %v7122
        %v7142 = vpack.c.b16 %v7125, %v7124
        %v7143 = vpack.c.b16 %v7127, %v7126
        %7144 = vrot.lane.b32.xlu0 %v7128, 28
        %v7145 = vpop.permute.xlu0 %7144
        %7146 = vrot.lane.b32.xlu0 %v7129, 28
        %v7147 = vpop.permute.xlu0 %7146
        %7148 = vrot.lane.b32.xlu0 %v7130, 28
        %v7149 = vpop.permute.xlu0 %7148
        %7150 = vrot.lane.b32.xlu0 %v7131, 28
        %v7151 = vpop.permute.xlu0 %7150
        %7152 = vrot.lane.b32.xlu0 %v7132, 28
        %v7153 = vpop.permute.xlu0 %7152
        %7154 = vrot.lane.b32.xlu0 %v7133, 28
        %v7155 = vpop.permute.xlu0 %7154
        %7156 = vrot.lane.b32.xlu0 %v7134, 28
        %v7157 = vpop.permute.xlu0 %7156
        %7158 = vrot.lane.b32.xlu0 %v7135, 28
        %v7159 = vpop.permute.xlu0 %7158
        %7160 = vrot.lane.b32.xlu0 %v7136, 28
        %v7161 = vpop.permute.xlu0 %7160
        %7162 = vrot.lane.b32.xlu0 %v7137, 28
        %v7163 = vpop.permute.xlu0 %7162
        %7164 = vrot.lane.b32.xlu0 %v7138, 28
        %v7165 = vpop.permute.xlu0 %7164
        %7166 = vrot.lane.b32.xlu0 %v7139, 28
        %v7167 = vpop.permute.xlu0 %7166
        %7168 = vrot.lane.b32.xlu0 %v7140, 28
        %v7169 = vpop.permute.xlu0 %7168
        %7170 = vrot.lane.b32.xlu0 %v7141, 28
        %v7171 = vpop.permute.xlu0 %7170
        %7172 = vrot.lane.b32.xlu0 %v7142, 28
        %v7173 = vpop.permute.xlu0 %7172
        %7174 = vrot.lane.b32.xlu0 %v7143, 28
        %v7175 = vpop.permute.xlu0 %7174
        %v7176 = vunpack.c.l.b16 %v6411
        %v7177 = vunpack.c.l.b16 %v6414
        %v7178 = vunpack.c.l.b16 %v6418
        %v7179 = vunpack.c.l.b16 %v6421
        %v7180 = vunpack.c.l.b16 %v6425
        %v7181 = vunpack.c.l.b16 %v6428
        %v7182 = vunpack.c.l.b16 %v6432
        %v7183 = vunpack.c.l.b16 %v6435
        %v7184 = vunpack.c.l.b16 %v6439
        %v7185 = vunpack.c.l.b16 %v6442
        %v7186 = vunpack.c.l.b16 %v6446
        %v7187 = vunpack.c.l.b16 %v6449
        %v7188 = vunpack.c.l.b16 %v6453
        %v7189 = vunpack.c.l.b16 %v6456
        %v7190 = vunpack.c.l.b16 %v6460
        %v7191 = vunpack.c.l.b16 %v6463
        %v7192 = vunpack.c.l.b16 %v6467
        %v7193 = vunpack.c.l.b16 %v6470
        %v7194 = vunpack.c.l.b16 %v6474
        %v7195 = vunpack.c.l.b16 %v6477
        %v7196 = vunpack.c.l.b16 %v6481
        %v7197 = vunpack.c.l.b16 %v6484
        %v7198 = vunpack.c.l.b16 %v6488
        %v7199 = vunpack.c.l.b16 %v6491
        %v7200 = vunpack.c.l.b16 %v6495
        %v7201 = vunpack.c.l.b16 %v6498
        %v7202 = vunpack.c.l.b16 %v6502
        %v7203 = vunpack.c.l.b16 %v6505
        %v7204 = vunpack.c.l.b16 %v6509
        %v7205 = vunpack.c.l.b16 %v6512
        %v7206 = vunpack.c.l.b16 %v6516
        %v7207 = vunpack.c.l.b16 %v6519
        %v7208 = vpack.c.b16 %v7177, %v7176
        %v7209 = vpack.c.b16 %v7179, %v7178
        %v7210 = vpack.c.b16 %v7181, %v7180
        %v7211 = vpack.c.b16 %v7183, %v7182
        %v7212 = vpack.c.b16 %v7185, %v7184
        %v7213 = vpack.c.b16 %v7187, %v7186
        %v7214 = vpack.c.b16 %v7189, %v7188
        %v7215 = vpack.c.b16 %v7191, %v7190
        %v7216 = vpack.c.b16 %v7193, %v7192
        %v7217 = vpack.c.b16 %v7195, %v7194
        %v7218 = vpack.c.b16 %v7197, %v7196
        %v7219 = vpack.c.b16 %v7199, %v7198
        %v7220 = vpack.c.b16 %v7201, %v7200
        %v7221 = vpack.c.b16 %v7203, %v7202
        %v7222 = vpack.c.b16 %v7205, %v7204
        %v7223 = vpack.c.b16 %v7207, %v7206
        %7224 = vrot.lane.b32.xlu0 %v7208, 32
        %v7225 = vpop.permute.xlu0 %7224
        %7226 = vrot.lane.b32.xlu0 %v7209, 32
        %v7227 = vpop.permute.xlu0 %7226
        %7228 = vrot.lane.b32.xlu0 %v7210, 32
        %v7229 = vpop.permute.xlu0 %7228
        %7230 = vrot.lane.b32.xlu0 %v7211, 32
        %v7231 = vpop.permute.xlu0 %7230
        %7232 = vrot.lane.b32.xlu0 %v7212, 32
        %v7233 = vpop.permute.xlu0 %7232
        %7234 = vrot.lane.b32.xlu0 %v7213, 32
        %v7235 = vpop.permute.xlu0 %7234
        %7236 = vrot.lane.b32.xlu0 %v7214, 32
        %v7237 = vpop.permute.xlu0 %7236
        %7238 = vrot.lane.b32.xlu0 %v7215, 32
        %v7239 = vpop.permute.xlu0 %7238
        %7240 = vrot.lane.b32.xlu0 %v7216, 32
        %v7241 = vpop.permute.xlu0 %7240
        %7242 = vrot.lane.b32.xlu0 %v7217, 32
        %v7243 = vpop.permute.xlu0 %7242
        %7244 = vrot.lane.b32.xlu0 %v7218, 32
        %v7245 = vpop.permute.xlu0 %7244
        %7246 = vrot.lane.b32.xlu0 %v7219, 32
        %v7247 = vpop.permute.xlu0 %7246
        %7248 = vrot.lane.b32.xlu0 %v7220, 32
        %v7249 = vpop.permute.xlu0 %7248
        %7250 = vrot.lane.b32.xlu0 %v7221, 32
        %v7251 = vpop.permute.xlu0 %7250
        %7252 = vrot.lane.b32.xlu0 %v7222, 32
        %v7253 = vpop.permute.xlu0 %7252
        %7254 = vrot.lane.b32.xlu0 %v7223, 32
        %v7255 = vpop.permute.xlu0 %7254
        %v7258 = vsel %vm3629, %v6568, %v6633
        %v7261 = vsel %vm3629, %v6569, %v6635
        %v7264 = vsel %vm3629, %v6570, %v6637
        %v7267 = vsel %vm3629, %v6571, %v6639
        %v7270 = vsel %vm3629, %v6572, %v6641
        %v7273 = vsel %vm3629, %v6573, %v6643
        %v7276 = vsel %vm3629, %v6574, %v6645
        %v7279 = vsel %vm3629, %v6575, %v6647
        %v7282 = vsel %vm3629, %v6576, %v6649
        %v7285 = vsel %vm3629, %v6577, %v6651
        %v7288 = vsel %vm3629, %v6578, %v6653
        %v7291 = vsel %vm3629, %v6579, %v6655
        %v7294 = vsel %vm3629, %v6580, %v6657
        %v7297 = vsel %vm3629, %v6581, %v6659
        %v7300 = vsel %vm3629, %v6582, %v6661
        %v7303 = vsel %vm3629, %v6583, %v6663
        %v7305 = vsel %vm3678, %v7258, %v6713
        %v7307 = vsel %vm3678, %v7261, %v6715
        %v7309 = vsel %vm3678, %v7264, %v6717
        %v7311 = vsel %vm3678, %v7267, %v6719
        %v7313 = vsel %vm3678, %v7270, %v6721
        %v7315 = vsel %vm3678, %v7273, %v6723
        %v7317 = vsel %vm3678, %v7276, %v6725
        %v7319 = vsel %vm3678, %v7279, %v6727
        %v7321 = vsel %vm3678, %v7282, %v6729
        %v7323 = vsel %vm3678, %v7285, %v6731
        %v7325 = vsel %vm3678, %v7288, %v6733
        %v7327 = vsel %vm3678, %v7291, %v6735
        %v7329 = vsel %vm3678, %v7294, %v6737
        %v7331 = vsel %vm3678, %v7297, %v6739
        %v7333 = vsel %vm3678, %v7300, %v6741
        %v7335 = vsel %vm3678, %v7303, %v6743
        %v7337 = vsel %vm3711, %v7305, %v6809
        %v7339 = vsel %vm3711, %v7307, %v6811
        %v7341 = vsel %vm3711, %v7309, %v6813
        %v7343 = vsel %vm3711, %v7311, %v6815
        %v7345 = vsel %vm3711, %v7313, %v6817
        %v7347 = vsel %vm3711, %v7315, %v6819
        %v7349 = vsel %vm3711, %v7317, %v6821
        %v7351 = vsel %vm3711, %v7319, %v6823
        %v7353 = vsel %vm3711, %v7321, %v6825
        %v7355 = vsel %vm3711, %v7323, %v6827
        %v7357 = vsel %vm3711, %v7325, %v6829
        %v7359 = vsel %vm3711, %v7327, %v6831
        %v7361 = vsel %vm3711, %v7329, %v6833
        %v7363 = vsel %vm3711, %v7331, %v6835
        %v7365 = vsel %vm3711, %v7333, %v6837
        %v7367 = vsel %vm3711, %v7335, %v6839
        %v7369 = vsel %vm3744, %v7337, %v6889
        %v7371 = vsel %vm3744, %v7339, %v6891
        %v7373 = vsel %vm3744, %v7341, %v6893
        %v7375 = vsel %vm3744, %v7343, %v6895
        %v7377 = vsel %vm3744, %v7345, %v6897
        %v7379 = vsel %vm3744, %v7347, %v6899
        %v7381 = vsel %vm3744, %v7349, %v6901
        %v7383 = vsel %vm3744, %v7351, %v6903
        %v7385 = vsel %vm3744, %v7353, %v6905
        %v7387 = vsel %vm3744, %v7355, %v6907
        %v7389 = vsel %vm3744, %v7357, %v6909
        %v7391 = vsel %vm3744, %v7359, %v6911
        %v7393 = vsel %vm3744, %v7361, %v6913
        %v7395 = vsel %vm3744, %v7363, %v6915
        %v7397 = vsel %vm3744, %v7365, %v6917
        %v7399 = vsel %vm3744, %v7367, %v6919
        %v7401 = vsel %vm3777, %v7369, %v6969
        %v7403 = vsel %vm3777, %v7371, %v6971
        %v7405 = vsel %vm3777, %v7373, %v6973
        %v7407 = vsel %vm3777, %v7375, %v6975
        %v7409 = vsel %vm3777, %v7377, %v6977
        %v7411 = vsel %vm3777, %v7379, %v6979
        %v7413 = vsel %vm3777, %v7381, %v6981
        %v7415 = vsel %vm3777, %v7383, %v6983
        %v7417 = vsel %vm3777, %v7385, %v6985
        %v7419 = vsel %vm3777, %v7387, %v6987
        %v7421 = vsel %vm3777, %v7389, %v6989
        %v7423 = vsel %vm3777, %v7391, %v6991
        %v7425 = vsel %vm3777, %v7393, %v6993
        %v7427 = vsel %vm3777, %v7395, %v6995
        %v7429 = vsel %vm3777, %v7397, %v6997
        %v7431 = vsel %vm3777, %v7399, %v6999
        %v7433 = vsel %vm3810, %v7401, %v7065
        %v7435 = vsel %vm3810, %v7403, %v7067
        %v7437 = vsel %vm3810, %v7405, %v7069
        %v7439 = vsel %vm3810, %v7407, %v7071
        %v7441 = vsel %vm3810, %v7409, %v7073
        %v7443 = vsel %vm3810, %v7411, %v7075
        %v7445 = vsel %vm3810, %v7413, %v7077
        %v7447 = vsel %vm3810, %v7415, %v7079
        %v7449 = vsel %vm3810, %v7417, %v7081
        %v7451 = vsel %vm3810, %v7419, %v7083
        %v7453 = vsel %vm3810, %v7421, %v7085
        %v7455 = vsel %vm3810, %v7423, %v7087
        %v7457 = vsel %vm3810, %v7425, %v7089
        %v7459 = vsel %vm3810, %v7427, %v7091
        %v7461 = vsel %vm3810, %v7429, %v7093
        %v7463 = vsel %vm3810, %v7431, %v7095
        %v7465 = vsel %vm3843, %v7433, %v7145
        %v7467 = vsel %vm3843, %v7435, %v7147
        %v7469 = vsel %vm3843, %v7437, %v7149
        %v7471 = vsel %vm3843, %v7439, %v7151
        %v7473 = vsel %vm3843, %v7441, %v7153
        %v7475 = vsel %vm3843, %v7443, %v7155
        %v7477 = vsel %vm3843, %v7445, %v7157
        %v7479 = vsel %vm3843, %v7447, %v7159
        %v7481 = vsel %vm3843, %v7449, %v7161
        %v7483 = vsel %vm3843, %v7451, %v7163
        %v7485 = vsel %vm3843, %v7453, %v7165
        %v7487 = vsel %vm3843, %v7455, %v7167
        %v7489 = vsel %vm3843, %v7457, %v7169
        %v7491 = vsel %vm3843, %v7459, %v7171
        %v7493 = vsel %vm3843, %v7461, %v7173
        %v7495 = vsel %vm3843, %v7463, %v7175
        %v7497 = vsel %vm3876, %v7465, %v7225
        %v7499 = vsel %vm3876, %v7467, %v7227
        %v7501 = vsel %vm3876, %v7469, %v7229
        %v7503 = vsel %vm3876, %v7471, %v7231
        %v7505 = vsel %vm3876, %v7473, %v7233
        %v7507 = vsel %vm3876, %v7475, %v7235
        %v7509 = vsel %vm3876, %v7477, %v7237
        %v7511 = vsel %vm3876, %v7479, %v7239
        %v7513 = vsel %vm3876, %v7481, %v7241
        %v7515 = vsel %vm3876, %v7483, %v7243
        %v7517 = vsel %vm3876, %v7485, %v7245
        %v7519 = vsel %vm3876, %v7487, %v7247
        %v7521 = vsel %vm3876, %v7489, %v7249
        %v7523 = vsel %vm3876, %v7491, %v7251
        %v7525 = vsel %vm3876, %v7493, %v7253
        %v7527 = vsel %vm3876, %v7495, %v7255
        %v7528 = vld [vmem:[%s3] sm:$0xf]
        %v7529 = vld [vmem:[%s3 + $0x4] sm:$0xf]
        %v7530 = vld [vmem:[%s3 + $0x8] sm:$0xf]
        %v7531 = vld [vmem:[%s3 + $0xc] sm:$0xf]
        %v7532 = vld [vmem:[%s3 + $0x10] sm:$0x3]
        %v7533 = vld [vmem:[%s4] sm:$0x1]
        %v7535 = vlaneseq
        %v7536 = vshrl.u32 %v7535, 7
        %v7537 = vsub.s32 0, %v7536
        %v7538 = vrot.slane %v7533, %v7537
        %v7545 = vunpack.c.l.b16 %v7528
        %v7546 = vunpack.c.l.b16 %v7529
        %v7547 = vunpack.c.l.b16 %v7530
        %v7548 = vunpack.c.l.b16 %v7531
        %v7549 = vunpack.c.l.b16 %v7532
        %v7550 = vpack.c.b16 %v7546, %v7545
        %v7551 = vpack.c.b16 %v7548, %v7547
        %v7552 = vpack.c.b16 %v7549, %v7549
        %v7555 = vsel %vm3936, %v7497, 0
        %v7557 = vsel %vm3936, %v7499, 0
        %v7559 = vsel %vm3936, %v7501, 0
        %v7561 = vsel %vm3936, %v7503, 0
        %v7563 = vsel %vm3936, %v7505, 0
        %v7565 = vsel %vm3936, %v7507, 0
        %v7567 = vsel %vm3936, %v7509, 0
        %v7569 = vsel %vm3936, %v7511, 0
        %v7571 = vsel %vm3936, %v7513, 0
        %v7573 = vsel %vm3936, %v7515, 0
        %v7575 = vsel %vm3936, %v7517, 0
        %v7577 = vsel %vm3936, %v7519, 0
        %v7579 = vsel %vm3936, %v7521, 0
        %v7581 = vsel %vm3936, %v7523, 0
        %v7583 = vsel %vm3936, %v7525, 0
        %v7585 = vsel %vm3936, %v7527, 0
        %v7588 = vsel %vm3969, %v7552, 0
        %7590 = vmatprep.subr.bf16.mxu0 0
        %7591 = vmatpush1.bf16.msra.mxu0 %v7550
        %7592 = vmatprep.subr.bf16.mxu0 0
        %7593 = vmatpush1.bf16.msra.mxu0 %v7551
        %7594 = vmatprep.subr.bf16.mxu0 0
        %7595 = vmatpush1.bf16.msra.mxu0 %v7588
        %7596 = vmatprep.subr.bf16.mxu0 0
        %7597 = vmatpush1.bf16.msra.mxu0 0
        %7598 = vmatprep.subr.bf16.mxu0 0
        %7599 = vmatpush1.bf16.msra.mxu0 0
        %7600 = vmatprep.subr.bf16.mxu0 0
        %7601 = vmatpush1.bf16.msra.mxu0 0
        %7602 = vmatprep.subr.bf16.mxu0 0
        %7603 = vmatpush1.bf16.msra.mxu0 0
        %7604 = vmatprep.subr.bf16.mxu0 0
        %7605 = vmatpush1.bf16.msra.mxu0 0
        %7606 = vmatprep.subr.bf16.mxu0 0
        %7607 = vmatpush1.bf16.msra.mxu0 0
        %7608 = vmatprep.subr.bf16.mxu0 0
        %7609 = vmatpush1.bf16.msra.mxu0 0
        %7610 = vmatprep.subr.bf16.mxu0 0
        %7611 = vmatpush1.bf16.msra.mxu0 0
        %7612 = vmatprep.subr.bf16.mxu0 0
        %7613 = vmatpush1.bf16.msra.mxu0 0
        %7614 = vmatprep.subr.bf16.mxu0 0
        %7615 = vmatpush1.bf16.msra.mxu0 0
        %7616 = vmatprep.subr.bf16.mxu0 0
        %7617 = vmatpush1.bf16.msra.mxu0 0
        %7618 = vmatprep.subr.bf16.mxu0 0
        %7619 = vmatpush1.bf16.msra.mxu0 0
        %7620 = vmatprep.subr.bf16.mxu0 0
        %7621 = vmatpush1.bf16.msra.mxu0 0
        %7622 = vmatprep.mubr.bf16.mxu0 0
        %7623 = vmatmul.mubr.bf16.gmra.mrb[0].mxu0 %v7555
        %v7624 = vpop.f32.mrb[0].mxu0
        %v7625 = vadd.f32 %v7538, %v7624
        %v7626 = vpop.f32.mrb[0].mxu0
        %v7627 = vpop.f32.mrb[0].mxu0
        %v7628 = vadd.f32 %v7538, %v7627
        %v7629 = vpop.f32.mrb[0].mxu0
        %7630 = vmatprep.mubr.bf16.mxu0 0
        %7631 = vmatmul.mubr.bf16.gmra.mrb[0].mxu0 %v7557
        %v7632 = vpop.f32.mrb[0].mxu0
        %v7633 = vadd.f32 %v7538, %v7632
        %v7634 = vpop.f32.mrb[0].mxu0
        %v7635 = vpop.f32.mrb[0].mxu0
        %v7636 = vadd.f32 %v7538, %v7635
        %v7637 = vpop.f32.mrb[0].mxu0
        %7638 = vmatprep.mubr.bf16.mxu0 0
        %7639 = vmatmul.mubr.bf16.gmra.mrb[0].mxu0 %v7559
        %v7640 = vpop.f32.mrb[0].mxu0
        %v7641 = vadd.f32 %v7538, %v7640
        %v7642 = vpop.f32.mrb[0].mxu0
        %v7643 = vpop.f32.mrb[0].mxu0
        %v7644 = vadd.f32 %v7538, %v7643
        %v7645 = vpop.f32.mrb[0].mxu0
        %7646 = vmatprep.mubr.bf16.mxu0 0
        %7647 = vmatmul.mubr.bf16.gmra.mrb[0].mxu0 %v7561
        %v7648 = vpop.f32.mrb[0].mxu0
        %v7649 = vadd.f32 %v7538, %v7648
        %v7650 = vpop.f32.mrb[0].mxu0
        %v7651 = vpop.f32.mrb[0].mxu0
        %v7652 = vadd.f32 %v7538, %v7651
        %v7653 = vpop.f32.mrb[0].mxu0
        %7654 = vmatprep.mubr.bf16.mxu0 0
        %7655 = vmatmul.mubr.bf16.gmra.mrb[0].mxu0 %v7563
        %v7656 = vpop.f32.mrb[0].mxu0
        %v7657 = vadd.f32 %v7538, %v7656
        %v7658 = vpop.f32.mrb[0].mxu0
        %v7659 = vpop.f32.mrb[0].mxu0
        %v7660 = vadd.f32 %v7538, %v7659
        %v7661 = vpop.f32.mrb[0].mxu0
        %7662 = vmatprep.mubr.bf16.mxu0 0
        %7663 = vmatmul.mubr.bf16.gmra.mrb[0].mxu0 %v7565
        %v7664 = vpop.f32.mrb[0].mxu0
        %v7665 = vadd.f32 %v7538, %v7664
        %v7666 = vpop.f32.mrb[0].mxu0
        %v7667 = vpop.f32.mrb[0].mxu0
        %v7668 = vadd.f32 %v7538, %v7667
        %v7669 = vpop.f32.mrb[0].mxu0
        %7670 = vmatprep.mubr.bf16.mxu0 0
        %7671 = vmatmul.mubr.bf16.gmra.mrb[0].mxu0 %v7567
        %v7672 = vpop.f32.mrb[0].mxu0
        %v7673 = vadd.f32 %v7538, %v7672
        %v7674 = vpop.f32.mrb[0].mxu0
        %v7675 = vpop.f32.mrb[0].mxu0
        %v7676 = vadd.f32 %v7538, %v7675
        %v7677 = vpop.f32.mrb[0].mxu0
        %7678 = vmatprep.mubr.bf16.mxu0 0
        %7679 = vmatmul.mubr.bf16.gmra.mrb[0].mxu0 %v7569
        %v7680 = vpop.f32.mrb[0].mxu0
        %v7681 = vadd.f32 %v7538, %v7680
        %v7682 = vpop.f32.mrb[0].mxu0
        %v7683 = vpop.f32.mrb[0].mxu0
        %v7684 = vadd.f32 %v7538, %v7683
        %v7685 = vpop.f32.mrb[0].mxu0
        %7686 = vmatprep.mubr.bf16.mxu0 0
        %7687 = vmatmul.mubr.bf16.gmra.mrb[0].mxu0 %v7571
        %v7688 = vpop.f32.mrb[0].mxu0
        %v7689 = vadd.f32 %v7538, %v7688
        %v7690 = vpop.f32.mrb[0].mxu0
        %v7691 = vpop.f32.mrb[0].mxu0
        %v7692 = vadd.f32 %v7538, %v7691
        %v7693 = vpop.f32.mrb[0].mxu0
        %7694 = vmatprep.mubr.bf16.mxu0 0
        %7695 = vmatmul.mubr.bf16.gmra.mrb[0].mxu0 %v7573
        %v7696 = vpop.f32.mrb[0].mxu0
        %v7697 = vadd.f32 %v7538, %v7696
        %v7698 = vpop.f32.mrb[0].mxu0
        %v7699 = vpop.f32.mrb[0].mxu0
        %v7700 = vadd.f32 %v7538, %v7699
        %v7701 = vpop.f32.mrb[0].mxu0
        %7702 = vmatprep.mubr.bf16.mxu0 0
        %7703 = vmatmul.mubr.bf16.gmra.mrb[0].mxu0 %v7575
        %v7704 = vpop.f32.mrb[0].mxu0
        %v7705 = vadd.f32 %v7538, %v7704
        %v7706 = vpop.f32.mrb[0].mxu0
        %v7707 = vpop.f32.mrb[0].mxu0
        %v7708 = vadd.f32 %v7538, %v7707
        %v7709 = vpop.f32.mrb[0].mxu0
        %7710 = vmatprep.mubr.bf16.mxu0 0
        %7711 = vmatmul.mubr.bf16.gmra.mrb[0].mxu0 %v7577
        %v7712 = vpop.f32.mrb[0].mxu0
        %v7713 = vadd.f32 %v7538, %v7712
        %v7714 = vpop.f32.mrb[0].mxu0
        %v7715 = vpop.f32.mrb[0].mxu0
        %v7716 = vadd.f32 %v7538, %v7715
        %v7717 = vpop.f32.mrb[0].mxu0
        %7718 = vmatprep.mubr.bf16.mxu0 0
        %7719 = vmatmul.mubr.bf16.gmra.mrb[0].mxu0 %v7579
        %v7720 = vpop.f32.mrb[0].mxu0
        %v7721 = vadd.f32 %v7538, %v7720
        %v7722 = vpop.f32.mrb[0].mxu0
        %v7723 = vpop.f32.mrb[0].mxu0
        %v7724 = vadd.f32 %v7538, %v7723
        %v7725 = vpop.f32.mrb[0].mxu0
        %7726 = vmatprep.mubr.bf16.mxu0 0
        %7727 = vmatmul.mubr.bf16.gmra.mrb[0].mxu0 %v7581
        %v7728 = vpop.f32.mrb[0].mxu0
        %v7729 = vadd.f32 %v7538, %v7728
        %v7730 = vpop.f32.mrb[0].mxu0
        %v7731 = vpop.f32.mrb[0].mxu0
        %v7732 = vadd.f32 %v7538, %v7731
        %v7733 = vpop.f32.mrb[0].mxu0
        %7734 = vmatprep.mubr.bf16.mxu0 0
        %7735 = vmatmul.mubr.bf16.gmra.mrb[0].mxu0 %v7583
        %v7736 = vpop.f32.mrb[0].mxu0
        %v7737 = vadd.f32 %v7538, %v7736
        %v7738 = vpop.f32.mrb[0].mxu0
        %v7739 = vpop.f32.mrb[0].mxu0
        %v7740 = vadd.f32 %v7538, %v7739
        %v7741 = vpop.f32.mrb[0].mxu0
        %7742 = vmatprep.mubr.bf16.mxu0 0
        %7743 = vmatmul.mubr.bf16.gmra.mrb[0].mxu0 %v7585
        %v7744 = vpop.f32.mrb[0].mxu0
        %v7745 = vadd.f32 %v7538, %v7744
        %v7746 = vpop.f32.mrb[0].mxu0
        %v7747 = vpop.f32.mrb[0].mxu0
        %v7748 = vadd.f32 %v7538, %v7747
        %v7749 = vpop.f32.mrb[0].mxu0
        %7750 = vdwg.mxu0
        %7751 = vxpose.xlu0.b32.start [1/16] %v7625, 128
        %7752 = vxpose.xlu0.b32.cont [2/16] %v7628, 128
        %7753 = vxpose.xlu0.b32.cont [3/16] %v7633, 128
        %7754 = vxpose.xlu0.b32.cont [4/16] %v7636, 128
        %7755 = vxpose.xlu0.b32.cont [5/16] %v7641, 128
        %7756 = vxpose.xlu0.b32.cont [6/16] %v7644, 128
        %7757 = vxpose.xlu0.b32.cont [7/16] %v7649, 128
        %7758 = vxpose.xlu0.b32.cont [8/16] %v7652, 128
        %7759 = vxpose.xlu0.b32.cont [9/16] %v7657, 128
        %7760 = vxpose.xlu0.b32.cont [10/16] %v7660, 128
        %7761 = vxpose.xlu0.b32.cont [11/16] %v7665, 128
        %7762 = vxpose.xlu0.b32.cont [12/16] %v7668, 128
        %7763 = vxpose.xlu0.b32.cont [13/16] %v7673, 128
        %7764 = vxpose.xlu0.b32.cont [14/16] %v7676, 128
        %7765 = vxpose.xlu0.b32.cont [15/16] %v7681, 128
        %7766 = vxpose.xlu0.b32.end [16/16] %v7684, 128
        %v7767 = vpop.trf.xlu0
        %v7768 = vpop.trf.xlu0
        %v7769 = vpop.trf.xlu0
        %v7770 = vpop.trf.xlu0
        %v7771 = vpop.trf.xlu0
        %v7772 = vpop.trf.xlu0
        %v7773 = vpop.trf.xlu0
        %v7774 = vpop.trf.xlu0
        %v7775 = vpop.trf.xlu0
        %v7776 = vpop.trf.xlu0
        %v7777 = vpop.trf.xlu0
        %v7778 = vpop.trf.xlu0
        %v7779 = vpop.trf.xlu0
        %v7780 = vpop.trf.xlu0
        %v7781 = vpop.trf.xlu0
        %v7782 = vpop.trf.xlu0
        %7783 = vxpose.xlu0.b32.start [1/16] %v7689, 128
        %7784 = vxpose.xlu0.b32.cont [2/16] %v7692, 128
        %7785 = vxpose.xlu0.b32.cont [3/16] %v7697, 128
        %7786 = vxpose.xlu0.b32.cont [4/16] %v7700, 128
        %7787 = vxpose.xlu0.b32.cont [5/16] %v7705, 128
        %7788 = vxpose.xlu0.b32.cont [6/16] %v7708, 128
        %7789 = vxpose.xlu0.b32.cont [7/16] %v7713, 128
        %7790 = vxpose.xlu0.b32.cont [8/16] %v7716, 128
        %7791 = vxpose.xlu0.b32.cont [9/16] %v7721, 128
        %7792 = vxpose.xlu0.b32.cont [10/16] %v7724, 128
        %7793 = vxpose.xlu0.b32.cont [11/16] %v7729, 128
        %7794 = vxpose.xlu0.b32.cont [12/16] %v7732, 128
        %7795 = vxpose.xlu0.b32.cont [13/16] %v7737, 128
        %7796 = vxpose.xlu0.b32.cont [14/16] %v7740, 128
        %7797 = vxpose.xlu0.b32.cont [15/16] %v7745, 128
        %7798 = vxpose.xlu0.b32.end [16/16] %v7748, 128
        %v7799 = vpop.trf.xlu0
        %v7800 = vpop.trf.xlu0
        %v7801 = vpop.trf.xlu0
        %v7802 = vpop.trf.xlu0
        %v7803 = vpop.trf.xlu0
        %v7804 = vpop.trf.xlu0
        %v7805 = vpop.trf.xlu0
        %v7806 = vpop.trf.xlu0
        %v7807 = vpop.trf.xlu0
        %v7808 = vpop.trf.xlu0
        %v7809 = vpop.trf.xlu0
        %v7810 = vpop.trf.xlu0
        %v7811 = vpop.trf.xlu0
        %v7812 = vpop.trf.xlu0
        %v7813 = vpop.trf.xlu0
        %v7814 = vpop.trf.xlu0
        %v7815 = vadd.f32 %v7767, %v224
        %v7816 = vadd.f32 %v7799, %v463
        %v7817 = vmax.f32 %v7815, 0.0
        %v7818 = vmax.f32 %v7816, 0.0
        %v7821 = vcombine.low %v7817, %v7818
        %7823 = vst [vmem:[%s217] sm:$0xff] %v7821
        %s7824 = sand.u32 %s137, 1
        %s7825 = scalar_lea.sflag [#allocation5], %s7824
        %s7826 = sand.u32 %s137, 1
        %s7827 = smul.addr %s7826, 8
        %s7828 = scalar_lea.vmem [#allocation4], %s7827
        // Predicated region
        $region41: #{tpu_custom_call.1} parent=39 // pred_check
          %p7829 = pneg %p147
        $region42: #{tpu_custom_call.1} parent=39 // pred_check_branch
          %7831 = sbr.rel (%p7829) target = $region44
        $region43: #{tpu_custom_call.1} parent=39 // pred_region
          %s7833 = ssub.s32 128, 128
          %7834 = vsyncadd %s7825, %s7833
          %s7835 = smul.addr %s19, 2
          %s7836 = smul.addr %s7835, 64
          %s7837 = scalar_lea.hbm %s5, %s7836
          %s7839 = sshll.u32 %s7828, 4
          %s7840 = int_to_ptr.vmem [resolvable:$true] %s7839
          %7842 = dma.vmem_to_hbm [thread:$0]  %s7840, 128, %s7837, %s7825
        $region44: #{tpu_custom_call.1} parent=39 // pred_fallthru
          _
      $region40: #{tpu_custom_call.1} parent=5 // pred_fallthru
        _
      %p7843 = scmp.le.s32.totalorder 2, %s14
      // Predicated region
      $region45: #{tpu_custom_call.1} parent=5 // pred_check
        %p7844 = pneg %p7843
      $region46: #{tpu_custom_call.1} parent=5 // pred_check_branch
        %7846 = sbr.rel (%p7844) target = $region48
      $region47: #{tpu_custom_call.1} parent=5 // pred_region
        %s7847 = ssub.s32 %s14, 2
        // Predicated region
        $region49: #{tpu_custom_call.1} parent=47 // pred_check
          %p7848 = pneg %p153
        $region50: #{tpu_custom_call.1} parent=47 // pred_check_branch
          %7850 = sbr.rel (%p7848) target = $region52
        $region51: #{tpu_custom_call.1} parent=47 // pred_region
          %s7851 = sand.u32 %s138, 1
          %s7852 = scalar_lea.sflag [#allocation5], %s7851
          %s7853 = sand.u32 %s138, 1
          %s7854 = smul.addr %s7853, 8
          %s7855 = scalar_lea.vmem [#allocation4], %s7854
          %7856 = dma.done %s7852, 128
        $region52: #{tpu_custom_call.1} parent=47 // pred_fallthru
          _
      $region48: #{tpu_custom_call.1} parent=5 // pred_fallthru
        _
    $region6: #{tpu_custom_call.1} parent=1 // loop_footer
      %s18 = sadd.s32 1, %s14
    $region7: #{tpu_custom_call.1} parent=1 // loop_footer_branch
      %13 = sbr.rel target = $region3
    $region8: #{tpu_custom_call.1} parent=1 // loop_exit
      _
    %7857 = vsyncpa [#allocation5], 1
    %s7858 = scalar_lea.sflag [#allocation5], 1
    %7859 = vsyncpa %s7858, 1

</llo_original>
